<compile_context>
chip_gen: v7x
topology: tpu7x:2x2x1
jax: 0.10.0
libtpu: 0.0.40
codegen_flags: <defaults>
</compile_context>

<pallas_src>
import functools
import math

import jax
import jax.numpy as jnp
from jax.experimental import pallas as pl
from jax.experimental.pallas import tpu as pltpu


# ----------------------------- synthetic cfg --------------------------------
class cfg:
    plane_size = 16
    code_dim = 32
    feature_channel = 4
    feature_plane_types = ("xy", "yz", "xz")
    kn_plane_types = ("xy", "yz", "xz")


MLP_MAP_SIZE = 8
NUM_KN_PARAMS = 16


# ----------------------------- Pallas GEMM kernel ---------------------------
def _gemm_bias_act_kernel(a_ref, b_ref, bias_ref, o_ref, *, act):
    # A, B are bf16 tiles; accumulate in f32 on the MXU; epilogue in f32.
    y = jnp.dot(a_ref[...], b_ref[...], preferred_element_type=jnp.float32)
    y = y + bias_ref[...]          # bias broadcasts: (1,N), (Cout,1) or full tile
    if act == "leaky_relu":
        y = jnp.where(y >= 0, y, 0.2 * y)
    elif act == "relu":
        y = jnp.maximum(y, 0.0)
    o_ref[...] = y.astype(o_ref.dtype)


def _cparams(n_grid_axes):
    return pltpu.CompilerParams(
        dimension_semantics=("parallel",) * n_grid_axes,
        vmem_limit_bytes=16 * 1024 * 1024,
    )


# ----------------------------- Linear ---------------------------------------
def linear_act(x, w_t, bias_row, act="leaky_relu"):
    """x: (M, K) f32, w_t: (K, N) bf16, bias_row: (1, N) f32 -> (M, N) f32."""
    M, K = x.shape
    Kw, N = w_t.shape
    assert Kw == K and bias_row.shape == (1, N)
    Mp = max(8, ((M + 7) // 8) * 8)
    if Mp != M:
        x = jnp.pad(x, ((0, Mp - M), (0, 0)))
    x = x.astype(jnp.bfloat16)
    nb = N // 2 if (N % 256 == 0 and N >= 512) else N     # >=2 parallel grid steps
    out = pl.pallas_call(
        functools.partial(_gemm_bias_act_kernel, act=act),
        out_shape=jax.ShapeDtypeStruct((Mp, N), jnp.float32),
        grid_spec=pltpu.PrefetchScalarGridSpec(
            num_scalar_prefetch=0,
            grid=(N // nb,),
            in_specs=[
                pl.BlockSpec((Mp, K), lambda j: (0, 0)),
                pl.BlockSpec((K, nb), lambda j: (0, j)),
                pl.BlockSpec((1, nb), lambda j: (0, j)),
            ],
            out_specs=pl.BlockSpec((Mp, nb), lambda j: (0, j)),
        ),
        compiler_params=_cparams(1),
    )(x, w_t, bias_row)
    return out[:M]


# ------------------- ConvTranspose2d(k=4, s=2, p=1) — sub-pixel --------------
# out[n, co, 2r+ph, 2c+pw] = ub[co, 2r+ph, 2c+pw]
#   + sum_{ci, th, tw in {0,1}} xp[n, r+ph+th, c+pw+tw, ci] * w[ci, co, 3-ph-2th, 3-pw-2tw]
# (xp = x zero-padded by 1 in H and W). Only 4 of the 16 taps touch each output parity.

def _subpixel_weights(w):
    """Torch ConvTranspose2d weight (Cin, Cout, 4, 4) -> (4, 4*Cin, Cout) bf16."""
    cin, cout = w.shape[0], w.shape[1]
    mats = []
    for ph in range(2):
        for pw in range(2):
            taps = [w[:, :, 3 - ph - 2 * th, 3 - pw - 2 * tw]
                    for th in range(2) for tw in range(2)]          # each (Cin, Cout)
            mats.append(jnp.stack(taps, axis=0).reshape(4 * cin, cout))
    return jnp.stack(mats, axis=0).astype(jnp.bfloat16)             # (4, 4Cin, Cout)


def _subpixel_bias(ub):
    """Untied bias (Cout, 2H, 2W) -> per-parity (4, H*W, Cout) f32."""
    cout, ho, wo = ub.shape
    h, w = ho // 2, wo // 2
    u = ub.reshape(cout, h, 2, w, 2).transpose(2, 4, 1, 3, 0)       # (ph, pw, r, c, co)
    return u.reshape(4, h * w, cout).astype(jnp.float32)


def _subpixel_patches(x_nhwc):
    """x: (B, H, W, C) -> (B, 4, H*W, 4*C) bf16; columns ordered (th, tw, ci)."""
    B, H, W, C = x_nhwc.shape
    xp = jnp.pad(x_nhwc.astype(jnp.bfloat16), ((0, 0), (1, 1), (1, 1), (0, 0)))
    per_parity = []
    for ph in range(2):
        for pw in range(2):
            taps = [xp[:, ph + th:ph + th + H, pw + tw:pw + tw + W, :]
                    for th in range(2) for tw in range(2)]
            per_parity.append(jnp.concatenate(taps, axis=-1).reshape(B, H * W, 4 * C))
    return jnp.stack(per_parity, axis=1)                            # (B, 4, HW, 4C)


def conv_transpose_4x4_s2(x_nhwc, w_sub, bias_sub, act="leaky_relu"):
    """NHWC in/out. w_sub: (4, 4Cin, Cout) bf16, bias_sub: (4, H*W, Cout) f32."""
    B, H, W, Cin = x_nhwc.shape
    Cout = w_sub.shape[-1]
    HW = H * W
    patches = _subpixel_patches(x_nhwc)                             # (B, 4, HW, 4Cin)
    out = pl.pallas_call(
        functools.partial(_gemm_bias_act_kernel, act=act),
        out_shape=jax.ShapeDtypeStruct((B, 4, HW, Cout), jnp.float32),
        grid_spec=pltpu.PrefetchScalarGridSpec(
            num_scalar_prefetch=0,
            grid=(B, 4),
            in_specs=[
                pl.BlockSpec((None, None, HW, 4 * Cin), lambda b, p: (b, p, 0, 0)),
                pl.BlockSpec((None, 4 * Cin, Cout), lambda b, p: (p, 0, 0)),
                # untied bias is shared across the batch: index_map ignores `b`
                pl.BlockSpec((None, HW, Cout), lambda b, p: (p, 0, 0)),
            ],
            out_specs=pl.BlockSpec((None, None, HW, Cout), lambda b, p: (b, p, 0, 0)),
        ),
        compiler_params=_cparams(2),
    )(patches, w_sub, bias_sub)
    # pixel-shuffle (b, ph, pw, r, c, co) -> NHWC (b, 2r+ph, 2c+pw, co)
    o = out.reshape(B, 2, 2, H, W, Cout).transpose(0, 3, 1, 4, 2, 5)
    return o.reshape(B, 2 * H, 2 * W, Cout)


# ------------- 3x3 convs, transposed GEMM (lane-dense M), channel-major ------
def _im2col3x3_T(x_cm, stride):
    """x_cm: (C, B, H, W) channel-major -> (C*9, B*Ho*Wo) bf16, pad=1."""
    C, B, H, W = x_cm.shape
    xp = jnp.pad(x_cm.astype(jnp.bfloat16), ((0, 0), (0, 0), (1, 1), (1, 1)))
    Ho = (H + 2 - 3) // stride + 1
    Wo = (W + 2 - 3) // stride + 1
    taps = []
    for kh in range(3):
        for kw in range(3):
            taps.append(xp[:, :,
                           kh:kh + (Ho - 1) * stride + 1:stride,
                           kw:kw + (Wo - 1) * stride + 1:stride])   # (C, B, Ho, Wo)
    t = jnp.stack(taps, axis=1)                                     # (C, 9, B, Ho, Wo)
    return t.reshape(C * 9, B * Ho * Wo), Ho, Wo


def conv3x3_cm(x_cm, w_mat, bias_col, stride=1, act="none"):
    """Channel-major conv.  x_cm: (Cin, B, H, W); w_mat: (Cout, Cin*9) bf16;
    bias_col: (Cout, 1) f32.  Returns (Cout, B, Ho, Wo) f32 (channel-major)."""
    C, B, H, W = x_cm.shape
    Cout, K = w_mat.shape
    assert K == C * 9
    patches_T, Ho, Wo = _im2col3x3_T(x_cm, stride)                  # (K, M)
    M = B * Ho * Wo
    Mp = ((M + 127) // 128) * 128
    if Mp != M:
        patches_T = jnp.pad(patches_T, ((0, 0), (0, Mp - M)))
    # lane (M) blocks stay >= 128 wide; if only one M block, split Cout so the grid
    # still has >= 2 "parallel" steps (v7x megacore) without losing lane density.
    mb = 256 if (Mp % 256 == 0 and Mp // 256 >= 2) else Mp
    cb = Cout // 2 if (Mp // mb == 1 and Cout % 16 == 0) else Cout
    out_T = pl.pallas_call(
        functools.partial(_gemm_bias_act_kernel, act=act),
        out_shape=jax.ShapeDtypeStruct((Cout, Mp), jnp.float32),
        grid_spec=pltpu.PrefetchScalarGridSpec(
            num_scalar_prefetch=0,
            grid=(Cout // cb, Mp // mb),
            in_specs=[
                pl.BlockSpec((cb, K), lambda i, j: (i, 0)),
                pl.BlockSpec((K, mb), lambda i, j: (0, j)),
                pl.BlockSpec((cb, 1), lambda i, j: (i, 0)),
            ],
            out_specs=pl.BlockSpec((cb, mb), lambda i, j: (i, j)),
        ),
        compiler_params=_cparams(2),
    )(w_mat, patches_T, bias_col)
    return out_T[:, :M].reshape(Cout, B, Ho, Wo)


# ----------------------------- parameters -----------------------------------
def init_params(key):
    """Synthetic params, pre-reshaped / pre-cast once into GEMM-ready form."""
    def nrm(k, shape, fan_in):
        return jax.random.normal(k, shape, jnp.float32) / math.sqrt(fan_in)

    keys = iter(jax.random.split(key, 64))
    p = {}
    inch, outch, hstart, chstart = cfg.code_dim, 64, 4, 256
    triplane_ch = cfg.feature_channel * 3

    # LinearELR(inch, chstart*4*4, act=LeakyReLU(0.2))
    lin_w = nrm(next(keys), (chstart * hstart * hstart, inch), inch)
    p["lin_wT"] = lin_w.T.astype(jnp.bfloat16)                      # (K, N)
    p["lin_b"] = (0.01 * jax.random.normal(
        next(keys), (chstart * hstart * hstart,), jnp.float32)).reshape(1, -1)

    # upsampling ConvTranspose2dELR stack -> sub-pixel form
    nlayers = int(math.log2(cfg.plane_size)) - int(math.log2(hstart))
    lastch, dims, ct = chstart, hstart, []
    for i in range(nlayers):
        nextch = lastch if i % 2 == 0 else lastch // 2
        co = outch if i == nlayers - 1 else nextch
        w = nrm(next(keys), (lastch, co, 4, 4), lastch * 16)        # torch ConvT layout
        ub = 0.01 * jax.random.normal(next(keys), (co, dims * 2, dims * 2), jnp.float32)
        ct.append((_subpixel_weights(w), _subpixel_bias(ub)))
        lastch, dims = nextch, dims * 2
    p["ct"] = ct

    # fused feat_conv + density_conv  (Cout = 24)
    feat_w = nrm(next(keys), (triplane_ch, 64, 3, 3), 64 * 9)
    feat_b = 0.01 * jax.random.normal(next(keys), (triplane_ch,), jnp.float32)
    dens_w = nrm(next(keys), (triplane_ch, 64, 3, 3), 64 * 9)
    dens_b = 0.01 * jax.random.normal(next(keys), (triplane_ch,), jnp.float32)
    p["fd_w"] = jnp.concatenate([feat_w, dens_w], 0).reshape(
        2 * triplane_ch, 64 * 9).astype(jnp.bfloat16)
    p["fd_b"] = jnp.concatenate([feat_b, dens_b], 0).reshape(-1, 1)

    # kn backbone (strided 3x3 convs + ReLU)
    knlayers = int(math.log2(cfg.plane_size)) - int(math.log2(MLP_MAP_SIZE))
    ch, kn_bb = 64, []
    for i in range(knlayers):
        nextch = ch if i % 2 == 0 else ch * 2
        w = nrm(next(keys), (nextch, ch, 3, 3), ch * 9)
        b = 0.01 * jax.random.normal(next(keys), (nextch,), jnp.float32)
        kn_bb.append((w.reshape(nextch, ch * 9).astype(jnp.bfloat16), b.reshape(-1, 1)))
        ch = nextch
    p["kn_bb"] = kn_bb

    # fused kn heads, concatenated in final plane order (xy<-z, yz<-x, xz<-y)
    heads = {}
    for name in ("kn_x", "kn_y", "kn_z"):
        heads[name] = (nrm(next(keys), (NUM_KN_PARAMS, ch, 3, 3), ch * 9),
                       0.01 * jax.random.normal(next(keys), (NUM_KN_PARAMS,), jnp.float32))
    ws, bs = [], []
    for name in ("kn_z", "kn_x", "kn_y"):
        w, b = heads[name]
        ws.append(w)
        bs.append(b)
    p["kn_w"] = jnp.concatenate(ws, 0).reshape(3 * NUM_KN_PARAMS, ch * 9).astype(jnp.bfloat16)
    p["kn_b"] = jnp.concatenate(bs, 0).reshape(-1, 1)
    return p


# ----------------------------- forward ---------------------------------------
def plane_decoder_forward(params, enc):
    B = enc.shape[0]
    chstart, hstart = 256, 4
    tri = cfg.feature_channel * 3

    # backbone: LinearELR + Reshape + ConvTranspose2dELR stack (NHWC internally)
    net = linear_act(enc, params["lin_wT"], params["lin_b"], act="leaky_relu")
    net = net.reshape(B, chstart, hstart, hstart).transpose(0, 2, 3, 1)   # NHWC
    for w_sub, b_sub in params["ct"]:
        net = conv_transpose_4x4_s2(net, w_sub, b_sub, act="leaky_relu")
    # net: (B, 16, 16, 64) NHWC -> channel-major (64, B, 16, 16) for the head convs
    net_cm = net.transpose(3, 0, 1, 2)

    # fused feat + density heads: (24, B, 16, 16) channel-major
    fd = conv3x3_cm(net_cm, params["fd_w"], params["fd_b"], stride=1, act="none")
    feat_cm, dens_cm = fd[:tri], fd[tri:]

    # kn backbone (stride-2 3x3 + ReLU), stays channel-major
    kn_cm = net_cm
    for w, b in params["kn_bb"]:
        kn_cm = conv3x3_cm(kn_cm, w, b, stride=2, act="relu")

    # fused kn heads (order z, x, y): (48, B, 8, 8) channel-major
    kn = conv3x3_cm(kn_cm, params["kn_w"], params["kn_b"], stride=1, act="none")
    _, _, Hk, Wk = kn.shape

    # --- assemble outputs (matches multiplane_features / multiplane_params) ---
    def planes_from_cm(t_cm, ch):
        c3, bn, h, w = t_cm.shape
        return t_cm.reshape(3, ch, bn, h, w).transpose(2, 0, 1, 3, 4).reshape(bn * 3, ch, h, w)

    rgb = kn.reshape(3, NUM_KN_PARAMS, B, Hk * Wk)        # (plane[z,x,y], param, b, hw)
    rgb = rgb.transpose(2, 0, 3, 1).reshape(B * 3 * Hk * Wk, NUM_KN_PARAMS)

    return {
        "trip_kn_rgb_params": rgb,
        "trip_kn_features": planes_from_cm(feat_cm, cfg.feature_channel),
        "trip_kn_density_params": planes_from_cm(dens_cm, cfg.feature_channel),
    }


# ----------------------------- main ------------------------------------------
if __name__ == "__main__":
    key = jax.random.PRNGKey(0)
    pkey, xkey = jax.random.split(key)
    params = init_params(pkey)
    enc = jax.random.normal(xkey, (2, cfg.code_dim), jnp.float32)

    out = jax.jit(plane_decoder_forward)(params, enc)
    out = jax.block_until_ready(out)

    B = enc.shape[0]
    assert out["trip_kn_rgb_params"].shape == (B * 3 * MLP_MAP_SIZE * MLP_MAP_SIZE, NUM_KN_PARAMS)
    assert out["trip_kn_features"].shape == (B * 3, cfg.feature_channel, cfg.plane_size, cfg.plane_size)
    assert out["trip_kn_density_params"].shape == (B * 3, cfg.feature_channel, cfg.plane_size, cfg.plane_size)
    assert all(bool(jnp.isfinite(v).all()) for v in out.values())
    print("KERNEL_OK")
</pallas_src>

<mosaic_0001>
module attributes {stable_mosaic.version = 11 : i64} {
  func.func @_gemm_bias_act_kernel(%arg0: i32, %arg1: memref<8x32xbf16, #tpu.memory_space<vmem>>, %arg2: memref<32x2048xbf16, #tpu.memory_space<vmem>>, %arg3: memref<1x2048xf32, #tpu.memory_space<vmem>>, %arg4: memref<8x2048xf32, #tpu.memory_space<vmem>>) attributes {dimension_semantics = [#tpu.dimension_semantics<parallel>], iteration_bounds = array<i64: 2>, scalar_prefetch = 0 : i64, scratch_operands = 0 : i64, tpu.core_type = #tpu.core_type<tc>, window_params = [{pipeline_mode = #tpu.pipeline_mode<synchronous>, transform_indices = @transform_0, window_bounds = array<i64: 8, 32>}, {transform_indices = @transform_1, window_bounds = array<i64: 32, 2048>}, {transform_indices = @transform_2, window_bounds = array<i64: 1, 2048>}, {transform_indices = @transform_3, window_bounds = array<i64: 8, 2048>}]} {
    %c0 = arith.constant 0 : index
    %c0_0 = arith.constant 0 : index
    %0 = vector.load %arg1[%c0, %c0_0] : memref<8x32xbf16, #tpu.memory_space<vmem>>, vector<8x32xbf16>
    %c0_1 = arith.constant 0 : index
    %c0_2 = arith.constant 0 : index
    %1 = vector.load %arg2[%c0_1, %c0_2] : memref<32x2048xbf16, #tpu.memory_space<vmem>>, vector<32x2048xbf16>
    %cst = arith.constant dense<0.000000e+00> : vector<8x2048xf32>
    %2 = tpu.matmul %0, %1, %cst {dimension_numbers = #tpu.dot_dimension_numbers<[1], [0], [0], [1], [0, 0, 1, 1], [], []>} : vector<8x32xbf16>, vector<32x2048xbf16>, vector<8x2048xf32> -> vector<8x2048xf32>
    %c0_3 = arith.constant 0 : index
    %c0_4 = arith.constant 0 : index
    %3 = vector.load %arg3[%c0_3, %c0_4] : memref<1x2048xf32, #tpu.memory_space<vmem>>, vector<1x2048xf32>
    %4 = vector.broadcast %3 : vector<1x2048xf32> to vector<8x2048xf32>
    %5 = arith.addf %2, %4 : vector<8x2048xf32>
    %cst_5 = arith.constant 0.000000e+00 : f32
    %6 = vector.broadcast %cst_5 : f32 to vector<8x2048xf32>
    %7 = arith.cmpf oge, %5, %6 : vector<8x2048xf32>
    %cst_6 = arith.constant 2.000000e-01 : f32
    %8 = vector.broadcast %cst_6 : f32 to vector<8x2048xf32>
    %9 = arith.mulf %8, %5 : vector<8x2048xf32>
    %10 = arith.select %7, %5, %9 : vector<8x2048xi1>, vector<8x2048xf32>
    %c0_7 = arith.constant 0 : index
    %c0_8 = arith.constant 0 : index
    %11 = vector.load %arg4[%c0_7, %c0_8] : memref<8x2048xf32, #tpu.memory_space<vmem>>, vector<8x2048xf32>
    tpu.vector_store %arg4[%c0_7, %c0_8], %10 {strides = array<i32>} : memref<8x2048xf32, #tpu.memory_space<vmem>>, vector<8x2048xf32>,
    return
  }
  func.func @transform_0(%arg0: i32) -> (i32, i32) {
    %c0_i32 = arith.constant 0 : i32
    %c0_i32_0 = arith.constant 0 : i32
    %c0_i32_1 = arith.constant 0 : i32
    return %c0_i32, %c0_i32_0 : i32, i32
  }
  func.func @transform_1(%arg0: i32) -> (i32, i32) {
    %c0_i32 = arith.constant 0 : i32
    %c0_i32_0 = arith.constant 0 : i32
    return %c0_i32, %arg0 : i32, i32
  }
  func.func @transform_2(%arg0: i32) -> (i32, i32) {
    %c0_i32 = arith.constant 0 : i32
    %c0_i32_0 = arith.constant 0 : i32
    return %c0_i32, %arg0 : i32, i32
  }
  func.func @transform_3(%arg0: i32) -> (i32, i32) {
    %c0_i32 = arith.constant 0 : i32
    %c0_i32_0 = arith.constant 0 : i32
    return %c0_i32, %arg0 : i32, i32
  }
}

module attributes {stable_mosaic.version = 11 : i64} {
  func.func @_gemm_bias_act_kernel(%arg0: i32, %arg1: i32, %arg2: memref<1x1x16x1024xbf16, #tpu.memory_space<vmem>>, %arg3: memref<1x1024x256xbf16, #tpu.memory_space<vmem>>, %arg4: memref<1x16x256xf32, #tpu.memory_space<vmem>>, %arg5: memref<1x1x16x256xf32, #tpu.memory_space<vmem>>) attributes {dimension_semantics = [#tpu.dimension_semantics<parallel>, #tpu.dimension_semantics<parallel>], iteration_bounds = array<i64: 2, 4>, scalar_prefetch = 0 : i64, scratch_operands = 0 : i64, tpu.core_type = #tpu.core_type<tc>, window_params = [{transform_indices = @transform_0, window_bounds = array<i64: 1, 1, 16, 1024>}, {transform_indices = @transform_1, window_bounds = array<i64: 1, 1024, 256>}, {transform_indices = @transform_2, window_bounds = array<i64: 1, 16, 256>}, {transform_indices = @transform_3, window_bounds = array<i64: 1, 1, 16, 256>}]} {
    %c0 = arith.constant 0 : index
    %c0_0 = arith.constant 0 : index
    %c0_1 = arith.constant 0 : index
    %c0_2 = arith.constant 0 : index
    %0 = vector.load %arg2[%c0, %c0_0, %c0_1, %c0_2] : memref<1x1x16x1024xbf16, #tpu.memory_space<vmem>>, vector<1x1x16x1024xbf16>
    %1 = vector.shape_cast %0 : vector<1x1x16x1024xbf16> to vector<16x1024xbf16>
    %c0_3 = arith.constant 0 : index
    %c0_4 = arith.constant 0 : index
    %c0_5 = arith.constant 0 : index
    %2 = vector.load %arg3[%c0_3, %c0_4, %c0_5] : memref<1x1024x256xbf16, #tpu.memory_space<vmem>>, vector<1x1024x256xbf16>
    %3 = vector.shape_cast %2 : vector<1x1024x256xbf16> to vector<1024x256xbf16>
    %cst = arith.constant dense<0.000000e+00> : vector<16x256xf32>
    %4 = tpu.matmul %1, %3, %cst {dimension_numbers = #tpu.dot_dimension_numbers<[1], [0], [0], [1], [0, 0, 1, 1], [], []>} : vector<16x1024xbf16>, vector<1024x256xbf16>, vector<16x256xf32> -> vector<16x256xf32>
    %c0_6 = arith.constant 0 : index
    %c0_7 = arith.constant 0 : index
    %c0_8 = arith.constant 0 : index
    %5 = vector.load %arg4[%c0_6, %c0_7, %c0_8] : memref<1x16x256xf32, #tpu.memory_space<vmem>>, vector<1x16x256xf32>
    %6 = vector.shape_cast %5 : vector<1x16x256xf32> to vector<16x256xf32>
    %7 = arith.addf %4, %6 : vector<16x256xf32>
    %cst_9 = arith.constant 0.000000e+00 : f32
    %8 = vector.broadcast %cst_9 : f32 to vector<16x256xf32>
    %9 = arith.cmpf oge, %7, %8 : vector<16x256xf32>
    %cst_10 = arith.constant 2.000000e-01 : f32
    %10 = vector.broadcast %cst_10 : f32 to vector<16x256xf32>
    %11 = arith.mulf %10, %7 : vector<16x256xf32>
    %12 = arith.select %9, %7, %11 : vector<16x256xi1>, vector<16x256xf32>
    %c0_11 = arith.constant 0 : index
    %c0_12 = arith.constant 0 : index
    %c0_13 = arith.constant 0 : index
    %c0_14 = arith.constant 0 : index
    %13 = vector.load %arg5[%c0_11, %c0_12, %c0_13, %c0_14] : memref<1x1x16x256xf32, #tpu.memory_space<vmem>>, vector<1x1x16x256xf32>
    %14 = vector.shape_cast %13 : vector<1x1x16x256xf32> to vector<16x256xf32>
    %15 = vector.shape_cast %12 : vector<16x256xf32> to vector<1x1x16x256xf32>
    tpu.vector_store %arg5[%c0_11, %c0_12, %c0_13, %c0_14], %15 {strides = array<i32>} : memref<1x1x16x256xf32, #tpu.memory_space<vmem>>, vector<1x1x16x256xf32>,
    return
  }
  func.func @transform_0(%arg0: i32, %arg1: i32) -> (i32, i32, i32, i32) {
    %c0_i32 = arith.constant 0 : i32
    %c0_i32_0 = arith.constant 0 : i32
    %c0_i32_1 = arith.constant 0 : i32
    return %arg0, %arg1, %c0_i32, %c0_i32_0 : i32, i32, i32, i32
  }
  func.func @transform_1(%arg0: i32, %arg1: i32) -> (i32, i32, i32) {
    %c0_i32 = arith.constant 0 : i32
    %c0_i32_0 = arith.constant 0 : i32
    %c0_i32_1 = arith.constant 0 : i32
    return %arg1, %c0_i32, %c0_i32_0 : i32, i32, i32
  }
  func.func @transform_2(%arg0: i32, %arg1: i32) -> (i32, i32, i32) {
    %c0_i32 = arith.constant 0 : i32
    %c0_i32_0 = arith.constant 0 : i32
    %c0_i32_1 = arith.constant 0 : i32
    return %arg1, %c0_i32, %c0_i32_0 : i32, i32, i32
  }
  func.func @transform_3(%arg0: i32, %arg1: i32) -> (i32, i32, i32, i32) {
    %c0_i32 = arith.constant 0 : i32
    %c0_i32_0 = arith.constant 0 : i32
    %c0_i32_1 = arith.constant 0 : i32
    return %arg0, %arg1, %c0_i32, %c0_i32_0 : i32, i32, i32, i32
  }
}

module attributes {stable_mosaic.version = 11 : i64} {
  func.func @_gemm_bias_act_kernel(%arg0: i32, %arg1: i32, %arg2: memref<1x1x64x1024xbf16, #tpu.memory_space<vmem>>, %arg3: memref<1x1024x64xbf16, #tpu.memory_space<vmem>>, %arg4: memref<1x64x64xf32, #tpu.memory_space<vmem>>, %arg5: memref<1x1x64x64xf32, #tpu.memory_space<vmem>>) attributes {dimension_semantics = [#tpu.dimension_semantics<parallel>, #tpu.dimension_semantics<parallel>], iteration_bounds = array<i64: 2, 4>, scalar_prefetch = 0 : i64, scratch_operands = 0 : i64, tpu.core_type = #tpu.core_type<tc>, window_params = [{transform_indices = @transform_0, window_bounds = array<i64: 1, 1, 64, 1024>}, {transform_indices = @transform_1, window_bounds = array<i64: 1, 1024, 64>}, {transform_indices = @transform_2, window_bounds = array<i64: 1, 64, 64>}, {transform_indices = @transform_3, window_bounds = array<i64: 1, 1, 64, 64>}]} {
    %c0 = arith.constant 0 : index
    %c0_0 = arith.constant 0 : index
    %c0_1 = arith.constant 0 : index
    %c0_2 = arith.constant 0 : index
    %0 = vector.load %arg2[%c0, %c0_0, %c0_1, %c0_2] : memref<1x1x64x1024xbf16, #tpu.memory_space<vmem>>, vector<1x1x64x1024xbf16>
    %1 = vector.shape_cast %0 : vector<1x1x64x1024xbf16> to vector<64x1024xbf16>
    %c0_3 = arith.constant 0 : index
    %c0_4 = arith.constant 0 : index
    %c0_5 = arith.constant 0 : index
    %2 = vector.load %arg3[%c0_3, %c0_4, %c0_5] : memref<1x1024x64xbf16, #tpu.memory_space<vmem>>, vector<1x1024x64xbf16>
    %3 = vector.shape_cast %2 : vector<1x1024x64xbf16> to vector<1024x64xbf16>
    %cst = arith.constant dense<0.000000e+00> : vector<64x64xf32>
    %4 = tpu.matmul %1, %3, %cst {dimension_numbers = #tpu.dot_dimension_numbers<[1], [0], [0], [1], [0, 0, 1, 1], [], []>} : vector<64x1024xbf16>, vector<1024x64xbf16>, vector<64x64xf32> -> vector<64x64xf32>
    %c0_6 = arith.constant 0 : index
    %c0_7 = arith.constant 0 : index
    %c0_8 = arith.constant 0 : index
    %5 = vector.load %arg4[%c0_6, %c0_7, %c0_8] : memref<1x64x64xf32, #tpu.memory_space<vmem>>, vector<1x64x64xf32>
    %6 = vector.shape_cast %5 : vector<1x64x64xf32> to vector<64x64xf32>
    %7 = arith.addf %4, %6 : vector<64x64xf32>
    %cst_9 = arith.constant 0.000000e+00 : f32
    %8 = vector.broadcast %cst_9 : f32 to vector<64x64xf32>
    %9 = arith.cmpf oge, %7, %8 : vector<64x64xf32>
    %cst_10 = arith.constant 2.000000e-01 : f32
    %10 = vector.broadcast %cst_10 : f32 to vector<64x64xf32>
    %11 = arith.mulf %10, %7 : vector<64x64xf32>
    %12 = arith.select %9, %7, %11 : vector<64x64xi1>, vector<64x64xf32>
    %c0_11 = arith.constant 0 : index
    %c0_12 = arith.constant 0 : index
    %c0_13 = arith.constant 0 : index
    %c0_14 = arith.constant 0 : index
    %13 = vector.load %arg5[%c0_11, %c0_12, %c0_13, %c0_14] : memref<1x1x64x64xf32, #tpu.memory_space<vmem>>, vector<1x1x64x64xf32>
    %14 = vector.shape_cast %13 : vector<1x1x64x64xf32> to vector<64x64xf32>
    %15 = vector.shape_cast %12 : vector<64x64xf32> to vector<1x1x64x64xf32>
    tpu.vector_store %arg5[%c0_11, %c0_12, %c0_13, %c0_14], %15 {strides = array<i32>} : memref<1x1x64x64xf32, #tpu.memory_space<vmem>>, vector<1x1x64x64xf32>,
    return
  }
  func.func @transform_0(%arg0: i32, %arg1: i32) -> (i32, i32, i32, i32) {
    %c0_i32 = arith.constant 0 : i32
    %c0_i32_0 = arith.constant 0 : i32
    %c0_i32_1 = arith.constant 0 : i32
    return %arg0, %arg1, %c0_i32, %c0_i32_0 : i32, i32, i32, i32
  }
  func.func @transform_1(%arg0: i32, %arg1: i32) -> (i32, i32, i32) {
    %c0_i32 = arith.constant 0 : i32
    %c0_i32_0 = arith.constant 0 : i32
    %c0_i32_1 = arith.constant 0 : i32
    return %arg1, %c0_i32, %c0_i32_0 : i32, i32, i32
  }
  func.func @transform_2(%arg0: i32, %arg1: i32) -> (i32, i32, i32) {
    %c0_i32 = arith.constant 0 : i32
    %c0_i32_0 = arith.constant 0 : i32
    %c0_i32_1 = arith.constant 0 : i32
    return %arg1, %c0_i32, %c0_i32_0 : i32, i32, i32
  }
  func.func @transform_3(%arg0: i32, %arg1: i32) -> (i32, i32, i32, i32) {
    %c0_i32 = arith.constant 0 : i32
    %c0_i32_0 = arith.constant 0 : i32
    %c0_i32_1 = arith.constant 0 : i32
    return %arg0, %arg1, %c0_i32, %c0_i32_0 : i32, i32, i32, i32
  }
}

module attributes {stable_mosaic.version = 11 : i64} {
  func.func @_gemm_bias_act_kernel(%arg0: i32, %arg1: i32, %arg2: memref<32x576xbf16, #tpu.memory_space<vmem>>, %arg3: memref<576x128xbf16, #tpu.memory_space<vmem>>, %arg4: memref<32x1xf32, #tpu.memory_space<vmem>>, %arg5: memref<32x128xf32, #tpu.memory_space<vmem>>) attributes {dimension_semantics = [#tpu.dimension_semantics<parallel>, #tpu.dimension_semantics<parallel>], iteration_bounds = array<i64: 2, 1>, scalar_prefetch = 0 : i64, scratch_operands = 0 : i64, tpu.core_type = #tpu.core_type<tc>, window_params = [{transform_indices = @transform_0, window_bounds = array<i64: 32, 576>}, {transform_indices = @transform_1, window_bounds = array<i64: 576, 128>}, {transform_indices = @transform_2, window_bounds = array<i64: 32, 1>}, {transform_indices = @transform_3, window_bounds = array<i64: 32, 128>}]} {
    %c0 = arith.constant 0 : index
    %c0_0 = arith.constant 0 : index
    %0 = vector.load %arg2[%c0, %c0_0] : memref<32x576xbf16, #tpu.memory_space<vmem>>, vector<32x576xbf16>
    %c0_1 = arith.constant 0 : index
    %c0_2 = arith.constant 0 : index
    %1 = vector.load %arg3[%c0_1, %c0_2] : memref<576x128xbf16, #tpu.memory_space<vmem>>, vector<576x128xbf16>
    %cst = arith.constant dense<0.000000e+00> : vector<32x128xf32>
    %2 = tpu.matmul %0, %1, %cst {dimension_numbers = #tpu.dot_dimension_numbers<[1], [0], [0], [1], [0, 0, 1, 1], [], []>} : vector<32x576xbf16>, vector<576x128xbf16>, vector<32x128xf32> -> vector<32x128xf32>
    %c0_3 = arith.constant 0 : index
    %c0_4 = arith.constant 0 : index
    %3 = vector.load %arg4[%c0_3, %c0_4] : memref<32x1xf32, #tpu.memory_space<vmem>>, vector<32x1xf32>
    %4 = vector.broadcast %3 : vector<32x1xf32> to vector<32x128xf32>
    %5 = arith.addf %2, %4 : vector<32x128xf32>
    %cst_5 = arith.constant 0.000000e+00 : f32
    %6 = vector.broadcast %cst_5 : f32 to vector<32x128xf32>
    %7 = arith.maximumf %5, %6 : vector<32x128xf32>
    %c0_6 = arith.constant 0 : index
    %c0_7 = arith.constant 0 : index
    %8 = vector.load %arg5[%c0_6, %c0_7] : memref<32x128xf32, #tpu.memory_space<vmem>>, vector<32x128xf32>
    tpu.vector_store %arg5[%c0_6, %c0_7], %7 {strides = array<i32>} : memref<32x128xf32, #tpu.memory_space<vmem>>, vector<32x128xf32>,
    return
  }
  func.func @transform_0(%arg0: i32, %arg1: i32) -> (i32, i32) {
    %c0_i32 = arith.constant 0 : i32
    %c0_i32_0 = arith.constant 0 : i32
    return %arg0, %c0_i32 : i32, i32
  }
  func.func @transform_1(%arg0: i32, %arg1: i32) -> (i32, i32) {
    %c0_i32 = arith.constant 0 : i32
    %c0_i32_0 = arith.constant 0 : i32
    return %c0_i32, %arg1 : i32, i32
  }
  func.func @transform_2(%arg0: i32, %arg1: i32) -> (i32, i32) {
    %c0_i32 = arith.constant 0 : i32
    %c0_i32_0 = arith.constant 0 : i32
    return %arg0, %c0_i32 : i32, i32
  }
  func.func @transform_3(%arg0: i32, %arg1: i32) -> (i32, i32) {
    %c0_i32 = arith.constant 0 : i32
    return %arg0, %arg1 : i32, i32
  }
}

module attributes {stable_mosaic.version = 11 : i64} {
  func.func @_gemm_bias_act_kernel(%arg0: i32, %arg1: i32, %arg2: memref<24x576xbf16, #tpu.memory_space<vmem>>, %arg3: memref<576x128xbf16, #tpu.memory_space<vmem>>, %arg4: memref<24x1xf32, #tpu.memory_space<vmem>>, %arg5: memref<24x128xf32, #tpu.memory_space<vmem>>) attributes {dimension_semantics = [#tpu.dimension_semantics<parallel>, #tpu.dimension_semantics<parallel>], iteration_bounds = array<i64: 2, 1>, scalar_prefetch = 0 : i64, scratch_operands = 0 : i64, tpu.core_type = #tpu.core_type<tc>, window_params = [{transform_indices = @transform_0, window_bounds = array<i64: 24, 576>}, {transform_indices = @transform_1, window_bounds = array<i64: 576, 128>}, {transform_indices = @transform_2, window_bounds = array<i64: 24, 1>}, {transform_indices = @transform_3, window_bounds = array<i64: 24, 128>}]} {
    %c0 = arith.constant 0 : index
    %c0_0 = arith.constant 0 : index
    %0 = vector.load %arg2[%c0, %c0_0] : memref<24x576xbf16, #tpu.memory_space<vmem>>, vector<24x576xbf16>
    %c0_1 = arith.constant 0 : index
    %c0_2 = arith.constant 0 : index
    %1 = vector.load %arg3[%c0_1, %c0_2] : memref<576x128xbf16, #tpu.memory_space<vmem>>, vector<576x128xbf16>
    %cst = arith.constant dense<0.000000e+00> : vector<24x128xf32>
    %2 = tpu.matmul %0, %1, %cst {dimension_numbers = #tpu.dot_dimension_numbers<[1], [0], [0], [1], [0, 0, 1, 1], [], []>} : vector<24x576xbf16>, vector<576x128xbf16>, vector<24x128xf32> -> vector<24x128xf32>
    %c0_3 = arith.constant 0 : index
    %c0_4 = arith.constant 0 : index
    %3 = vector.load %arg4[%c0_3, %c0_4] : memref<24x1xf32, #tpu.memory_space<vmem>>, vector<24x1xf32>
    %4 = vector.broadcast %3 : vector<24x1xf32> to vector<24x128xf32>
    %5 = arith.addf %2, %4 : vector<24x128xf32>
    %c0_5 = arith.constant 0 : index
    %c0_6 = arith.constant 0 : index
    %6 = vector.load %arg5[%c0_5, %c0_6] : memref<24x128xf32, #tpu.memory_space<vmem>>, vector<24x128xf32>
    tpu.vector_store %arg5[%c0_5, %c0_6], %5 {strides = array<i32>} : memref<24x128xf32, #tpu.memory_space<vmem>>, vector<24x128xf32>,
    return
  }
  func.func @transform_0(%arg0: i32, %arg1: i32) -> (i32, i32) {
    %c0_i32 = arith.constant 0 : i32
    %c0_i32_0 = arith.constant 0 : i32
    return %arg0, %c0_i32 : i32, i32
  }
  func.func @transform_1(%arg0: i32, %arg1: i32) -> (i32, i32) {
    %c0_i32 = arith.constant 0 : i32
    %c0_i32_0 = arith.constant 0 : i32
    return %c0_i32, %arg1 : i32, i32
  }
  func.func @transform_2(%arg0: i32, %arg1: i32) -> (i32, i32) {
    %c0_i32 = arith.constant 0 : i32
    %c0_i32_0 = arith.constant 0 : i32
    return %arg0, %c0_i32 : i32, i32
  }
  func.func @transform_3(%arg0: i32, %arg1: i32) -> (i32, i32) {
    %c0_i32 = arith.constant 0 : i32
    return %arg0, %arg1 : i32, i32
  }
}

module attributes {stable_mosaic.version = 11 : i64} {
  func.func @_gemm_bias_act_kernel(%arg0: i32, %arg1: i32, %arg2: memref<24x576xbf16, #tpu.memory_space<vmem>>, %arg3: memref<576x256xbf16, #tpu.memory_space<vmem>>, %arg4: memref<24x1xf32, #tpu.memory_space<vmem>>, %arg5: memref<24x256xf32, #tpu.memory_space<vmem>>) attributes {dimension_semantics = [#tpu.dimension_semantics<parallel>, #tpu.dimension_semantics<parallel>], iteration_bounds = array<i64: 1, 2>, scalar_prefetch = 0 : i64, scratch_operands = 0 : i64, tpu.core_type = #tpu.core_type<tc>, window_params = [{transform_indices = @transform_0, window_bounds = array<i64: 24, 576>}, {transform_indices = @transform_1, window_bounds = array<i64: 576, 256>}, {transform_indices = @transform_2, window_bounds = array<i64: 24, 1>}, {transform_indices = @transform_3, window_bounds = array<i64: 24, 256>}]} {
    %c0 = arith.constant 0 : index
    %c0_0 = arith.constant 0 : index
    %0 = vector.load %arg2[%c0, %c0_0] : memref<24x576xbf16, #tpu.memory_space<vmem>>, vector<24x576xbf16>
    %c0_1 = arith.constant 0 : index
    %c0_2 = arith.constant 0 : index
    %1 = vector.load %arg3[%c0_1, %c0_2] : memref<576x256xbf16, #tpu.memory_space<vmem>>, vector<576x256xbf16>
    %cst = arith.constant dense<0.000000e+00> : vector<24x256xf32>
    %2 = tpu.matmul %0, %1, %cst {dimension_numbers = #tpu.dot_dimension_numbers<[1], [0], [0], [1], [0, 0, 1, 1], [], []>} : vector<24x576xbf16>, vector<576x256xbf16>, vector<24x256xf32> -> vector<24x256xf32>
    %c0_3 = arith.constant 0 : index
    %c0_4 = arith.constant 0 : index
    %3 = vector.load %arg4[%c0_3, %c0_4] : memref<24x1xf32, #tpu.memory_space<vmem>>, vector<24x1xf32>
    %4 = vector.broadcast %3 : vector<24x1xf32> to vector<24x256xf32>
    %5 = arith.addf %2, %4 : vector<24x256xf32>
    %c0_5 = arith.constant 0 : index
    %c0_6 = arith.constant 0 : index
    %6 = vector.load %arg5[%c0_5, %c0_6] : memref<24x256xf32, #tpu.memory_space<vmem>>, vector<24x256xf32>
    tpu.vector_store %arg5[%c0_5, %c0_6], %5 {strides = array<i32>} : memref<24x256xf32, #tpu.memory_space<vmem>>, vector<24x256xf32>,
    return
  }
  func.func @transform_0(%arg0: i32, %arg1: i32) -> (i32, i32) {
    %c0_i32 = arith.constant 0 : i32
    %c0_i32_0 = arith.constant 0 : i32
    return %arg0, %c0_i32 : i32, i32
  }
  func.func @transform_1(%arg0: i32, %arg1: i32) -> (i32, i32) {
    %c0_i32 = arith.constant 0 : i32
    %c0_i32_0 = arith.constant 0 : i32
    return %c0_i32, %arg1 : i32, i32
  }
  func.func @transform_2(%arg0: i32, %arg1: i32) -> (i32, i32) {
    %c0_i32 = arith.constant 0 : i32
    %c0_i32_0 = arith.constant 0 : i32
    return %arg0, %c0_i32 : i32, i32
  }
  func.func @transform_3(%arg0: i32, %arg1: i32) -> (i32, i32) {
    %c0_i32 = arith.constant 0 : i32
    return %arg0, %arg1 : i32, i32
  }
}

</mosaic_0001>

<llo_original>
// kernel: plane_decoder_forward.6
$region0: #{plane_decoder_forward.6}
  #allocation0 [shape = 'u32[]', space=smem, size = 0x4, offset = 0x4, fixed_abs, tag = 'smem constant byte address 0x4 - core index']
  #allocation1 [shape = 'u32[144,128]{1,0:T(1,128)}', space=vmem, size = 0x12000, scoped, tag = 'internal scratch']
  %s0 = inlined_call_operand.vmem [shape: bf16[8,32], index: 0, kind: input, shape index: {}]
  %s1 = inlined_call_operand.hbm [shape: bf16[32,4096], index: 1, kind: input, shape index: {}]
  %s2 = inlined_call_operand.hbm [shape: f32[1,4096], index: 2, kind: input, shape index: {}]
  %s3 = inlined_call_operand.vmem [shape: f32[8,4096], index: 3, kind: output, shape index: {}]
  %s4 = sld [smem:[#allocation0]]
  $region53: #{plane_decoder_forward.6} parent=0
    _
  %s6 = ssub.s32 1, %s4
  %s7 = scalar_select 0, %s6, %s4
  $region1: #{plane_decoder_forward.6} parent=0
    #allocation2 [shape = 'u8[262144]{0}', space=vmem, size = 0x40000, scoped, tag = 'input window, operand 1']
    #allocation3 [shape = 's32[2]{0}', space=sflag, size = 0x8, scoped, tag = 'scoped memory for plane_decoder_forward.6']
    #allocation4 [shape = 'u8[16384]{0}', space=vmem, size = 0x4000, scoped, tag = 'input window, operand 2']
    #allocation5 [shape = 's32[2]{0}', space=sflag, size = 0x8, scoped, tag = 'scoped memory for plane_decoder_forward.6']
    %8 = vsyncpa [#allocation3], 0
    %s9 = scalar_lea.sflag [#allocation3], 1
    %10 = vsyncpa %s9, 0
    %11 = vsyncpa [#allocation5], 0
    %s12 = scalar_lea.sflag [#allocation5], 1
    %13 = vsyncpa %s12, 0
    loop: start=0, step=1, limit=4
    $region2: #{plane_decoder_forward.6} parent=1 // loop_pre_header
      _
    $region3: #{plane_decoder_forward.6} parent=1 // loop_header
      %s15 = sphi 0, %s19
      %p16 = scmp.ge.s32.totalorder %s15, 4
      %s23 = sphi 0, %s23
      %s25 = sphi 0, %s23
      %s26 = sphi 0, %s25
      %s40 = sphi 0, %s26
      %s46 = sphi 0, %s48
      %s49 = sphi 0, %s46
      %s50 = sphi 0, %s49
      %s66 = sphi 0, %s50
      %s72 = sphi 0, %s74
      %s75 = sphi 0, %s72
      %s76 = sphi 0, %s75
      %s92 = sphi 0, %s76
      %s98 = sphi 0, %s100
      %s101 = sphi 0, %s98
      %s102 = sphi 0, %s101
      %s118 = sphi 0, %s102
    $region4: #{plane_decoder_forward.6} parent=1 // loop_header_branch
      %18 = sbr.rel (%p16) target = $region8
    $region5: #{plane_decoder_forward.6} parent=1 // loop_body
      %s20 = ssub.s32 %s15, 1
      %s21 = ssub.s32 %s15, 2
      %s22 = sadd.s32 %s15, 1
      %s24 = sadd.s32 %s23, 1
      %p27 = scmp.eq.s32.totalorder %s15, 1
      %p28 = scmp.ne.s32.totalorder %s23, %s25
      %p29 = scmp.eq.s32.totalorder %s15, 0
      %p30 = por %p28, %p29
      %p31 = scmp.ne.s32.totalorder %s23, %s25
      %p32 = scmp.eq.s32.totalorder %s20, 1
      %p33 = por %p31, %p32
      %p34 = scmp.ne.s32.totalorder %s25, %s26
      %p35 = scmp.eq.s32.totalorder %s20, 0
      %p36 = por %p34, %p35
      %p37 = scmp.ne.s32.totalorder %s25, %s26
      %p38 = scmp.eq.s32.totalorder %s21, 1
      %p39 = por %p37, %p38
      %p41 = scmp.ne.s32.totalorder %s26, %s40
      %p42 = scmp.eq.s32.totalorder %s21, 0
      %p43 = por %p41, %p42
      %s44 = ssub.s32 %s15, %s22
      %p45 = scmp.eq.s32.totalorder %s44, 0
      %s47 = sadd.s32 %s46, 1
      %s48 = scalar_select %p45, %s46, %s47
      %p51 = pneg %p45
      %p52 = scmp.eq.s32.totalorder %s15, 1
      %p53 = por %p51, %p52
      %p54 = scmp.ne.s32.totalorder %s46, %s49
      %p55 = scmp.eq.s32.totalorder %s15, 0
      %p56 = por %p54, %p55
      %p57 = scmp.ne.s32.totalorder %s46, %s49
      %p58 = scmp.eq.s32.totalorder %s20, 1
      %p59 = por %p57, %p58
      %p60 = scmp.ne.s32.totalorder %s49, %s50
      %p61 = scmp.eq.s32.totalorder %s20, 0
      %p62 = por %p60, %p61
      %p63 = scmp.ne.s32.totalorder %s49, %s50
      %p64 = scmp.eq.s32.totalorder %s21, 1
      %p65 = por %p63, %p64
      %p67 = scmp.ne.s32.totalorder %s50, %s66
      %p68 = scmp.eq.s32.totalorder %s21, 0
      %p69 = por %p67, %p68
      %s70 = ssub.s32 %s15, %s22
      %p71 = scmp.eq.s32.totalorder %s70, 0
      %s73 = sadd.s32 %s72, 1
      %s74 = scalar_select %p71, %s72, %s73
      %p77 = pneg %p71
      %p78 = scmp.eq.s32.totalorder %s15, 1
      %p79 = por %p77, %p78
      %p80 = scmp.ne.s32.totalorder %s72, %s75
      %p81 = scmp.eq.s32.totalorder %s15, 0
      %p82 = por %p80, %p81
      %p83 = scmp.ne.s32.totalorder %s72, %s75
      %p84 = scmp.eq.s32.totalorder %s20, 1
      %p85 = por %p83, %p84
      %p86 = scmp.ne.s32.totalorder %s75, %s76
      %p87 = scmp.eq.s32.totalorder %s20, 0
      %p88 = por %p86, %p87
      %p89 = scmp.ne.s32.totalorder %s75, %s76
      %p90 = scmp.eq.s32.totalorder %s21, 1
      %p91 = por %p89, %p90
      %p93 = scmp.ne.s32.totalorder %s76, %s92
      %p94 = scmp.eq.s32.totalorder %s21, 0
      %p95 = por %p93, %p94
      %s96 = ssub.s32 %s15, %s22
      %p97 = scmp.eq.s32.totalorder %s96, 0
      %s99 = sadd.s32 %s98, 1
      %s100 = scalar_select %p97, %s98, %s99
      %p103 = pneg %p97
      %p104 = scmp.eq.s32.totalorder %s15, 1
      %p105 = por %p103, %p104
      %p106 = scmp.ne.s32.totalorder %s98, %s101
      %p107 = scmp.eq.s32.totalorder %s15, 0
      %p108 = por %p106, %p107
      %p109 = scmp.ne.s32.totalorder %s98, %s101
      %p110 = scmp.eq.s32.totalorder %s20, 1
      %p111 = por %p109, %p110
      %p112 = scmp.ne.s32.totalorder %s101, %s102
      %p113 = scmp.eq.s32.totalorder %s20, 0
      %p114 = por %p112, %p113
      %p115 = scmp.ne.s32.totalorder %s101, %s102
      %p116 = scmp.eq.s32.totalorder %s21, 1
      %p117 = por %p115, %p116
      %p119 = scmp.ne.s32.totalorder %s102, %s118
      %p120 = scmp.eq.s32.totalorder %s21, 0
      %p121 = por %p119, %p120
      %p122 = scmp.le.s32.totalorder 1, %s15
      %p123 = scmp.lt.s32.totalorder %s15, 3
      %p124 = pnand %p122, %p123
      %p125 = pneg %p124
      // Predicated region
      $region9: #{plane_decoder_forward.6} parent=5 // pred_check
        _
      $region10: #{plane_decoder_forward.6} parent=5 // pred_check_branch
        %127 = sbr.rel (%p124) target = $region12
      $region11: #{plane_decoder_forward.6} parent=5 // pred_region
        %s128 = ssub.s32 %s15, 1
        // Predicated region
        $region13: #{plane_decoder_forward.6} parent=11 // pred_check
          %p129 = pneg %p36
        $region14: #{plane_decoder_forward.6} parent=11 // pred_check_branch
          %131 = sbr.rel (%p129) target = $region16
        $region15: #{plane_decoder_forward.6} parent=11 // pred_region
          _
        $region16: #{plane_decoder_forward.6} parent=11 // pred_fallthru
          _
      $region12: #{plane_decoder_forward.6} parent=5 // pred_fallthru
        _
      %p132 = scmp.lt.s32.totalorder %s15, 2
      // Predicated region
      $region17: #{plane_decoder_forward.6} parent=5 // pred_check
        %p133 = pneg %p132
      $region18: #{plane_decoder_forward.6} parent=5 // pred_check_branch
        %135 = sbr.rel (%p133) target = $region20
      $region19: #{plane_decoder_forward.6} parent=5 // pred_region
        // Predicated region
        $region21: #{plane_decoder_forward.6} parent=19 // pred_check
          %p136 = pneg %p56
        $region22: #{plane_decoder_forward.6} parent=19 // pred_check_branch
          %138 = sbr.rel (%p136) target = $region24
        $region23: #{plane_decoder_forward.6} parent=19 // pred_region
          %s139 = sand.u32 %s46, 1
          %s140 = scalar_lea.sflag [#allocation3], %s139
          %s141 = sand.u32 %s46, 1
          %s142 = smul.addr %s141, 256
          %s143 = scalar_lea.vmem [#allocation2], %s142
          %s144 = smul.u32 16, %s15
          %s146 = ssub.s32 4096, 4096
          %147 = vsyncadd %s140, %s146
          %s148 = smul.addr %s144, 64
          %s149 = scalar_lea.hbm %s1, %s148
          %s150 = sshll.u32 %s143, 4
          %s151 = int_to_ptr.vmem [resolvable:$true] %s150
          %156 = dma.hbm_to_vmem [thread:$0]  %s149, 4096, %s151, %s140, 2048, 1024, 64
        $region24: #{plane_decoder_forward.6} parent=19 // pred_fallthru
          _
        // Predicated region
        $region25: #{plane_decoder_forward.6} parent=19 // pred_check
          %p157 = pneg %p82
        $region26: #{plane_decoder_forward.6} parent=19 // pred_check_branch
          %159 = sbr.rel (%p157) target = $region28
        $region27: #{plane_decoder_forward.6} parent=19 // pred_region
          %s160 = sand.u32 %s72, 1
          %s161 = scalar_lea.sflag [#allocation5], %s160
          %s162 = sand.u32 %s72, 1
          %s163 = smul.addr %s162, 16
          %s164 = scalar_lea.vmem [#allocation4], %s163
          %s165 = smul.u32 16, %s15
          %s167 = ssub.s32 256, 256
          %168 = vsyncadd %s161, %s167
          %s169 = smul.addr %s165, 16
          %s170 = scalar_lea.hbm %s2, %s169
          %s172 = sshll.u32 %s164, 4
          %s173 = int_to_ptr.vmem [resolvable:$true] %s172
          %175 = dma.hbm_to_vmem [thread:$0]  %s170, 256, %s173, %s161
        $region28: #{plane_decoder_forward.6} parent=19 // pred_fallthru
          _
      $region20: #{plane_decoder_forward.6} parent=5 // pred_fallthru
        _
      %p176 = scmp.le.s32.totalorder 1, %s15
      %p177 = scmp.lt.s32.totalorder %s15, 3
      %p178 = pnand %p176, %p177
      %p179 = pneg %p178
      // Predicated region
      $region29: #{plane_decoder_forward.6} parent=5 // pred_check
        _
      $region30: #{plane_decoder_forward.6} parent=5 // pred_check_branch
        %181 = sbr.rel (%p178) target = $region32
      $region31: #{plane_decoder_forward.6} parent=5 // pred_region
        %s182 = ssub.s32 %s15, 1
        %s183 = sand.u32 %s49, 1
        %s184 = scalar_lea.sflag [#allocation3], %s183
        %s185 = sand.u32 %s49, 1
        %s186 = smul.addr %s185, 256
        %s187 = scalar_lea.vmem [#allocation2], %s186
        // Predicated region
        $region33: #{plane_decoder_forward.6} parent=31 // pred_check
          %p188 = pneg %p62
        $region34: #{plane_decoder_forward.6} parent=31 // pred_check_branch
          %190 = sbr.rel (%p188) target = $region36
        $region35: #{plane_decoder_forward.6} parent=31 // pred_region
          %191 = dma.done %s184, 4096
        $region36: #{plane_decoder_forward.6} parent=31 // pred_fallthru
          _
        %s192 = sand.u32 %s75, 1
        %s193 = scalar_lea.sflag [#allocation5], %s192
        %s194 = sand.u32 %s75, 1
        %s195 = smul.addr %s194, 16
        %s196 = scalar_lea.vmem [#allocation4], %s195
        // Predicated region
        $region37: #{plane_decoder_forward.6} parent=31 // pred_check
          %p197 = pneg %p88
        $region38: #{plane_decoder_forward.6} parent=31 // pred_check_branch
          %199 = sbr.rel (%p197) target = $region40
        $region39: #{plane_decoder_forward.6} parent=31 // pred_region
          %200 = dma.done %s193, 256
        $region40: #{plane_decoder_forward.6} parent=31 // pred_fallthru
          _
        %p201 = pneg %p36
        %p202 = pneg %p33
        %s203 = sand.u32 %s49, 1
        %s204 = scalar_lea.sflag [#allocation3], %s203
        %s205 = sand.u32 %s49, 1
        %s206 = smul.addr %s205, 256
        %s207 = scalar_lea.vmem [#allocation2], %s206
        %p208 = pneg %p62
        %p209 = pneg %p59
        %s210 = sand.u32 %s75, 1
        %s211 = scalar_lea.sflag [#allocation5], %s210
        %s212 = sand.u32 %s75, 1
        %s213 = smul.addr %s212, 16
        %s214 = scalar_lea.vmem [#allocation4], %s213
        %p215 = pneg %p88
        %p216 = pneg %p85
        %p217 = pneg %p114
        %p218 = pneg %p111
        %s219 = smul.u32 16, %s20
        %p220 = scmp.lt.s32.totalorder %s219, 31
        %s221 = scalar_select %p220, %s219, 31
        %s222 = smul.addr %s221, 8
        %s223 = scalar_lea.vmem %s3, %s222
        %s224 = smul.u32 16, %s20
        %s225 = smul.u32 16, %s20
        %s226 = smul.u32 16, %s20
        %p227 = scmp.lt.s32.totalorder %s226, 31
        %s228 = scalar_select %p227, %s226, 31
        %s229 = smul.addr %s228, 8
        %s230 = scalar_lea.vmem %s3, %s229
        %s231 = smul.u32 16, %s20
        %v233 = vld [vmem:[%s0] sm:$0xf]
        %v234 = vld [vmem:[%s187] sm:$0xff]
        %v235 = vld [vmem:[%s187 + $0x8] sm:$0xff]
        %v236 = vld [vmem:[%s187 + $0x10] sm:$0xff]
        %v237 = vld [vmem:[%s187 + $0x18] sm:$0xff]
        %v238 = vld [vmem:[%s187 + $0x20] sm:$0xff]
        %v239 = vld [vmem:[%s187 + $0x28] sm:$0xff]
        %v240 = vld [vmem:[%s187 + $0x30] sm:$0xff]
        %v241 = vld [vmem:[%s187 + $0x38] sm:$0xff]
        %v242 = vld [vmem:[%s187 + $0x40] sm:$0xff]
        %v243 = vld [vmem:[%s187 + $0x48] sm:$0xff]
        %v244 = vld [vmem:[%s187 + $0x50] sm:$0xff]
        %v245 = vld [vmem:[%s187 + $0x58] sm:$0xff]
        %v246 = vld [vmem:[%s187 + $0x60] sm:$0xff]
        %v247 = vld [vmem:[%s187 + $0x68] sm:$0xff]
        %v248 = vld [vmem:[%s187 + $0x70] sm:$0xff]
        %v249 = vld [vmem:[%s187 + $0x78] sm:$0xff]
        %v250 = vld [vmem:[%s187 + $0x80] sm:$0xff]
        %v251 = vld [vmem:[%s187 + $0x88] sm:$0xff]
        %v252 = vld [vmem:[%s187 + $0x90] sm:$0xff]
        %v253 = vld [vmem:[%s187 + $0x98] sm:$0xff]
        %v254 = vld [vmem:[%s187 + $0xa0] sm:$0xff]
        %v255 = vld [vmem:[%s187 + $0xa8] sm:$0xff]
        %v256 = vld [vmem:[%s187 + $0xb0] sm:$0xff]
        %v257 = vld [vmem:[%s187 + $0xb8] sm:$0xff]
        %v258 = vld [vmem:[%s187 + $0xc0] sm:$0xff]
        %v259 = vld [vmem:[%s187 + $0xc8] sm:$0xff]
        %v260 = vld [vmem:[%s187 + $0xd0] sm:$0xff]
        %v261 = vld [vmem:[%s187 + $0xd8] sm:$0xff]
        %v262 = vld [vmem:[%s187 + $0xe0] sm:$0xff]
        %v263 = vld [vmem:[%s187 + $0xe8] sm:$0xff]
        %v264 = vld [vmem:[%s187 + $0xf0] sm:$0xff]
        %v265 = vld [vmem:[%s187 + $0xf8] sm:$0xff]
        %v266 = vld [vmem:[%s196] sm:$0xff]
        %v267 = vld [vmem:[%s196 + $0x8] sm:$0xff]
        %v270 = vlaneseq
        %v271 = vshrl.u32 %v270, 7
        %v272 = vsub.s32 0, %v271
        %v273 = vrot.slane %v266, %v272
        %v274 = vlaneseq
        %v275 = vshrl.u32 %v274, 7
        %v276 = vsub.s32 1, %v275
        %v277 = vrot.slane %v266, %v276
        %v278 = vlaneseq
        %v279 = vshrl.u32 %v278, 7
        %v280 = vsub.s32 2, %v279
        %v281 = vrot.slane %v266, %v280
        %v282 = vlaneseq
        %v283 = vshrl.u32 %v282, 7
        %v284 = vsub.s32 3, %v283
        %v285 = vrot.slane %v266, %v284
        %v286 = vlaneseq
        %v287 = vshrl.u32 %v286, 7
        %v288 = vsub.s32 4, %v287
        %v289 = vrot.slane %v266, %v288
        %v290 = vlaneseq
        %v291 = vshrl.u32 %v290, 7
        %v292 = vsub.s32 5, %v291
        %v293 = vrot.slane %v266, %v292
        %v294 = vlaneseq
        %v295 = vshrl.u32 %v294, 7
        %v296 = vsub.s32 6, %v295
        %v297 = vrot.slane %v266, %v296
        %v298 = vlaneseq
        %v299 = vshrl.u32 %v298, 7
        %v300 = vsub.s32 7, %v299
        %v301 = vrot.slane %v266, %v300
        %v302 = vlaneseq
        %v303 = vshrl.u32 %v302, 7
        %v304 = vsub.s32 0, %v303
        %v305 = vrot.slane %v267, %v304
        %v306 = vlaneseq
        %v307 = vshrl.u32 %v306, 7
        %v308 = vsub.s32 1, %v307
        %v309 = vrot.slane %v267, %v308
        %v310 = vlaneseq
        %v311 = vshrl.u32 %v310, 7
        %v312 = vsub.s32 2, %v311
        %v313 = vrot.slane %v267, %v312
        %v314 = vlaneseq
        %v315 = vshrl.u32 %v314, 7
        %v316 = vsub.s32 3, %v315
        %v317 = vrot.slane %v267, %v316
        %v318 = vlaneseq
        %v319 = vshrl.u32 %v318, 7
        %v320 = vsub.s32 4, %v319
        %v321 = vrot.slane %v267, %v320
        %v322 = vlaneseq
        %v323 = vshrl.u32 %v322, 7
        %v324 = vsub.s32 5, %v323
        %v325 = vrot.slane %v267, %v324
        %v326 = vlaneseq
        %v327 = vshrl.u32 %v326, 7
        %v328 = vsub.s32 6, %v327
        %v329 = vrot.slane %v267, %v328
        %v330 = vlaneseq
        %v331 = vshrl.u32 %v330, 7
        %v332 = vsub.s32 7, %v331
        %v333 = vrot.slane %v267, %v332
        %v382 = vunpack.c.l.b16 %v234
        %v383 = vunpack.c.h.b16 %v234
        %v384 = vunpack.c.l.b16 %v235
        %v385 = vunpack.c.h.b16 %v235
        %v386 = vunpack.c.l.b16 %v236
        %v387 = vunpack.c.h.b16 %v236
        %v388 = vunpack.c.l.b16 %v237
        %v389 = vunpack.c.h.b16 %v237
        %v390 = vunpack.c.l.b16 %v238
        %v391 = vunpack.c.h.b16 %v238
        %v392 = vunpack.c.l.b16 %v239
        %v393 = vunpack.c.h.b16 %v239
        %v394 = vunpack.c.l.b16 %v240
        %v395 = vunpack.c.h.b16 %v240
        %v396 = vunpack.c.l.b16 %v241
        %v397 = vunpack.c.h.b16 %v241
        %v398 = vunpack.c.l.b16 %v242
        %v399 = vunpack.c.h.b16 %v242
        %v400 = vunpack.c.l.b16 %v243
        %v401 = vunpack.c.h.b16 %v243
        %v402 = vunpack.c.l.b16 %v244
        %v403 = vunpack.c.h.b16 %v244
        %v404 = vunpack.c.l.b16 %v245
        %v405 = vunpack.c.h.b16 %v245
        %v406 = vunpack.c.l.b16 %v246
        %v407 = vunpack.c.h.b16 %v246
        %v408 = vunpack.c.l.b16 %v247
        %v409 = vunpack.c.h.b16 %v247
        %v410 = vunpack.c.l.b16 %v248
        %v411 = vunpack.c.h.b16 %v248
        %v412 = vunpack.c.l.b16 %v249
        %v413 = vunpack.c.h.b16 %v249
        %v414 = vunpack.c.l.b16 %v250
        %v415 = vunpack.c.h.b16 %v250
        %v416 = vunpack.c.l.b16 %v251
        %v417 = vunpack.c.h.b16 %v251
        %v418 = vunpack.c.l.b16 %v252
        %v419 = vunpack.c.h.b16 %v252
        %v420 = vunpack.c.l.b16 %v253
        %v421 = vunpack.c.h.b16 %v253
        %v422 = vunpack.c.l.b16 %v254
        %v423 = vunpack.c.h.b16 %v254
        %v424 = vunpack.c.l.b16 %v255
        %v425 = vunpack.c.h.b16 %v255
        %v426 = vunpack.c.l.b16 %v256
        %v427 = vunpack.c.h.b16 %v256
        %v428 = vunpack.c.l.b16 %v257
        %v429 = vunpack.c.h.b16 %v257
        %v430 = vunpack.c.l.b16 %v258
        %v431 = vunpack.c.h.b16 %v258
        %v432 = vunpack.c.l.b16 %v259
        %v433 = vunpack.c.h.b16 %v259
        %v434 = vunpack.c.l.b16 %v260
        %v435 = vunpack.c.h.b16 %v260
        %v436 = vunpack.c.l.b16 %v261
        %v437 = vunpack.c.h.b16 %v261
        %v438 = vunpack.c.l.b16 %v262
        %v439 = vunpack.c.h.b16 %v262
        %v440 = vunpack.c.l.b16 %v263
        %v441 = vunpack.c.h.b16 %v263
        %v442 = vunpack.c.l.b16 %v264
        %v443 = vunpack.c.h.b16 %v264
        %v444 = vunpack.c.l.b16 %v265
        %v445 = vunpack.c.h.b16 %v265
        %v446 = vpack.c.b16 %v398, %v382
        %v447 = vpack.c.b16 %v399, %v383
        %v448 = vpack.c.b16 %v400, %v384
        %v449 = vpack.c.b16 %v401, %v385
        %v450 = vpack.c.b16 %v402, %v386
        %v451 = vpack.c.b16 %v403, %v387
        %v452 = vpack.c.b16 %v404, %v388
        %v453 = vpack.c.b16 %v405, %v389
        %v454 = vpack.c.b16 %v406, %v390
        %v455 = vpack.c.b16 %v407, %v391
        %v456 = vpack.c.b16 %v408, %v392
        %v457 = vpack.c.b16 %v409, %v393
        %v458 = vpack.c.b16 %v410, %v394
        %v459 = vpack.c.b16 %v411, %v395
        %v460 = vpack.c.b16 %v412, %v396
        %v461 = vpack.c.b16 %v413, %v397
        %v462 = vpack.c.b16 %v430, %v414
        %v463 = vpack.c.b16 %v431, %v415
        %v464 = vpack.c.b16 %v432, %v416
        %v465 = vpack.c.b16 %v433, %v417
        %v466 = vpack.c.b16 %v434, %v418
        %v467 = vpack.c.b16 %v435, %v419
        %v468 = vpack.c.b16 %v436, %v420
        %v469 = vpack.c.b16 %v437, %v421
        %v470 = vpack.c.b16 %v438, %v422
        %v471 = vpack.c.b16 %v439, %v423
        %v472 = vpack.c.b16 %v440, %v424
        %v473 = vpack.c.b16 %v441, %v425
        %v474 = vpack.c.b16 %v442, %v426
        %v475 = vpack.c.b16 %v443, %v427
        %v476 = vpack.c.b16 %v444, %v428
        %v477 = vpack.c.b16 %v445, %v429
        %vm510 = vcmask 261120
        %v512 = vsel %vm510, %v233, 0
        %514 = vmatprep.subr.bf16.mxu0 %v447
        %515 = vmatpush1.bf16.msra.mxu0 %v446
        %516 = vmatprep.subr.bf16.mxu0 %v463
        %517 = vmatpush1.bf16.msra.mxu0 %v462
        %518 = vmatprep.subr.bf16.mxu0 0
        %519 = vmatpush1.bf16.msra.mxu0 0
        %520 = vmatprep.subr.bf16.mxu0 0
        %521 = vmatpush1.bf16.msra.mxu0 0
        %522 = vmatprep.subr.bf16.mxu0 0
        %523 = vmatpush1.bf16.msra.mxu0 0
        %524 = vmatprep.subr.bf16.mxu0 0
        %525 = vmatpush1.bf16.msra.mxu0 0
        %526 = vmatprep.subr.bf16.mxu0 0
        %527 = vmatpush1.bf16.msra.mxu0 0
        %528 = vmatprep.subr.bf16.mxu0 0
        %529 = vmatpush1.bf16.msra.mxu0 0
        %530 = vmatprep.subr.bf16.mxu0 0
        %531 = vmatpush1.bf16.msra.mxu0 0
        %532 = vmatprep.subr.bf16.mxu0 0
        %533 = vmatpush1.bf16.msra.mxu0 0
        %534 = vmatprep.subr.bf16.mxu0 0
        %535 = vmatpush1.bf16.msra.mxu0 0
        %536 = vmatprep.subr.bf16.mxu0 0
        %537 = vmatpush1.bf16.msra.mxu0 0
        %538 = vmatprep.subr.bf16.mxu0 0
        %539 = vmatpush1.bf16.msra.mxu0 0
        %540 = vmatprep.subr.bf16.mxu0 0
        %541 = vmatpush1.bf16.msra.mxu0 0
        %542 = vmatprep.subr.bf16.mxu0 0
        %543 = vmatpush1.bf16.msra.mxu0 0
        %544 = vmatprep.subr.bf16.mxu0 0
        %545 = vmatpush1.bf16.msra.mxu0 0
        %546 = vmatprep.mubr.bf16.mxu0 0
        %547 = vmatmul.mubr.bf16.gmra.mrb[0].mxu0 %v512
        %v548 = vpop.f32.mrb[0].mxu0
        %v549 = vadd.f32 %v273, %v548
        %v550 = vpop.f32.mrb[0].mxu0
        %v551 = vadd.f32 %v277, %v550
        %v552 = vpop.f32.mrb[0].mxu0
        %v553 = vpop.f32.mrb[0].mxu0
        %554 = vdwg.mxu0
        %555 = vmatprep.subr.bf16.mxu0 %v449
        %556 = vmatpush1.bf16.msra.mxu0 %v448
        %557 = vmatprep.subr.bf16.mxu0 %v465
        %558 = vmatpush1.bf16.msra.mxu0 %v464
        %559 = vmatprep.subr.bf16.mxu0 0
        %560 = vmatpush1.bf16.msra.mxu0 0
        %561 = vmatprep.subr.bf16.mxu0 0
        %562 = vmatpush1.bf16.msra.mxu0 0
        %563 = vmatprep.subr.bf16.mxu0 0
        %564 = vmatpush1.bf16.msra.mxu0 0
        %565 = vmatprep.subr.bf16.mxu0 0
        %566 = vmatpush1.bf16.msra.mxu0 0
        %567 = vmatprep.subr.bf16.mxu0 0
        %568 = vmatpush1.bf16.msra.mxu0 0
        %569 = vmatprep.subr.bf16.mxu0 0
        %570 = vmatpush1.bf16.msra.mxu0 0
        %571 = vmatprep.subr.bf16.mxu0 0
        %572 = vmatpush1.bf16.msra.mxu0 0
        %573 = vmatprep.subr.bf16.mxu0 0
        %574 = vmatpush1.bf16.msra.mxu0 0
        %575 = vmatprep.subr.bf16.mxu0 0
        %576 = vmatpush1.bf16.msra.mxu0 0
        %577 = vmatprep.subr.bf16.mxu0 0
        %578 = vmatpush1.bf16.msra.mxu0 0
        %579 = vmatprep.subr.bf16.mxu0 0
        %580 = vmatpush1.bf16.msra.mxu0 0
        %581 = vmatprep.subr.bf16.mxu0 0
        %582 = vmatpush1.bf16.msra.mxu0 0
        %583 = vmatprep.subr.bf16.mxu0 0
        %584 = vmatpush1.bf16.msra.mxu0 0
        %585 = vmatprep.subr.bf16.mxu0 0
        %586 = vmatpush1.bf16.msra.mxu0 0
        %587 = vmatprep.mubr.bf16.mxu0 0
        %588 = vmatmul.mubr.bf16.gmra.mrb[0].mxu0 %v512
        %v589 = vpop.f32.mrb[0].mxu0
        %v590 = vadd.f32 %v281, %v589
        %v591 = vpop.f32.mrb[0].mxu0
        %v592 = vadd.f32 %v285, %v591
        %v593 = vpop.f32.mrb[0].mxu0
        %v594 = vpop.f32.mrb[0].mxu0
        %595 = vdwg.mxu0
        %596 = vmatprep.subr.bf16.mxu0 %v451
        %597 = vmatpush1.bf16.msra.mxu0 %v450
        %598 = vmatprep.subr.bf16.mxu0 %v467
        %599 = vmatpush1.bf16.msra.mxu0 %v466
        %600 = vmatprep.subr.bf16.mxu0 0
        %601 = vmatpush1.bf16.msra.mxu0 0
        %602 = vmatprep.subr.bf16.mxu0 0
        %603 = vmatpush1.bf16.msra.mxu0 0
        %604 = vmatprep.subr.bf16.mxu0 0
        %605 = vmatpush1.bf16.msra.mxu0 0
        %606 = vmatprep.subr.bf16.mxu0 0
        %607 = vmatpush1.bf16.msra.mxu0 0
        %608 = vmatprep.subr.bf16.mxu0 0
        %609 = vmatpush1.bf16.msra.mxu0 0
        %610 = vmatprep.subr.bf16.mxu0 0
        %611 = vmatpush1.bf16.msra.mxu0 0
        %612 = vmatprep.subr.bf16.mxu0 0
        %613 = vmatpush1.bf16.msra.mxu0 0
        %614 = vmatprep.subr.bf16.mxu0 0
        %615 = vmatpush1.bf16.msra.mxu0 0
        %616 = vmatprep.subr.bf16.mxu0 0
        %617 = vmatpush1.bf16.msra.mxu0 0
        %618 = vmatprep.subr.bf16.mxu0 0
        %619 = vmatpush1.bf16.msra.mxu0 0
        %620 = vmatprep.subr.bf16.mxu0 0
        %621 = vmatpush1.bf16.msra.mxu0 0
        %622 = vmatprep.subr.bf16.mxu0 0
        %623 = vmatpush1.bf16.msra.mxu0 0
        %624 = vmatprep.subr.bf16.mxu0 0
        %625 = vmatpush1.bf16.msra.mxu0 0
        %626 = vmatprep.subr.bf16.mxu0 0
        %627 = vmatpush1.bf16.msra.mxu0 0
        %628 = vmatprep.mubr.bf16.mxu0 0
        %629 = vmatmul.mubr.bf16.gmra.mrb[0].mxu0 %v512
        %v630 = vpop.f32.mrb[0].mxu0
        %v631 = vadd.f32 %v289, %v630
        %v632 = vpop.f32.mrb[0].mxu0
        %v633 = vadd.f32 %v293, %v632
        %v634 = vpop.f32.mrb[0].mxu0
        %v635 = vpop.f32.mrb[0].mxu0
        %636 = vdwg.mxu0
        %637 = vmatprep.subr.bf16.mxu0 %v453
        %638 = vmatpush1.bf16.msra.mxu0 %v452
        %639 = vmatprep.subr.bf16.mxu0 %v469
        %640 = vmatpush1.bf16.msra.mxu0 %v468
        %641 = vmatprep.subr.bf16.mxu0 0
        %642 = vmatpush1.bf16.msra.mxu0 0
        %643 = vmatprep.subr.bf16.mxu0 0
        %644 = vmatpush1.bf16.msra.mxu0 0
        %645 = vmatprep.subr.bf16.mxu0 0
        %646 = vmatpush1.bf16.msra.mxu0 0
        %647 = vmatprep.subr.bf16.mxu0 0
        %648 = vmatpush1.bf16.msra.mxu0 0
        %649 = vmatprep.subr.bf16.mxu0 0
        %650 = vmatpush1.bf16.msra.mxu0 0
        %651 = vmatprep.subr.bf16.mxu0 0
        %652 = vmatpush1.bf16.msra.mxu0 0
        %653 = vmatprep.subr.bf16.mxu0 0
        %654 = vmatpush1.bf16.msra.mxu0 0
        %655 = vmatprep.subr.bf16.mxu0 0
        %656 = vmatpush1.bf16.msra.mxu0 0
        %657 = vmatprep.subr.bf16.mxu0 0
        %658 = vmatpush1.bf16.msra.mxu0 0
        %659 = vmatprep.subr.bf16.mxu0 0
        %660 = vmatpush1.bf16.msra.mxu0 0
        %661 = vmatprep.subr.bf16.mxu0 0
        %662 = vmatpush1.bf16.msra.mxu0 0
        %663 = vmatprep.subr.bf16.mxu0 0
        %664 = vmatpush1.bf16.msra.mxu0 0
        %665 = vmatprep.subr.bf16.mxu0 0
        %666 = vmatpush1.bf16.msra.mxu0 0
        %667 = vmatprep.subr.bf16.mxu0 0
        %668 = vmatpush1.bf16.msra.mxu0 0
        %669 = vmatprep.mubr.bf16.mxu0 0
        %670 = vmatmul.mubr.bf16.gmra.mrb[0].mxu0 %v512
        %v671 = vpop.f32.mrb[0].mxu0
        %v672 = vadd.f32 %v297, %v671
        %v673 = vpop.f32.mrb[0].mxu0
        %v674 = vadd.f32 %v301, %v673
        %v675 = vpop.f32.mrb[0].mxu0
        %v676 = vpop.f32.mrb[0].mxu0
        %677 = vdwg.mxu0
        %678 = vmatprep.subr.bf16.mxu0 %v455
        %679 = vmatpush1.bf16.msra.mxu0 %v454
        %680 = vmatprep.subr.bf16.mxu0 %v471
        %681 = vmatpush1.bf16.msra.mxu0 %v470
        %682 = vmatprep.subr.bf16.mxu0 0
        %683 = vmatpush1.bf16.msra.mxu0 0
        %684 = vmatprep.subr.bf16.mxu0 0
        %685 = vmatpush1.bf16.msra.mxu0 0
        %686 = vmatprep.subr.bf16.mxu0 0
        %687 = vmatpush1.bf16.msra.mxu0 0
        %688 = vmatprep.subr.bf16.mxu0 0
        %689 = vmatpush1.bf16.msra.mxu0 0
        %690 = vmatprep.subr.bf16.mxu0 0
        %691 = vmatpush1.bf16.msra.mxu0 0
        %692 = vmatprep.subr.bf16.mxu0 0
        %693 = vmatpush1.bf16.msra.mxu0 0
        %694 = vmatprep.subr.bf16.mxu0 0
        %695 = vmatpush1.bf16.msra.mxu0 0
        %696 = vmatprep.subr.bf16.mxu0 0
        %697 = vmatpush1.bf16.msra.mxu0 0
        %698 = vmatprep.subr.bf16.mxu0 0
        %699 = vmatpush1.bf16.msra.mxu0 0
        %700 = vmatprep.subr.bf16.mxu0 0
        %701 = vmatpush1.bf16.msra.mxu0 0
        %702 = vmatprep.subr.bf16.mxu0 0
        %703 = vmatpush1.bf16.msra.mxu0 0
        %704 = vmatprep.subr.bf16.mxu0 0
        %705 = vmatpush1.bf16.msra.mxu0 0
        %706 = vmatprep.subr.bf16.mxu0 0
        %707 = vmatpush1.bf16.msra.mxu0 0
        %708 = vmatprep.subr.bf16.mxu0 0
        %709 = vmatpush1.bf16.msra.mxu0 0
        %710 = vmatprep.mubr.bf16.mxu0 0
        %711 = vmatmul.mubr.bf16.gmra.mrb[0].mxu0 %v512
        %v712 = vpop.f32.mrb[0].mxu0
        %v713 = vadd.f32 %v305, %v712
        %v714 = vpop.f32.mrb[0].mxu0
        %v715 = vadd.f32 %v309, %v714
        %v716 = vpop.f32.mrb[0].mxu0
        %v717 = vpop.f32.mrb[0].mxu0
        %718 = vdwg.mxu0
        %719 = vmatprep.subr.bf16.mxu0 %v457
        %720 = vmatpush1.bf16.msra.mxu0 %v456
        %721 = vmatprep.subr.bf16.mxu0 %v473
        %722 = vmatpush1.bf16.msra.mxu0 %v472
        %723 = vmatprep.subr.bf16.mxu0 0
        %724 = vmatpush1.bf16.msra.mxu0 0
        %725 = vmatprep.subr.bf16.mxu0 0
        %726 = vmatpush1.bf16.msra.mxu0 0
        %727 = vmatprep.subr.bf16.mxu0 0
        %728 = vmatpush1.bf16.msra.mxu0 0
        %729 = vmatprep.subr.bf16.mxu0 0
        %730 = vmatpush1.bf16.msra.mxu0 0
        %731 = vmatprep.subr.bf16.mxu0 0
        %732 = vmatpush1.bf16.msra.mxu0 0
        %733 = vmatprep.subr.bf16.mxu0 0
        %734 = vmatpush1.bf16.msra.mxu0 0
        %735 = vmatprep.subr.bf16.mxu0 0
        %736 = vmatpush1.bf16.msra.mxu0 0
        %737 = vmatprep.subr.bf16.mxu0 0
        %738 = vmatpush1.bf16.msra.mxu0 0
        %739 = vmatprep.subr.bf16.mxu0 0
        %740 = vmatpush1.bf16.msra.mxu0 0
        %741 = vmatprep.subr.bf16.mxu0 0
        %742 = vmatpush1.bf16.msra.mxu0 0
        %743 = vmatprep.subr.bf16.mxu0 0
        %744 = vmatpush1.bf16.msra.mxu0 0
        %745 = vmatprep.subr.bf16.mxu0 0
        %746 = vmatpush1.bf16.msra.mxu0 0
        %747 = vmatprep.subr.bf16.mxu0 0
        %748 = vmatpush1.bf16.msra.mxu0 0
        %749 = vmatprep.subr.bf16.mxu0 0
        %750 = vmatpush1.bf16.msra.mxu0 0
        %751 = vmatprep.mubr.bf16.mxu0 0
        %752 = vmatmul.mubr.bf16.gmra.mrb[0].mxu0 %v512
        %v753 = vpop.f32.mrb[0].mxu0
        %v754 = vadd.f32 %v313, %v753
        %v755 = vpop.f32.mrb[0].mxu0
        %v756 = vadd.f32 %v317, %v755
        %v757 = vpop.f32.mrb[0].mxu0
        %v758 = vpop.f32.mrb[0].mxu0
        %759 = vdwg.mxu0
        %760 = vmatprep.subr.bf16.mxu0 %v459
        %761 = vmatpush1.bf16.msra.mxu0 %v458
        %762 = vmatprep.subr.bf16.mxu0 %v475
        %763 = vmatpush1.bf16.msra.mxu0 %v474
        %764 = vmatprep.subr.bf16.mxu0 0
        %765 = vmatpush1.bf16.msra.mxu0 0
        %766 = vmatprep.subr.bf16.mxu0 0
        %767 = vmatpush1.bf16.msra.mxu0 0
        %768 = vmatprep.subr.bf16.mxu0 0
        %769 = vmatpush1.bf16.msra.mxu0 0
        %770 = vmatprep.subr.bf16.mxu0 0
        %771 = vmatpush1.bf16.msra.mxu0 0
        %772 = vmatprep.subr.bf16.mxu0 0
        %773 = vmatpush1.bf16.msra.mxu0 0
        %774 = vmatprep.subr.bf16.mxu0 0
        %775 = vmatpush1.bf16.msra.mxu0 0
        %776 = vmatprep.subr.bf16.mxu0 0
        %777 = vmatpush1.bf16.msra.mxu0 0
        %778 = vmatprep.subr.bf16.mxu0 0
        %779 = vmatpush1.bf16.msra.mxu0 0
        %780 = vmatprep.subr.bf16.mxu0 0
        %781 = vmatpush1.bf16.msra.mxu0 0
        %782 = vmatprep.subr.bf16.mxu0 0
        %783 = vmatpush1.bf16.msra.mxu0 0
        %784 = vmatprep.subr.bf16.mxu0 0
        %785 = vmatpush1.bf16.msra.mxu0 0
        %786 = vmatprep.subr.bf16.mxu0 0
        %787 = vmatpush1.bf16.msra.mxu0 0
        %788 = vmatprep.subr.bf16.mxu0 0
        %789 = vmatpush1.bf16.msra.mxu0 0
        %790 = vmatprep.subr.bf16.mxu0 0
        %791 = vmatpush1.bf16.msra.mxu0 0
        %792 = vmatprep.mubr.bf16.mxu0 0
        %793 = vmatmul.mubr.bf16.gmra.mrb[0].mxu0 %v512
        %v794 = vpop.f32.mrb[0].mxu0
        %v795 = vadd.f32 %v321, %v794
        %v796 = vpop.f32.mrb[0].mxu0
        %v797 = vadd.f32 %v325, %v796
        %v798 = vpop.f32.mrb[0].mxu0
        %v799 = vpop.f32.mrb[0].mxu0
        %800 = vdwg.mxu0
        %801 = vmatprep.subr.bf16.mxu0 %v461
        %802 = vmatpush1.bf16.msra.mxu0 %v460
        %803 = vmatprep.subr.bf16.mxu0 %v477
        %804 = vmatpush1.bf16.msra.mxu0 %v476
        %805 = vmatprep.subr.bf16.mxu0 0
        %806 = vmatpush1.bf16.msra.mxu0 0
        %807 = vmatprep.subr.bf16.mxu0 0
        %808 = vmatpush1.bf16.msra.mxu0 0
        %809 = vmatprep.subr.bf16.mxu0 0
        %810 = vmatpush1.bf16.msra.mxu0 0
        %811 = vmatprep.subr.bf16.mxu0 0
        %812 = vmatpush1.bf16.msra.mxu0 0
        %813 = vmatprep.subr.bf16.mxu0 0
        %814 = vmatpush1.bf16.msra.mxu0 0
        %815 = vmatprep.subr.bf16.mxu0 0
        %816 = vmatpush1.bf16.msra.mxu0 0
        %817 = vmatprep.subr.bf16.mxu0 0
        %818 = vmatpush1.bf16.msra.mxu0 0
        %819 = vmatprep.subr.bf16.mxu0 0
        %820 = vmatpush1.bf16.msra.mxu0 0
        %821 = vmatprep.subr.bf16.mxu0 0
        %822 = vmatpush1.bf16.msra.mxu0 0
        %823 = vmatprep.subr.bf16.mxu0 0
        %824 = vmatpush1.bf16.msra.mxu0 0
        %825 = vmatprep.subr.bf16.mxu0 0
        %826 = vmatpush1.bf16.msra.mxu0 0
        %827 = vmatprep.subr.bf16.mxu0 0
        %828 = vmatpush1.bf16.msra.mxu0 0
        %829 = vmatprep.subr.bf16.mxu0 0
        %830 = vmatpush1.bf16.msra.mxu0 0
        %831 = vmatprep.subr.bf16.mxu0 0
        %832 = vmatpush1.bf16.msra.mxu0 0
        %833 = vmatprep.mubr.bf16.mxu0 0
        %834 = vmatmul.mubr.bf16.gmra.mrb[0].mxu0 %v512
        %v835 = vpop.f32.mrb[0].mxu0
        %v836 = vadd.f32 %v329, %v835
        %v837 = vpop.f32.mrb[0].mxu0
        %v838 = vadd.f32 %v333, %v837
        %v839 = vpop.f32.mrb[0].mxu0
        %v840 = vpop.f32.mrb[0].mxu0
        %841 = vdwg.mxu0
        %vm842 = vcmp.ge.f32.partialorder %v549, 0.0
        %vm843 = vcmp.ge.f32.partialorder %v551, 0.0
        %vm844 = vcmp.ge.f32.partialorder %v590, 0.0
        %vm845 = vcmp.ge.f32.partialorder %v592, 0.0
        %vm846 = vcmp.ge.f32.partialorder %v631, 0.0
        %vm847 = vcmp.ge.f32.partialorder %v633, 0.0
        %vm848 = vcmp.ge.f32.partialorder %v672, 0.0
        %vm849 = vcmp.ge.f32.partialorder %v674, 0.0
        %vm850 = vcmp.ge.f32.partialorder %v713, 0.0
        %vm851 = vcmp.ge.f32.partialorder %v715, 0.0
        %vm852 = vcmp.ge.f32.partialorder %v754, 0.0
        %vm853 = vcmp.ge.f32.partialorder %v756, 0.0
        %vm854 = vcmp.ge.f32.partialorder %v795, 0.0
        %vm855 = vcmp.ge.f32.partialorder %v797, 0.0
        %vm856 = vcmp.ge.f32.partialorder %v836, 0.0
        %vm857 = vcmp.ge.f32.partialorder %v838, 0.0
        %v858 = vmul.f32 %v549, 0.2
        %v859 = vmul.f32 %v551, 0.2
        %v860 = vmul.f32 %v590, 0.2
        %v861 = vmul.f32 %v592, 0.2
        %v862 = vmul.f32 %v631, 0.2
        %v863 = vmul.f32 %v633, 0.2
        %v864 = vmul.f32 %v672, 0.2
        %v865 = vmul.f32 %v674, 0.2
        %v866 = vmul.f32 %v713, 0.2
        %v867 = vmul.f32 %v715, 0.2
        %v868 = vmul.f32 %v754, 0.2
        %v869 = vmul.f32 %v756, 0.2
        %v870 = vmul.f32 %v795, 0.2
        %v871 = vmul.f32 %v797, 0.2
        %v872 = vmul.f32 %v836, 0.2
        %v873 = vmul.f32 %v838, 0.2
        %v874 = vsel %vm842, %v549, %v858
        %v875 = vsel %vm843, %v551, %v859
        %v876 = vsel %vm844, %v590, %v860
        %v877 = vsel %vm845, %v592, %v861
        %v878 = vsel %vm846, %v631, %v862
        %v879 = vsel %vm847, %v633, %v863
        %v880 = vsel %vm848, %v672, %v864
        %v881 = vsel %vm849, %v674, %v865
        %v882 = vsel %vm850, %v713, %v866
        %v883 = vsel %vm851, %v715, %v867
        %v884 = vsel %vm852, %v754, %v868
        %v885 = vsel %vm853, %v756, %v869
        %v886 = vsel %vm854, %v795, %v870
        %v887 = vsel %vm855, %v797, %v871
        %v888 = vsel %vm856, %v836, %v872
        %v889 = vsel %vm857, %v838, %v873
        %890 = vst [vmem:[%s230] sm:$0xff] %v874
        %891 = vst [vmem:[%s230 + $0x8] sm:$0xff] %v875
        %892 = vst [vmem:[%s230 + $0x10] sm:$0xff] %v876
        %893 = vst [vmem:[%s230 + $0x18] sm:$0xff] %v877
        %894 = vst [vmem:[%s230 + $0x20] sm:$0xff] %v878
        %895 = vst [vmem:[%s230 + $0x28] sm:$0xff] %v879
        %896 = vst [vmem:[%s230 + $0x30] sm:$0xff] %v880
        %897 = vst [vmem:[%s230 + $0x38] sm:$0xff] %v881
        %898 = vst [vmem:[%s230 + $0x40] sm:$0xff] %v882
        %899 = vst [vmem:[%s230 + $0x48] sm:$0xff] %v883
        %900 = vst [vmem:[%s230 + $0x50] sm:$0xff] %v884
        %901 = vst [vmem:[%s230 + $0x58] sm:$0xff] %v885
        %902 = vst [vmem:[%s230 + $0x60] sm:$0xff] %v886
        %903 = vst [vmem:[%s230 + $0x68] sm:$0xff] %v887
        %904 = vst [vmem:[%s230 + $0x70] sm:$0xff] %v888
        %905 = vst [vmem:[%s230 + $0x78] sm:$0xff] %v889
        %s906 = smul.u32 16, %s20
        %p907 = scmp.lt.s32.totalorder %s906, 31
        %s908 = scalar_select %p907, %s906, 31
        %s909 = smul.addr %s908, 8
        %s910 = scalar_lea.vmem %s3, %s909
        // Predicated region
        $region41: #{plane_decoder_forward.6} parent=31 // pred_check
          %p911 = pneg %p111
        $region42: #{plane_decoder_forward.6} parent=31 // pred_check_branch
          %913 = sbr.rel (%p911) target = $region44
        $region43: #{plane_decoder_forward.6} parent=31 // pred_region
          %s914 = smul.u32 16, %s20
        $region44: #{plane_decoder_forward.6} parent=31 // pred_fallthru
          _
      $region32: #{plane_decoder_forward.6} parent=5 // pred_fallthru
        _
      %p915 = scmp.le.s32.totalorder 2, %s15
      // Predicated region
      $region45: #{plane_decoder_forward.6} parent=5 // pred_check
        %p916 = pneg %p915
      $region46: #{plane_decoder_forward.6} parent=5 // pred_check_branch
        %918 = sbr.rel (%p916) target = $region48
      $region47: #{plane_decoder_forward.6} parent=5 // pred_region
        %s919 = ssub.s32 %s15, 2
        // Predicated region
        $region49: #{plane_decoder_forward.6} parent=47 // pred_check
          %p920 = pneg %p117
        $region50: #{plane_decoder_forward.6} parent=47 // pred_check_branch
          %922 = sbr.rel (%p920) target = $region52
        $region51: #{plane_decoder_forward.6} parent=47 // pred_region
          %s923 = smul.u32 16, %s21
          %p924 = scmp.lt.s32.totalorder %s923, 31
          %s925 = scalar_select %p924, %s923, 31
          %s926 = smul.addr %s925, 8
          %s927 = scalar_lea.vmem %s3, %s926
        $region52: #{plane_decoder_forward.6} parent=47 // pred_fallthru
          _
      $region48: #{plane_decoder_forward.6} parent=5 // pred_fallthru
        _
    $region6: #{plane_decoder_forward.6} parent=1 // loop_footer
      %s19 = sadd.s32 1, %s15
    $region7: #{plane_decoder_forward.6} parent=1 // loop_footer_branch
      %14 = sbr.rel target = $region3
    $region8: #{plane_decoder_forward.6} parent=1 // loop_exit
      _
    %928 = vsyncpa [#allocation3], 1
    %s929 = scalar_lea.sflag [#allocation3], 1
    %930 = vsyncpa %s929, 1
    %931 = vsyncpa [#allocation5], 1
    %s932 = scalar_lea.sflag [#allocation5], 1
    %933 = vsyncpa %s932, 1

// kernel: plane_decoder_forward.7
$region0: #{plane_decoder_forward.7}
  #allocation0 [shape = 'u32[]', space=smem, size = 0x4, offset = 0x4, fixed_abs, tag = 'smem constant byte address 0x4 - core index']
  #allocation1 [shape = 'u32[144,128]{1,0:T(1,128)}', space=vmem, size = 0x12000, scoped, tag = 'internal scratch']
  %s0 = inlined_call_operand.vmem [shape: bf16[2,4,16,1024], index: 0, kind: input, shape index: {}]
  %s1 = inlined_call_operand.vmem [shape: bf16[4,1024,256], index: 1, kind: input, shape index: {}]
  %s2 = inlined_call_operand.vmem [shape: f32[4,16,256], index: 2, kind: input, shape index: {}]
  %s3 = inlined_call_operand.vmem [shape: f32[2,4,16,256], index: 3, kind: output, shape index: {}]
  %s4 = sld [smem:[#allocation0]]
  $region45: #{plane_decoder_forward.7} parent=0
    _
  %s6 = ssub.s32 1, %s4
  %s7 = scalar_select 0, %s6, %s4
  loop: start=0, step=1, limit=10
  $region2: #{plane_decoder_forward.7} parent=0 // loop_pre_header
    _
  $region3: #{plane_decoder_forward.7} parent=0 // loop_header
    %s9 = sphi 0, %s13
    %p10 = scmp.ge.s32.totalorder %s9, 10
    %s16 = sphi 0, %s28
    %s17 = sphi 0, %s24
    %s18 = sphi 0, %s16
    %s19 = sphi 0, %s17
    %s20 = sphi 0, %s18
    %s21 = sphi 0, %s19
    %s33 = sphi 0, %s35
    %s36 = sphi 0, %s33
    %s37 = sphi 0, %s36
    %s53 = sphi 0, %s37
    %s59 = sphi 0, %s61
    %s62 = sphi 0, %s59
    %s63 = sphi 0, %s62
    %s79 = sphi 0, %s63
    %s85 = sphi 0, %s87
    %s88 = sphi 0, %s85
    %s89 = sphi 0, %s88
    %s105 = sphi 0, %s89
    %s113 = sphi 0, %s115
    %s116 = sphi 0, %s113
    %s117 = sphi 0, %s116
    %s133 = sphi 0, %s117
  $region4: #{plane_decoder_forward.7} parent=0 // loop_header_branch
    %12 = sbr.rel (%p10) target = $region8
  $region5: #{plane_decoder_forward.7} parent=0 // loop_body
    %s14 = ssub.s32 %s9, 1
    %s15 = ssub.s32 %s9, 2
    %s22 = sadd.s32 1, %s17
    %p23 = scmp.ge.s32.totalorder %s22, 4
    %s24 = scalar_select %p23, 0, %s22
    %s25 = sadd.s32 1, %s16
    %s26 = scalar_select %p23, %s25, %s16
    %p27 = scmp.ge.s32.totalorder %s26, 2
    %s28 = scalar_select %p27, 0, %s26
    %s29 = ssub.s32 %s16, %s28
    %s30 = ssub.s32 %s17, %s24
    %s31 = sor.u32 %s29, %s30
    %p32 = scmp.eq.s32.totalorder %s31, 0
    %s34 = sadd.s32 %s33, 1
    %s35 = scalar_select %p32, %s33, %s34
    %p38 = pneg %p32
    %p39 = scmp.eq.s32.totalorder %s9, 7
    %p40 = por %p38, %p39
    %p41 = scmp.ne.s32.totalorder %s33, %s36
    %p42 = scmp.eq.s32.totalorder %s9, 0
    %p43 = por %p41, %p42
    %p44 = scmp.ne.s32.totalorder %s33, %s36
    %p45 = scmp.eq.s32.totalorder %s14, 7
    %p46 = por %p44, %p45
    %p47 = scmp.ne.s32.totalorder %s36, %s37
    %p48 = scmp.eq.s32.totalorder %s14, 0
    %p49 = por %p47, %p48
    %p50 = scmp.ne.s32.totalorder %s36, %s37
    %p51 = scmp.eq.s32.totalorder %s15, 7
    %p52 = por %p50, %p51
    %p54 = scmp.ne.s32.totalorder %s37, %s53
    %p55 = scmp.eq.s32.totalorder %s15, 0
    %p56 = por %p54, %p55
    %s57 = ssub.s32 %s17, %s24
    %p58 = scmp.eq.s32.totalorder %s57, 0
    %s60 = sadd.s32 %s59, 1
    %s61 = scalar_select %p58, %s59, %s60
    %p64 = pneg %p58
    %p65 = scmp.eq.s32.totalorder %s9, 7
    %p66 = por %p64, %p65
    %p67 = scmp.ne.s32.totalorder %s59, %s62
    %p68 = scmp.eq.s32.totalorder %s9, 0
    %p69 = por %p67, %p68
    %p70 = scmp.ne.s32.totalorder %s59, %s62
    %p71 = scmp.eq.s32.totalorder %s14, 7
    %p72 = por %p70, %p71
    %p73 = scmp.ne.s32.totalorder %s62, %s63
    %p74 = scmp.eq.s32.totalorder %s14, 0
    %p75 = por %p73, %p74
    %p76 = scmp.ne.s32.totalorder %s62, %s63
    %p77 = scmp.eq.s32.totalorder %s15, 7
    %p78 = por %p76, %p77
    %p80 = scmp.ne.s32.totalorder %s63, %s79
    %p81 = scmp.eq.s32.totalorder %s15, 0
    %p82 = por %p80, %p81
    %s83 = ssub.s32 %s17, %s24
    %p84 = scmp.eq.s32.totalorder %s83, 0
    %s86 = sadd.s32 %s85, 1
    %s87 = scalar_select %p84, %s85, %s86
    %p90 = pneg %p84
    %p91 = scmp.eq.s32.totalorder %s9, 7
    %p92 = por %p90, %p91
    %p93 = scmp.ne.s32.totalorder %s85, %s88
    %p94 = scmp.eq.s32.totalorder %s9, 0
    %p95 = por %p93, %p94
    %p96 = scmp.ne.s32.totalorder %s85, %s88
    %p97 = scmp.eq.s32.totalorder %s14, 7
    %p98 = por %p96, %p97
    %p99 = scmp.ne.s32.totalorder %s88, %s89
    %p100 = scmp.eq.s32.totalorder %s14, 0
    %p101 = por %p99, %p100
    %p102 = scmp.ne.s32.totalorder %s88, %s89
    %p103 = scmp.eq.s32.totalorder %s15, 7
    %p104 = por %p102, %p103
    %p106 = scmp.ne.s32.totalorder %s89, %s105
    %p107 = scmp.eq.s32.totalorder %s15, 0
    %p108 = por %p106, %p107
    %s109 = ssub.s32 %s16, %s28
    %s110 = ssub.s32 %s17, %s24
    %s111 = sor.u32 %s109, %s110
    %p112 = scmp.eq.s32.totalorder %s111, 0
    %s114 = sadd.s32 %s113, 1
    %s115 = scalar_select %p112, %s113, %s114
    %p118 = pneg %p112
    %p119 = scmp.eq.s32.totalorder %s9, 7
    %p120 = por %p118, %p119
    %p121 = scmp.ne.s32.totalorder %s113, %s116
    %p122 = scmp.eq.s32.totalorder %s9, 0
    %p123 = por %p121, %p122
    %p124 = scmp.ne.s32.totalorder %s113, %s116
    %p125 = scmp.eq.s32.totalorder %s14, 7
    %p126 = por %p124, %p125
    %p127 = scmp.ne.s32.totalorder %s116, %s117
    %p128 = scmp.eq.s32.totalorder %s14, 0
    %p129 = por %p127, %p128
    %p130 = scmp.ne.s32.totalorder %s116, %s117
    %p131 = scmp.eq.s32.totalorder %s15, 7
    %p132 = por %p130, %p131
    %p134 = scmp.ne.s32.totalorder %s117, %s133
    %p135 = scmp.eq.s32.totalorder %s15, 0
    %p136 = por %p134, %p135
    %p137 = scmp.le.s32.totalorder 1, %s9
    %p138 = scmp.lt.s32.totalorder %s9, 9
    %p139 = pnand %p137, %p138
    %p140 = pneg %p139
    // Predicated region
    $region9: #{plane_decoder_forward.7} parent=5 // pred_check
      _
    $region10: #{plane_decoder_forward.7} parent=5 // pred_check_branch
      %142 = sbr.rel (%p139) target = $region12
    $region11: #{plane_decoder_forward.7} parent=5 // pred_region
      %s143 = ssub.s32 %s9, 1
    $region12: #{plane_decoder_forward.7} parent=5 // pred_fallthru
      _
    %p144 = scmp.lt.s32.totalorder %s9, 8
    // Predicated region
    $region13: #{plane_decoder_forward.7} parent=5 // pred_check
      %p145 = pneg %p144
    $region14: #{plane_decoder_forward.7} parent=5 // pred_check_branch
      %147 = sbr.rel (%p145) target = $region16
    $region15: #{plane_decoder_forward.7} parent=5 // pred_region
      // Predicated region
      $region17: #{plane_decoder_forward.7} parent=15 // pred_check
        %p148 = pneg %p43
      $region18: #{plane_decoder_forward.7} parent=15 // pred_check_branch
        %150 = sbr.rel (%p148) target = $region20
      $region19: #{plane_decoder_forward.7} parent=15 // pred_region
        %p151 = scmp.lt.s32.totalorder %s16, 1
        %s152 = scalar_select %p151, %s16, 1
        %p153 = scmp.lt.s32.totalorder %s17, 3
        %s154 = scalar_select %p153, %s17, 3
        %s155 = smul.addr %s154, 16
        %s156 = smul.addr %s152, 64
        %s157 = sadd.s32 %s155, %s156
        %s158 = smul.addr %s157, 4
        %s159 = scalar_lea.vmem %s0, %s158
      $region20: #{plane_decoder_forward.7} parent=15 // pred_fallthru
        _
      // Predicated region
      $region21: #{plane_decoder_forward.7} parent=15 // pred_check
        %p160 = pneg %p69
      $region22: #{plane_decoder_forward.7} parent=15 // pred_check_branch
        %162 = sbr.rel (%p160) target = $region24
      $region23: #{plane_decoder_forward.7} parent=15 // pred_region
        %p163 = scmp.lt.s32.totalorder %s17, 3
        %s164 = scalar_select %p163, %s17, 3
        %s165 = smul.addr %s164, 256
        %s166 = smul.addr %s165, 4
        %s167 = scalar_lea.vmem %s1, %s166
      $region24: #{plane_decoder_forward.7} parent=15 // pred_fallthru
        _
      // Predicated region
      $region25: #{plane_decoder_forward.7} parent=15 // pred_check
        %p168 = pneg %p95
      $region26: #{plane_decoder_forward.7} parent=15 // pred_check_branch
        %170 = sbr.rel (%p168) target = $region28
      $region27: #{plane_decoder_forward.7} parent=15 // pred_region
        %p171 = scmp.lt.s32.totalorder %s17, 3
        %s172 = scalar_select %p171, %s17, 3
        %s173 = smul.addr %s172, 4
        %s174 = smul.addr %s173, 8
        %s175 = scalar_lea.vmem %s2, %s174
      $region28: #{plane_decoder_forward.7} parent=15 // pred_fallthru
        _
    $region16: #{plane_decoder_forward.7} parent=5 // pred_fallthru
      _
    %p176 = scmp.le.s32.totalorder 1, %s9
    %p177 = scmp.lt.s32.totalorder %s9, 9
    %p178 = pnand %p176, %p177
    %p179 = pneg %p178
    // Predicated region
    $region29: #{plane_decoder_forward.7} parent=5 // pred_check
      _
    $region30: #{plane_decoder_forward.7} parent=5 // pred_check_branch
      %181 = sbr.rel (%p178) target = $region32
    $region31: #{plane_decoder_forward.7} parent=5 // pred_region
      %s182 = ssub.s32 %s9, 1
      %p183 = scmp.lt.s32.totalorder %s18, 1
      %s184 = scalar_select %p183, %s18, 1
      %p185 = scmp.lt.s32.totalorder %s19, 3
      %s186 = scalar_select %p185, %s19, 3
      %s187 = smul.addr %s186, 16
      %s188 = smul.addr %s184, 64
      %s189 = sadd.s32 %s187, %s188
      %s190 = smul.addr %s189, 4
      %s191 = scalar_lea.vmem %s0, %s190
      %p192 = pneg %p49
      %p193 = pneg %p46
      %p194 = scmp.lt.s32.totalorder %s19, 3
      %s195 = scalar_select %p194, %s19, 3
      %s196 = smul.addr %s195, 256
      %s197 = smul.addr %s196, 4
      %s198 = scalar_lea.vmem %s1, %s197
      %p199 = pneg %p75
      %p200 = pneg %p72
      %p201 = scmp.lt.s32.totalorder %s19, 3
      %s202 = scalar_select %p201, %s19, 3
      %s203 = smul.addr %s202, 4
      %s204 = smul.addr %s203, 8
      %s205 = scalar_lea.vmem %s2, %s204
      %p206 = pneg %p101
      %p207 = pneg %p98
      %p208 = pneg %p129
      %p209 = pneg %p126
      %p210 = scmp.lt.s32.totalorder %s18, 1
      %s211 = scalar_select %p210, %s18, 1
      %p212 = scmp.lt.s32.totalorder %s19, 3
      %s213 = scalar_select %p212, %s19, 3
      %s214 = smul.addr %s213, 4
      %s215 = smul.addr %s211, 16
      %s216 = sadd.s32 %s214, %s215
      %s217 = smul.addr %s216, 8
      %s218 = scalar_lea.vmem %s3, %s217
      %p219 = scmp.lt.s32.totalorder %s18, 1
      %s220 = scalar_select %p219, %s18, 1
      %p221 = scmp.lt.s32.totalorder %s19, 3
      %s222 = scalar_select %p221, %s19, 3
      %s223 = smul.addr %s222, 16
      %s224 = smul.addr %s220, 64
      %s225 = sadd.s32 %s223, %s224
      %s226 = smul.addr %s225, 4
      %s227 = scalar_lea.vmem %s0, %s226
      %p228 = scmp.lt.s32.totalorder %s19, 3
      %s229 = scalar_select %p228, %s19, 3
      %s230 = smul.addr %s229, 256
      %s231 = smul.addr %s230, 4
      %s232 = scalar_lea.vmem %s1, %s231
      %p233 = scmp.lt.s32.totalorder %s19, 3
      %s234 = scalar_select %p233, %s19, 3
      %s235 = smul.addr %s234, 4
      %s236 = smul.addr %s235, 8
      %s237 = scalar_lea.vmem %s2, %s236
      %p238 = scmp.lt.s32.totalorder %s18, 1
      %s239 = scalar_select %p238, %s18, 1
      %p240 = scmp.lt.s32.totalorder %s19, 3
      %s241 = scalar_select %p240, %s19, 3
      %s242 = smul.addr %s241, 4
      %s243 = smul.addr %s239, 16
      %s244 = sadd.s32 %s242, %s243
      %s245 = smul.addr %s244, 8
      %s246 = scalar_lea.vmem %s3, %s245
      %v247 = vld [vmem:[%s227] sm:$0xff]
      %v248 = vld [vmem:[%s227 + $0x8] sm:$0xff]
      %v249 = vld [vmem:[%s227 + $0x10] sm:$0xff]
      %v250 = vld [vmem:[%s227 + $0x18] sm:$0xff]
      %v251 = vld [vmem:[%s227 + $0x20] sm:$0xff]
      %v252 = vld [vmem:[%s227 + $0x28] sm:$0xff]
      %v253 = vld [vmem:[%s227 + $0x30] sm:$0xff]
      %v254 = vld [vmem:[%s227 + $0x38] sm:$0xff]
      %v255 = vld [vmem:[%s232] sm:$0xff]
      %v256 = vld [vmem:[%s232 + $0x8] sm:$0xff]
      %v257 = vld [vmem:[%s232 + $0x10] sm:$0xff]
      %v258 = vld [vmem:[%s232 + $0x18] sm:$0xff]
      %v259 = vld [vmem:[%s232 + $0x20] sm:$0xff]
      %v260 = vld [vmem:[%s232 + $0x28] sm:$0xff]
      %v261 = vld [vmem:[%s232 + $0x30] sm:$0xff]
      %v262 = vld [vmem:[%s232 + $0x38] sm:$0xff]
      %v263 = vld [vmem:[%s232 + $0x40] sm:$0xff]
      %v264 = vld [vmem:[%s232 + $0x48] sm:$0xff]
      %v265 = vld [vmem:[%s232 + $0x50] sm:$0xff]
      %v266 = vld [vmem:[%s232 + $0x58] sm:$0xff]
      %v267 = vld [vmem:[%s232 + $0x60] sm:$0xff]
      %v268 = vld [vmem:[%s232 + $0x68] sm:$0xff]
      %v269 = vld [vmem:[%s232 + $0x70] sm:$0xff]
      %v270 = vld [vmem:[%s232 + $0x78] sm:$0xff]
      %v271 = vld [vmem:[%s232 + $0x80] sm:$0xff]
      %v272 = vld [vmem:[%s232 + $0x88] sm:$0xff]
      %v273 = vld [vmem:[%s232 + $0x90] sm:$0xff]
      %v274 = vld [vmem:[%s232 + $0x98] sm:$0xff]
      %v275 = vld [vmem:[%s232 + $0xa0] sm:$0xff]
      %v276 = vld [vmem:[%s232 + $0xa8] sm:$0xff]
      %v277 = vld [vmem:[%s232 + $0xb0] sm:$0xff]
      %v278 = vld [vmem:[%s232 + $0xb8] sm:$0xff]
      %v279 = vld [vmem:[%s232 + $0xc0] sm:$0xff]
      %v280 = vld [vmem:[%s232 + $0xc8] sm:$0xff]
      %v281 = vld [vmem:[%s232 + $0xd0] sm:$0xff]
      %v282 = vld [vmem:[%s232 + $0xd8] sm:$0xff]
      %v283 = vld [vmem:[%s232 + $0xe0] sm:$0xff]
      %v284 = vld [vmem:[%s232 + $0xe8] sm:$0xff]
      %v285 = vld [vmem:[%s232 + $0xf0] sm:$0xff]
      %v286 = vld [vmem:[%s232 + $0xf8] sm:$0xff]
      %v287 = vld [vmem:[%s232 + $0x100] sm:$0xff]
      %v288 = vld [vmem:[%s232 + $0x108] sm:$0xff]
      %v289 = vld [vmem:[%s232 + $0x110] sm:$0xff]
      %v290 = vld [vmem:[%s232 + $0x118] sm:$0xff]
      %v291 = vld [vmem:[%s232 + $0x120] sm:$0xff]
      %v292 = vld [vmem:[%s232 + $0x128] sm:$0xff]
      %v293 = vld [vmem:[%s232 + $0x130] sm:$0xff]
      %v294 = vld [vmem:[%s232 + $0x138] sm:$0xff]
      %v295 = vld [vmem:[%s232 + $0x140] sm:$0xff]
      %v296 = vld [vmem:[%s232 + $0x148] sm:$0xff]
      %v297 = vld [vmem:[%s232 + $0x150] sm:$0xff]
      %v298 = vld [vmem:[%s232 + $0x158] sm:$0xff]
      %v299 = vld [vmem:[%s232 + $0x160] sm:$0xff]
      %v300 = vld [vmem:[%s232 + $0x168] sm:$0xff]
      %v301 = vld [vmem:[%s232 + $0x170] sm:$0xff]
      %v302 = vld [vmem:[%s232 + $0x178] sm:$0xff]
      %v303 = vld [vmem:[%s232 + $0x180] sm:$0xff]
      %v304 = vld [vmem:[%s232 + $0x188] sm:$0xff]
      %v305 = vld [vmem:[%s232 + $0x190] sm:$0xff]
      %v306 = vld [vmem:[%s232 + $0x198] sm:$0xff]
      %v307 = vld [vmem:[%s232 + $0x1a0] sm:$0xff]
      %v308 = vld [vmem:[%s232 + $0x1a8] sm:$0xff]
      %v309 = vld [vmem:[%s232 + $0x1b0] sm:$0xff]
      %v310 = vld [vmem:[%s232 + $0x1b8] sm:$0xff]
      %v311 = vld [vmem:[%s232 + $0x1c0] sm:$0xff]
      %v312 = vld [vmem:[%s232 + $0x1c8] sm:$0xff]
      %v313 = vld [vmem:[%s232 + $0x1d0] sm:$0xff]
      %v314 = vld [vmem:[%s232 + $0x1d8] sm:$0xff]
      %v315 = vld [vmem:[%s232 + $0x1e0] sm:$0xff]
      %v316 = vld [vmem:[%s232 + $0x1e8] sm:$0xff]
      %v317 = vld [vmem:[%s232 + $0x1f0] sm:$0xff]
      %v318 = vld [vmem:[%s232 + $0x1f8] sm:$0xff]
      %v319 = vld [vmem:[%s232 + $0x200] sm:$0xff]
      %v320 = vld [vmem:[%s232 + $0x208] sm:$0xff]
      %v321 = vld [vmem:[%s232 + $0x210] sm:$0xff]
      %v322 = vld [vmem:[%s232 + $0x218] sm:$0xff]
      %v323 = vld [vmem:[%s232 + $0x220] sm:$0xff]
      %v324 = vld [vmem:[%s232 + $0x228] sm:$0xff]
      %v325 = vld [vmem:[%s232 + $0x230] sm:$0xff]
      %v326 = vld [vmem:[%s232 + $0x238] sm:$0xff]
      %v327 = vld [vmem:[%s232 + $0x240] sm:$0xff]
      %v328 = vld [vmem:[%s232 + $0x248] sm:$0xff]
      %v329 = vld [vmem:[%s232 + $0x250] sm:$0xff]
      %v330 = vld [vmem:[%s232 + $0x258] sm:$0xff]
      %v331 = vld [vmem:[%s232 + $0x260] sm:$0xff]
      %v332 = vld [vmem:[%s232 + $0x268] sm:$0xff]
      %v333 = vld [vmem:[%s232 + $0x270] sm:$0xff]
      %v334 = vld [vmem:[%s232 + $0x278] sm:$0xff]
      %v335 = vld [vmem:[%s232 + $0x280] sm:$0xff]
      %v336 = vld [vmem:[%s232 + $0x288] sm:$0xff]
      %v337 = vld [vmem:[%s232 + $0x290] sm:$0xff]
      %v338 = vld [vmem:[%s232 + $0x298] sm:$0xff]
      %v339 = vld [vmem:[%s232 + $0x2a0] sm:$0xff]
      %v340 = vld [vmem:[%s232 + $0x2a8] sm:$0xff]
      %v341 = vld [vmem:[%s232 + $0x2b0] sm:$0xff]
      %v342 = vld [vmem:[%s232 + $0x2b8] sm:$0xff]
      %v343 = vld [vmem:[%s232 + $0x2c0] sm:$0xff]
      %v344 = vld [vmem:[%s232 + $0x2c8] sm:$0xff]
      %v345 = vld [vmem:[%s232 + $0x2d0] sm:$0xff]
      %v346 = vld [vmem:[%s232 + $0x2d8] sm:$0xff]
      %v347 = vld [vmem:[%s232 + $0x2e0] sm:$0xff]
      %v348 = vld [vmem:[%s232 + $0x2e8] sm:$0xff]
      %v349 = vld [vmem:[%s232 + $0x2f0] sm:$0xff]
      %v350 = vld [vmem:[%s232 + $0x2f8] sm:$0xff]
      %v351 = vld [vmem:[%s232 + $0x300] sm:$0xff]
      %v352 = vld [vmem:[%s232 + $0x308] sm:$0xff]
      %v353 = vld [vmem:[%s232 + $0x310] sm:$0xff]
      %v354 = vld [vmem:[%s232 + $0x318] sm:$0xff]
      %v355 = vld [vmem:[%s232 + $0x320] sm:$0xff]
      %v356 = vld [vmem:[%s232 + $0x328] sm:$0xff]
      %v357 = vld [vmem:[%s232 + $0x330] sm:$0xff]
      %v358 = vld [vmem:[%s232 + $0x338] sm:$0xff]
      %v359 = vld [vmem:[%s232 + $0x340] sm:$0xff]
      %v360 = vld [vmem:[%s232 + $0x348] sm:$0xff]
      %v361 = vld [vmem:[%s232 + $0x350] sm:$0xff]
      %v362 = vld [vmem:[%s232 + $0x358] sm:$0xff]
      %v363 = vld [vmem:[%s232 + $0x360] sm:$0xff]
      %v364 = vld [vmem:[%s232 + $0x368] sm:$0xff]
      %v365 = vld [vmem:[%s232 + $0x370] sm:$0xff]
      %v366 = vld [vmem:[%s232 + $0x378] sm:$0xff]
      %v367 = vld [vmem:[%s232 + $0x380] sm:$0xff]
      %v368 = vld [vmem:[%s232 + $0x388] sm:$0xff]
      %v369 = vld [vmem:[%s232 + $0x390] sm:$0xff]
      %v370 = vld [vmem:[%s232 + $0x398] sm:$0xff]
      %v371 = vld [vmem:[%s232 + $0x3a0] sm:$0xff]
      %v372 = vld [vmem:[%s232 + $0x3a8] sm:$0xff]
      %v373 = vld [vmem:[%s232 + $0x3b0] sm:$0xff]
      %v374 = vld [vmem:[%s232 + $0x3b8] sm:$0xff]
      %v375 = vld [vmem:[%s232 + $0x3c0] sm:$0xff]
      %v376 = vld [vmem:[%s232 + $0x3c8] sm:$0xff]
      %v377 = vld [vmem:[%s232 + $0x3d0] sm:$0xff]
      %v378 = vld [vmem:[%s232 + $0x3d8] sm:$0xff]
      %v379 = vld [vmem:[%s232 + $0x3e0] sm:$0xff]
      %v380 = vld [vmem:[%s232 + $0x3e8] sm:$0xff]
      %v381 = vld [vmem:[%s232 + $0x3f0] sm:$0xff]
      %v382 = vld [vmem:[%s232 + $0x3f8] sm:$0xff]
      %v383 = vld [vmem:[%s237] sm:$0xff]
      %v384 = vld [vmem:[%s237 + $0x8] sm:$0xff]
      %v385 = vld [vmem:[%s237 + $0x10] sm:$0xff]
      %v386 = vld [vmem:[%s237 + $0x18] sm:$0xff]
      %v395 = vunpack.c.l.b16 %v247
      %v396 = vunpack.c.h.b16 %v247
      %v397 = vunpack.c.l.b16 %v248
      %v398 = vunpack.c.h.b16 %v248
      %v399 = vunpack.c.l.b16 %v249
      %v400 = vunpack.c.h.b16 %v249
      %v401 = vunpack.c.l.b16 %v250
      %v402 = vunpack.c.h.b16 %v250
      %v403 = vunpack.c.l.b16 %v251
      %v404 = vunpack.c.h.b16 %v251
      %v405 = vunpack.c.l.b16 %v252
      %v406 = vunpack.c.h.b16 %v252
      %v407 = vunpack.c.l.b16 %v253
      %v408 = vunpack.c.h.b16 %v253
      %v409 = vunpack.c.l.b16 %v254
      %v410 = vunpack.c.h.b16 %v254
      %v411 = vpack.c.b16 %v403, %v395
      %v412 = vpack.c.b16 %v404, %v396
      %v413 = vpack.c.b16 %v405, %v397
      %v414 = vpack.c.b16 %v406, %v398
      %v415 = vpack.c.b16 %v407, %v399
      %v416 = vpack.c.b16 %v408, %v400
      %v417 = vpack.c.b16 %v409, %v401
      %v418 = vpack.c.b16 %v410, %v402
      %v555 = vunpack.c.l.b16 %v255
      %v556 = vunpack.c.h.b16 %v255
      %v557 = vunpack.c.l.b16 %v256
      %v558 = vunpack.c.h.b16 %v256
      %v559 = vunpack.c.l.b16 %v257
      %v560 = vunpack.c.h.b16 %v257
      %v561 = vunpack.c.l.b16 %v258
      %v562 = vunpack.c.h.b16 %v258
      %v563 = vunpack.c.l.b16 %v259
      %v564 = vunpack.c.h.b16 %v259
      %v565 = vunpack.c.l.b16 %v260
      %v566 = vunpack.c.h.b16 %v260
      %v567 = vunpack.c.l.b16 %v261
      %v568 = vunpack.c.h.b16 %v261
      %v569 = vunpack.c.l.b16 %v262
      %v570 = vunpack.c.h.b16 %v262
      %v571 = vunpack.c.l.b16 %v263
      %v572 = vunpack.c.h.b16 %v263
      %v573 = vunpack.c.l.b16 %v264
      %v574 = vunpack.c.h.b16 %v264
      %v575 = vunpack.c.l.b16 %v265
      %v576 = vunpack.c.h.b16 %v265
      %v577 = vunpack.c.l.b16 %v266
      %v578 = vunpack.c.h.b16 %v266
      %v579 = vunpack.c.l.b16 %v267
      %v580 = vunpack.c.h.b16 %v267
      %v581 = vunpack.c.l.b16 %v268
      %v582 = vunpack.c.h.b16 %v268
      %v583 = vunpack.c.l.b16 %v269
      %v584 = vunpack.c.h.b16 %v269
      %v585 = vunpack.c.l.b16 %v270
      %v586 = vunpack.c.h.b16 %v270
      %v587 = vunpack.c.l.b16 %v271
      %v588 = vunpack.c.h.b16 %v271
      %v589 = vunpack.c.l.b16 %v272
      %v590 = vunpack.c.h.b16 %v272
      %v591 = vunpack.c.l.b16 %v273
      %v592 = vunpack.c.h.b16 %v273
      %v593 = vunpack.c.l.b16 %v274
      %v594 = vunpack.c.h.b16 %v274
      %v595 = vunpack.c.l.b16 %v275
      %v596 = vunpack.c.h.b16 %v275
      %v597 = vunpack.c.l.b16 %v276
      %v598 = vunpack.c.h.b16 %v276
      %v599 = vunpack.c.l.b16 %v277
      %v600 = vunpack.c.h.b16 %v277
      %v601 = vunpack.c.l.b16 %v278
      %v602 = vunpack.c.h.b16 %v278
      %v603 = vunpack.c.l.b16 %v279
      %v604 = vunpack.c.h.b16 %v279
      %v605 = vunpack.c.l.b16 %v280
      %v606 = vunpack.c.h.b16 %v280
      %v607 = vunpack.c.l.b16 %v281
      %v608 = vunpack.c.h.b16 %v281
      %v609 = vunpack.c.l.b16 %v282
      %v610 = vunpack.c.h.b16 %v282
      %v611 = vunpack.c.l.b16 %v283
      %v612 = vunpack.c.h.b16 %v283
      %v613 = vunpack.c.l.b16 %v284
      %v614 = vunpack.c.h.b16 %v284
      %v615 = vunpack.c.l.b16 %v285
      %v616 = vunpack.c.h.b16 %v285
      %v617 = vunpack.c.l.b16 %v286
      %v618 = vunpack.c.h.b16 %v286
      %v619 = vunpack.c.l.b16 %v287
      %v620 = vunpack.c.h.b16 %v287
      %v621 = vunpack.c.l.b16 %v288
      %v622 = vunpack.c.h.b16 %v288
      %v623 = vunpack.c.l.b16 %v289
      %v624 = vunpack.c.h.b16 %v289
      %v625 = vunpack.c.l.b16 %v290
      %v626 = vunpack.c.h.b16 %v290
      %v627 = vunpack.c.l.b16 %v291
      %v628 = vunpack.c.h.b16 %v291
      %v629 = vunpack.c.l.b16 %v292
      %v630 = vunpack.c.h.b16 %v292
      %v631 = vunpack.c.l.b16 %v293
      %v632 = vunpack.c.h.b16 %v293
      %v633 = vunpack.c.l.b16 %v294
      %v634 = vunpack.c.h.b16 %v294
      %v635 = vunpack.c.l.b16 %v295
      %v636 = vunpack.c.h.b16 %v295
      %v637 = vunpack.c.l.b16 %v296
      %v638 = vunpack.c.h.b16 %v296
      %v639 = vunpack.c.l.b16 %v297
      %v640 = vunpack.c.h.b16 %v297
      %v641 = vunpack.c.l.b16 %v298
      %v642 = vunpack.c.h.b16 %v298
      %v643 = vunpack.c.l.b16 %v299
      %v644 = vunpack.c.h.b16 %v299
      %v645 = vunpack.c.l.b16 %v300
      %v646 = vunpack.c.h.b16 %v300
      %v647 = vunpack.c.l.b16 %v301
      %v648 = vunpack.c.h.b16 %v301
      %v649 = vunpack.c.l.b16 %v302
      %v650 = vunpack.c.h.b16 %v302
      %v651 = vunpack.c.l.b16 %v303
      %v652 = vunpack.c.h.b16 %v303
      %v653 = vunpack.c.l.b16 %v304
      %v654 = vunpack.c.h.b16 %v304
      %v655 = vunpack.c.l.b16 %v305
      %v656 = vunpack.c.h.b16 %v305
      %v657 = vunpack.c.l.b16 %v306
      %v658 = vunpack.c.h.b16 %v306
      %v659 = vunpack.c.l.b16 %v307
      %v660 = vunpack.c.h.b16 %v307
      %v661 = vunpack.c.l.b16 %v308
      %v662 = vunpack.c.h.b16 %v308
      %v663 = vunpack.c.l.b16 %v309
      %v664 = vunpack.c.h.b16 %v309
      %v665 = vunpack.c.l.b16 %v310
      %v666 = vunpack.c.h.b16 %v310
      %v667 = vunpack.c.l.b16 %v311
      %v668 = vunpack.c.h.b16 %v311
      %v669 = vunpack.c.l.b16 %v312
      %v670 = vunpack.c.h.b16 %v312
      %v671 = vunpack.c.l.b16 %v313
      %v672 = vunpack.c.h.b16 %v313
      %v673 = vunpack.c.l.b16 %v314
      %v674 = vunpack.c.h.b16 %v314
      %v675 = vunpack.c.l.b16 %v315
      %v676 = vunpack.c.h.b16 %v315
      %v677 = vunpack.c.l.b16 %v316
      %v678 = vunpack.c.h.b16 %v316
      %v679 = vunpack.c.l.b16 %v317
      %v680 = vunpack.c.h.b16 %v317
      %v681 = vunpack.c.l.b16 %v318
      %v682 = vunpack.c.h.b16 %v318
      %v683 = vunpack.c.l.b16 %v319
      %v684 = vunpack.c.h.b16 %v319
      %v685 = vunpack.c.l.b16 %v320
      %v686 = vunpack.c.h.b16 %v320
      %v687 = vunpack.c.l.b16 %v321
      %v688 = vunpack.c.h.b16 %v321
      %v689 = vunpack.c.l.b16 %v322
      %v690 = vunpack.c.h.b16 %v322
      %v691 = vunpack.c.l.b16 %v323
      %v692 = vunpack.c.h.b16 %v323
      %v693 = vunpack.c.l.b16 %v324
      %v694 = vunpack.c.h.b16 %v324
      %v695 = vunpack.c.l.b16 %v325
      %v696 = vunpack.c.h.b16 %v325
      %v697 = vunpack.c.l.b16 %v326
      %v698 = vunpack.c.h.b16 %v326
      %v699 = vunpack.c.l.b16 %v327
      %v700 = vunpack.c.h.b16 %v327
      %v701 = vunpack.c.l.b16 %v328
      %v702 = vunpack.c.h.b16 %v328
      %v703 = vunpack.c.l.b16 %v329
      %v704 = vunpack.c.h.b16 %v329
      %v705 = vunpack.c.l.b16 %v330
      %v706 = vunpack.c.h.b16 %v330
      %v707 = vunpack.c.l.b16 %v331
      %v708 = vunpack.c.h.b16 %v331
      %v709 = vunpack.c.l.b16 %v332
      %v710 = vunpack.c.h.b16 %v332
      %v711 = vunpack.c.l.b16 %v333
      %v712 = vunpack.c.h.b16 %v333
      %v713 = vunpack.c.l.b16 %v334
      %v714 = vunpack.c.h.b16 %v334
      %v715 = vunpack.c.l.b16 %v335
      %v716 = vunpack.c.h.b16 %v335
      %v717 = vunpack.c.l.b16 %v336
      %v718 = vunpack.c.h.b16 %v336
      %v719 = vunpack.c.l.b16 %v337
      %v720 = vunpack.c.h.b16 %v337
      %v721 = vunpack.c.l.b16 %v338
      %v722 = vunpack.c.h.b16 %v338
      %v723 = vunpack.c.l.b16 %v339
      %v724 = vunpack.c.h.b16 %v339
      %v725 = vunpack.c.l.b16 %v340
      %v726 = vunpack.c.h.b16 %v340
      %v727 = vunpack.c.l.b16 %v341
      %v728 = vunpack.c.h.b16 %v341
      %v729 = vunpack.c.l.b16 %v342
      %v730 = vunpack.c.h.b16 %v342
      %v731 = vunpack.c.l.b16 %v343
      %v732 = vunpack.c.h.b16 %v343
      %v733 = vunpack.c.l.b16 %v344
      %v734 = vunpack.c.h.b16 %v344
      %v735 = vunpack.c.l.b16 %v345
      %v736 = vunpack.c.h.b16 %v345
      %v737 = vunpack.c.l.b16 %v346
      %v738 = vunpack.c.h.b16 %v346
      %v739 = vunpack.c.l.b16 %v347
      %v740 = vunpack.c.h.b16 %v347
      %v741 = vunpack.c.l.b16 %v348
      %v742 = vunpack.c.h.b16 %v348
      %v743 = vunpack.c.l.b16 %v349
      %v744 = vunpack.c.h.b16 %v349
      %v745 = vunpack.c.l.b16 %v350
      %v746 = vunpack.c.h.b16 %v350
      %v747 = vunpack.c.l.b16 %v351
      %v748 = vunpack.c.h.b16 %v351
      %v749 = vunpack.c.l.b16 %v352
      %v750 = vunpack.c.h.b16 %v352
      %v751 = vunpack.c.l.b16 %v353
      %v752 = vunpack.c.h.b16 %v353
      %v753 = vunpack.c.l.b16 %v354
      %v754 = vunpack.c.h.b16 %v354
      %v755 = vunpack.c.l.b16 %v355
      %v756 = vunpack.c.h.b16 %v355
      %v757 = vunpack.c.l.b16 %v356
      %v758 = vunpack.c.h.b16 %v356
      %v759 = vunpack.c.l.b16 %v357
      %v760 = vunpack.c.h.b16 %v357
      %v761 = vunpack.c.l.b16 %v358
      %v762 = vunpack.c.h.b16 %v358
      %v763 = vunpack.c.l.b16 %v359
      %v764 = vunpack.c.h.b16 %v359
      %v765 = vunpack.c.l.b16 %v360
      %v766 = vunpack.c.h.b16 %v360
      %v767 = vunpack.c.l.b16 %v361
      %v768 = vunpack.c.h.b16 %v361
      %v769 = vunpack.c.l.b16 %v362
      %v770 = vunpack.c.h.b16 %v362
      %v771 = vunpack.c.l.b16 %v363
      %v772 = vunpack.c.h.b16 %v363
      %v773 = vunpack.c.l.b16 %v364
      %v774 = vunpack.c.h.b16 %v364
      %v775 = vunpack.c.l.b16 %v365
      %v776 = vunpack.c.h.b16 %v365
      %v777 = vunpack.c.l.b16 %v366
      %v778 = vunpack.c.h.b16 %v366
      %v779 = vunpack.c.l.b16 %v367
      %v780 = vunpack.c.h.b16 %v367
      %v781 = vunpack.c.l.b16 %v368
      %v782 = vunpack.c.h.b16 %v368
      %v783 = vunpack.c.l.b16 %v369
      %v784 = vunpack.c.h.b16 %v369
      %v785 = vunpack.c.l.b16 %v370
      %v786 = vunpack.c.h.b16 %v370
      %v787 = vunpack.c.l.b16 %v371
      %v788 = vunpack.c.h.b16 %v371
      %v789 = vunpack.c.l.b16 %v372
      %v790 = vunpack.c.h.b16 %v372
      %v791 = vunpack.c.l.b16 %v373
      %v792 = vunpack.c.h.b16 %v373
      %v793 = vunpack.c.l.b16 %v374
      %v794 = vunpack.c.h.b16 %v374
      %v795 = vunpack.c.l.b16 %v375
      %v796 = vunpack.c.h.b16 %v375
      %v797 = vunpack.c.l.b16 %v376
      %v798 = vunpack.c.h.b16 %v376
      %v799 = vunpack.c.l.b16 %v377
      %v800 = vunpack.c.h.b16 %v377
      %v801 = vunpack.c.l.b16 %v378
      %v802 = vunpack.c.h.b16 %v378
      %v803 = vunpack.c.l.b16 %v379
      %v804 = vunpack.c.h.b16 %v379
      %v805 = vunpack.c.l.b16 %v380
      %v806 = vunpack.c.h.b16 %v380
      %v807 = vunpack.c.l.b16 %v381
      %v808 = vunpack.c.h.b16 %v381
      %v809 = vunpack.c.l.b16 %v382
      %v810 = vunpack.c.h.b16 %v382
      %v811 = vpack.c.b16 %v557, %v555
      %v812 = vpack.c.b16 %v558, %v556
      %v813 = vpack.c.b16 %v561, %v559
      %v814 = vpack.c.b16 %v562, %v560
      %v815 = vpack.c.b16 %v565, %v563
      %v816 = vpack.c.b16 %v566, %v564
      %v817 = vpack.c.b16 %v569, %v567
      %v818 = vpack.c.b16 %v570, %v568
      %v819 = vpack.c.b16 %v573, %v571
      %v820 = vpack.c.b16 %v574, %v572
      %v821 = vpack.c.b16 %v577, %v575
      %v822 = vpack.c.b16 %v578, %v576
      %v823 = vpack.c.b16 %v581, %v579
      %v824 = vpack.c.b16 %v582, %v580
      %v825 = vpack.c.b16 %v585, %v583
      %v826 = vpack.c.b16 %v586, %v584
      %v827 = vpack.c.b16 %v589, %v587
      %v828 = vpack.c.b16 %v590, %v588
      %v829 = vpack.c.b16 %v593, %v591
      %v830 = vpack.c.b16 %v594, %v592
      %v831 = vpack.c.b16 %v597, %v595
      %v832 = vpack.c.b16 %v598, %v596
      %v833 = vpack.c.b16 %v601, %v599
      %v834 = vpack.c.b16 %v602, %v600
      %v835 = vpack.c.b16 %v605, %v603
      %v836 = vpack.c.b16 %v606, %v604
      %v837 = vpack.c.b16 %v609, %v607
      %v838 = vpack.c.b16 %v610, %v608
      %v839 = vpack.c.b16 %v613, %v611
      %v840 = vpack.c.b16 %v614, %v612
      %v841 = vpack.c.b16 %v617, %v615
      %v842 = vpack.c.b16 %v618, %v616
      %v843 = vpack.c.b16 %v621, %v619
      %v844 = vpack.c.b16 %v622, %v620
      %v845 = vpack.c.b16 %v625, %v623
      %v846 = vpack.c.b16 %v626, %v624
      %v847 = vpack.c.b16 %v629, %v627
      %v848 = vpack.c.b16 %v630, %v628
      %v849 = vpack.c.b16 %v633, %v631
      %v850 = vpack.c.b16 %v634, %v632
      %v851 = vpack.c.b16 %v637, %v635
      %v852 = vpack.c.b16 %v638, %v636
      %v853 = vpack.c.b16 %v641, %v639
      %v854 = vpack.c.b16 %v642, %v640
      %v855 = vpack.c.b16 %v645, %v643
      %v856 = vpack.c.b16 %v646, %v644
      %v857 = vpack.c.b16 %v649, %v647
      %v858 = vpack.c.b16 %v650, %v648
      %v859 = vpack.c.b16 %v653, %v651
      %v860 = vpack.c.b16 %v654, %v652
      %v861 = vpack.c.b16 %v657, %v655
      %v862 = vpack.c.b16 %v658, %v656
      %v863 = vpack.c.b16 %v661, %v659
      %v864 = vpack.c.b16 %v662, %v660
      %v865 = vpack.c.b16 %v665, %v663
      %v866 = vpack.c.b16 %v666, %v664
      %v867 = vpack.c.b16 %v669, %v667
      %v868 = vpack.c.b16 %v670, %v668
      %v869 = vpack.c.b16 %v673, %v671
      %v870 = vpack.c.b16 %v674, %v672
      %v871 = vpack.c.b16 %v677, %v675
      %v872 = vpack.c.b16 %v678, %v676
      %v873 = vpack.c.b16 %v681, %v679
      %v874 = vpack.c.b16 %v682, %v680
      %v875 = vpack.c.b16 %v685, %v683
      %v876 = vpack.c.b16 %v686, %v684
      %v877 = vpack.c.b16 %v689, %v687
      %v878 = vpack.c.b16 %v690, %v688
      %v879 = vpack.c.b16 %v693, %v691
      %v880 = vpack.c.b16 %v694, %v692
      %v881 = vpack.c.b16 %v697, %v695
      %v882 = vpack.c.b16 %v698, %v696
      %v883 = vpack.c.b16 %v701, %v699
      %v884 = vpack.c.b16 %v702, %v700
      %v885 = vpack.c.b16 %v705, %v703
      %v886 = vpack.c.b16 %v706, %v704
      %v887 = vpack.c.b16 %v709, %v707
      %v888 = vpack.c.b16 %v710, %v708
      %v889 = vpack.c.b16 %v713, %v711
      %v890 = vpack.c.b16 %v714, %v712
      %v891 = vpack.c.b16 %v717, %v715
      %v892 = vpack.c.b16 %v718, %v716
      %v893 = vpack.c.b16 %v721, %v719
      %v894 = vpack.c.b16 %v722, %v720
      %v895 = vpack.c.b16 %v725, %v723
      %v896 = vpack.c.b16 %v726, %v724
      %v897 = vpack.c.b16 %v729, %v727
      %v898 = vpack.c.b16 %v730, %v728
      %v899 = vpack.c.b16 %v733, %v731
      %v900 = vpack.c.b16 %v734, %v732
      %v901 = vpack.c.b16 %v737, %v735
      %v902 = vpack.c.b16 %v738, %v736
      %v903 = vpack.c.b16 %v741, %v739
      %v904 = vpack.c.b16 %v742, %v740
      %v905 = vpack.c.b16 %v745, %v743
      %v906 = vpack.c.b16 %v746, %v744
      %v907 = vpack.c.b16 %v749, %v747
      %v908 = vpack.c.b16 %v750, %v748
      %v909 = vpack.c.b16 %v753, %v751
      %v910 = vpack.c.b16 %v754, %v752
      %v911 = vpack.c.b16 %v757, %v755
      %v912 = vpack.c.b16 %v758, %v756
      %v913 = vpack.c.b16 %v761, %v759
      %v914 = vpack.c.b16 %v762, %v760
      %v915 = vpack.c.b16 %v765, %v763
      %v916 = vpack.c.b16 %v766, %v764
      %v917 = vpack.c.b16 %v769, %v767
      %v918 = vpack.c.b16 %v770, %v768
      %v919 = vpack.c.b16 %v773, %v771
      %v920 = vpack.c.b16 %v774, %v772
      %v921 = vpack.c.b16 %v777, %v775
      %v922 = vpack.c.b16 %v778, %v776
      %v923 = vpack.c.b16 %v781, %v779
      %v924 = vpack.c.b16 %v782, %v780
      %v925 = vpack.c.b16 %v785, %v783
      %v926 = vpack.c.b16 %v786, %v784
      %v927 = vpack.c.b16 %v789, %v787
      %v928 = vpack.c.b16 %v790, %v788
      %v929 = vpack.c.b16 %v793, %v791
      %v930 = vpack.c.b16 %v794, %v792
      %v931 = vpack.c.b16 %v797, %v795
      %v932 = vpack.c.b16 %v798, %v796
      %v933 = vpack.c.b16 %v801, %v799
      %v934 = vpack.c.b16 %v802, %v800
      %v935 = vpack.c.b16 %v805, %v803
      %v936 = vpack.c.b16 %v806, %v804
      %v937 = vpack.c.b16 %v809, %v807
      %v938 = vpack.c.b16 %v810, %v808
      %1067 = vmatprep.subr.bf16.mxu0 %v812
      %1068 = vmatpush1.bf16.msra.mxu0 %v811
      %1069 = vmatprep.subr.bf16.mxu0 %v814
      %1070 = vmatpush1.bf16.msra.mxu0 %v813
      %1071 = vmatprep.subr.bf16.mxu0 %v816
      %1072 = vmatpush1.bf16.msra.mxu0 %v815
      %1073 = vmatprep.subr.bf16.mxu0 %v818
      %1074 = vmatpush1.bf16.msra.mxu0 %v817
      %1075 = vmatprep.subr.bf16.mxu0 %v820
      %1076 = vmatpush1.bf16.msra.mxu0 %v819
      %1077 = vmatprep.subr.bf16.mxu0 %v822
      %1078 = vmatpush1.bf16.msra.mxu0 %v821
      %1079 = vmatprep.subr.bf16.mxu0 %v824
      %1080 = vmatpush1.bf16.msra.mxu0 %v823
      %1081 = vmatprep.subr.bf16.mxu0 %v826
      %1082 = vmatpush1.bf16.msra.mxu0 %v825
      %1083 = vmatprep.subr.bf16.mxu0 %v828
      %1084 = vmatpush1.bf16.msra.mxu0 %v827
      %1085 = vmatprep.subr.bf16.mxu0 %v830
      %1086 = vmatpush1.bf16.msra.mxu0 %v829
      %1087 = vmatprep.subr.bf16.mxu0 %v832
      %1088 = vmatpush1.bf16.msra.mxu0 %v831
      %1089 = vmatprep.subr.bf16.mxu0 %v834
      %1090 = vmatpush1.bf16.msra.mxu0 %v833
      %1091 = vmatprep.subr.bf16.mxu0 %v836
      %1092 = vmatpush1.bf16.msra.mxu0 %v835
      %1093 = vmatprep.subr.bf16.mxu0 %v838
      %1094 = vmatpush1.bf16.msra.mxu0 %v837
      %1095 = vmatprep.subr.bf16.mxu0 %v840
      %1096 = vmatpush1.bf16.msra.mxu0 %v839
      %1097 = vmatprep.subr.bf16.mxu0 %v842
      %1098 = vmatpush1.bf16.msra.mxu0 %v841
      %1099 = vmatprep.mubr.bf16.mxu0 %v412
      %1100 = vmatmul.mubr.bf16.gmra.mrb[0].mxu0 %v411
      %v1101 = vpop.f32.mrb[0].mxu0
      %v1102 = vadd.f32 %v383, %v1101
      %v1103 = vpop.f32.mrb[0].mxu0
      %v1104 = vadd.f32 %v384, %v1103
      %v1105 = vpop.f32.mrb[0].mxu0
      %v1106 = vadd.f32 %v385, %v1105
      %v1107 = vpop.f32.mrb[0].mxu0
      %v1108 = vadd.f32 %v386, %v1107
      %1109 = vdwg.mxu0
      %1110 = vmatprep.subr.bf16.mxu0 %v844
      %1111 = vmatpush1.bf16.msra.mxu0 %v843
      %1112 = vmatprep.subr.bf16.mxu0 %v846
      %1113 = vmatpush1.bf16.msra.mxu0 %v845
      %1114 = vmatprep.subr.bf16.mxu0 %v848
      %1115 = vmatpush1.bf16.msra.mxu0 %v847
      %1116 = vmatprep.subr.bf16.mxu0 %v850
      %1117 = vmatpush1.bf16.msra.mxu0 %v849
      %1118 = vmatprep.subr.bf16.mxu0 %v852
      %1119 = vmatpush1.bf16.msra.mxu0 %v851
      %1120 = vmatprep.subr.bf16.mxu0 %v854
      %1121 = vmatpush1.bf16.msra.mxu0 %v853
      %1122 = vmatprep.subr.bf16.mxu0 %v856
      %1123 = vmatpush1.bf16.msra.mxu0 %v855
      %1124 = vmatprep.subr.bf16.mxu0 %v858
      %1125 = vmatpush1.bf16.msra.mxu0 %v857
      %1126 = vmatprep.subr.bf16.mxu0 %v860
      %1127 = vmatpush1.bf16.msra.mxu0 %v859
      %1128 = vmatprep.subr.bf16.mxu0 %v862
      %1129 = vmatpush1.bf16.msra.mxu0 %v861
      %1130 = vmatprep.subr.bf16.mxu0 %v864
      %1131 = vmatpush1.bf16.msra.mxu0 %v863
      %1132 = vmatprep.subr.bf16.mxu0 %v866
      %1133 = vmatpush1.bf16.msra.mxu0 %v865
      %1134 = vmatprep.subr.bf16.mxu0 %v868
      %1135 = vmatpush1.bf16.msra.mxu0 %v867
      %1136 = vmatprep.subr.bf16.mxu0 %v870
      %1137 = vmatpush1.bf16.msra.mxu0 %v869
      %1138 = vmatprep.subr.bf16.mxu0 %v872
      %1139 = vmatpush1.bf16.msra.mxu0 %v871
      %1140 = vmatprep.subr.bf16.mxu0 %v874
      %1141 = vmatpush1.bf16.msra.mxu0 %v873
      %1142 = vmatprep.mubr.bf16.mxu0 %v414
      %1143 = vmatmul.mubr.bf16.gmra.mrb[0].mxu0 %v413
      %v1144 = vpop.f32.mrb[0].mxu0
      %v1145 = vadd.f32 %v1102, %v1144
      %v1146 = vpop.f32.mrb[0].mxu0
      %v1147 = vadd.f32 %v1104, %v1146
      %v1148 = vpop.f32.mrb[0].mxu0
      %v1149 = vadd.f32 %v1106, %v1148
      %v1150 = vpop.f32.mrb[0].mxu0
      %v1151 = vadd.f32 %v1108, %v1150
      %1152 = vdwg.mxu0
      %1153 = vmatprep.subr.bf16.mxu0 %v876
      %1154 = vmatpush1.bf16.msra.mxu0 %v875
      %1155 = vmatprep.subr.bf16.mxu0 %v878
      %1156 = vmatpush1.bf16.msra.mxu0 %v877
      %1157 = vmatprep.subr.bf16.mxu0 %v880
      %1158 = vmatpush1.bf16.msra.mxu0 %v879
      %1159 = vmatprep.subr.bf16.mxu0 %v882
      %1160 = vmatpush1.bf16.msra.mxu0 %v881
      %1161 = vmatprep.subr.bf16.mxu0 %v884
      %1162 = vmatpush1.bf16.msra.mxu0 %v883
      %1163 = vmatprep.subr.bf16.mxu0 %v886
      %1164 = vmatpush1.bf16.msra.mxu0 %v885
      %1165 = vmatprep.subr.bf16.mxu0 %v888
      %1166 = vmatpush1.bf16.msra.mxu0 %v887
      %1167 = vmatprep.subr.bf16.mxu0 %v890
      %1168 = vmatpush1.bf16.msra.mxu0 %v889
      %1169 = vmatprep.subr.bf16.mxu0 %v892
      %1170 = vmatpush1.bf16.msra.mxu0 %v891
      %1171 = vmatprep.subr.bf16.mxu0 %v894
      %1172 = vmatpush1.bf16.msra.mxu0 %v893
      %1173 = vmatprep.subr.bf16.mxu0 %v896
      %1174 = vmatpush1.bf16.msra.mxu0 %v895
      %1175 = vmatprep.subr.bf16.mxu0 %v898
      %1176 = vmatpush1.bf16.msra.mxu0 %v897
      %1177 = vmatprep.subr.bf16.mxu0 %v900
      %1178 = vmatpush1.bf16.msra.mxu0 %v899
      %1179 = vmatprep.subr.bf16.mxu0 %v902
      %1180 = vmatpush1.bf16.msra.mxu0 %v901
      %1181 = vmatprep.subr.bf16.mxu0 %v904
      %1182 = vmatpush1.bf16.msra.mxu0 %v903
      %1183 = vmatprep.subr.bf16.mxu0 %v906
      %1184 = vmatpush1.bf16.msra.mxu0 %v905
      %1185 = vmatprep.mubr.bf16.mxu0 %v416
      %1186 = vmatmul.mubr.bf16.gmra.mrb[0].mxu0 %v415
      %v1187 = vpop.f32.mrb[0].mxu0
      %v1188 = vadd.f32 %v1145, %v1187
      %v1189 = vpop.f32.mrb[0].mxu0
      %v1190 = vadd.f32 %v1147, %v1189
      %v1191 = vpop.f32.mrb[0].mxu0
      %v1192 = vadd.f32 %v1149, %v1191
      %v1193 = vpop.f32.mrb[0].mxu0
      %v1194 = vadd.f32 %v1151, %v1193
      %1195 = vdwg.mxu0
      %1196 = vmatprep.subr.bf16.mxu0 %v908
      %1197 = vmatpush1.bf16.msra.mxu0 %v907
      %1198 = vmatprep.subr.bf16.mxu0 %v910
      %1199 = vmatpush1.bf16.msra.mxu0 %v909
      %1200 = vmatprep.subr.bf16.mxu0 %v912
      %1201 = vmatpush1.bf16.msra.mxu0 %v911
      %1202 = vmatprep.subr.bf16.mxu0 %v914
      %1203 = vmatpush1.bf16.msra.mxu0 %v913
      %1204 = vmatprep.subr.bf16.mxu0 %v916
      %1205 = vmatpush1.bf16.msra.mxu0 %v915
      %1206 = vmatprep.subr.bf16.mxu0 %v918
      %1207 = vmatpush1.bf16.msra.mxu0 %v917
      %1208 = vmatprep.subr.bf16.mxu0 %v920
      %1209 = vmatpush1.bf16.msra.mxu0 %v919
      %1210 = vmatprep.subr.bf16.mxu0 %v922
      %1211 = vmatpush1.bf16.msra.mxu0 %v921
      %1212 = vmatprep.subr.bf16.mxu0 %v924
      %1213 = vmatpush1.bf16.msra.mxu0 %v923
      %1214 = vmatprep.subr.bf16.mxu0 %v926
      %1215 = vmatpush1.bf16.msra.mxu0 %v925
      %1216 = vmatprep.subr.bf16.mxu0 %v928
      %1217 = vmatpush1.bf16.msra.mxu0 %v927
      %1218 = vmatprep.subr.bf16.mxu0 %v930
      %1219 = vmatpush1.bf16.msra.mxu0 %v929
      %1220 = vmatprep.subr.bf16.mxu0 %v932
      %1221 = vmatpush1.bf16.msra.mxu0 %v931
      %1222 = vmatprep.subr.bf16.mxu0 %v934
      %1223 = vmatpush1.bf16.msra.mxu0 %v933
      %1224 = vmatprep.subr.bf16.mxu0 %v936
      %1225 = vmatpush1.bf16.msra.mxu0 %v935
      %1226 = vmatprep.subr.bf16.mxu0 %v938
      %1227 = vmatpush1.bf16.msra.mxu0 %v937
      %1228 = vmatprep.mubr.bf16.mxu0 %v418
      %1229 = vmatmul.mubr.bf16.gmra.mrb[0].mxu0 %v417
      %v1230 = vpop.f32.mrb[0].mxu0
      %v1231 = vadd.f32 %v1188, %v1230
      %v1232 = vpop.f32.mrb[0].mxu0
      %v1233 = vadd.f32 %v1190, %v1232
      %v1234 = vpop.f32.mrb[0].mxu0
      %v1235 = vadd.f32 %v1192, %v1234
      %v1236 = vpop.f32.mrb[0].mxu0
      %v1237 = vadd.f32 %v1194, %v1236
      %1238 = vdwg.mxu0
      %vm1239 = vcmp.ge.f32.partialorder %v1231, 0.0
      %vm1240 = vcmp.ge.f32.partialorder %v1233, 0.0
      %vm1241 = vcmp.ge.f32.partialorder %v1235, 0.0
      %vm1242 = vcmp.ge.f32.partialorder %v1237, 0.0
      %v1243 = vmul.f32 %v1231, 0.2
      %v1244 = vmul.f32 %v1233, 0.2
      %v1245 = vmul.f32 %v1235, 0.2
      %v1246 = vmul.f32 %v1237, 0.2
      %v1247 = vsel %vm1239, %v1231, %v1243
      %v1248 = vsel %vm1240, %v1233, %v1244
      %v1249 = vsel %vm1241, %v1235, %v1245
      %v1250 = vsel %vm1242, %v1237, %v1246
      %1251 = vst [vmem:[%s246] sm:$0xff] %v1247
      %1252 = vst [vmem:[%s246 + $0x8] sm:$0xff] %v1248
      %1253 = vst [vmem:[%s246 + $0x10] sm:$0xff] %v1249
      %1254 = vst [vmem:[%s246 + $0x18] sm:$0xff] %v1250
      %p1255 = scmp.lt.s32.totalorder %s18, 1
      %s1256 = scalar_select %p1255, %s18, 1
      %p1257 = scmp.lt.s32.totalorder %s19, 3
      %s1258 = scalar_select %p1257, %s19, 3
      %s1259 = smul.addr %s1258, 4
      %s1260 = smul.addr %s1256, 16
      %s1261 = sadd.s32 %s1259, %s1260
      %s1262 = smul.addr %s1261, 8
      %s1263 = scalar_lea.vmem %s3, %s1262
      // Predicated region
      $region33: #{plane_decoder_forward.7} parent=31 // pred_check
        %p1264 = pneg %p126
      $region34: #{plane_decoder_forward.7} parent=31 // pred_check_branch
        %1266 = sbr.rel (%p1264) target = $region36
      $region35: #{plane_decoder_forward.7} parent=31 // pred_region
        _
      $region36: #{plane_decoder_forward.7} parent=31 // pred_fallthru
        _
    $region32: #{plane_decoder_forward.7} parent=5 // pred_fallthru
      _
    %p1267 = scmp.le.s32.totalorder 2, %s9
    // Predicated region
    $region37: #{plane_decoder_forward.7} parent=5 // pred_check
      %p1268 = pneg %p1267
    $region38: #{plane_decoder_forward.7} parent=5 // pred_check_branch
      %1270 = sbr.rel (%p1268) target = $region40
    $region39: #{plane_decoder_forward.7} parent=5 // pred_region
      %s1271 = ssub.s32 %s9, 2
      // Predicated region
      $region41: #{plane_decoder_forward.7} parent=39 // pred_check
        %p1272 = pneg %p132
      $region42: #{plane_decoder_forward.7} parent=39 // pred_check_branch
        %1274 = sbr.rel (%p1272) target = $region44
      $region43: #{plane_decoder_forward.7} parent=39 // pred_region
        %p1275 = scmp.lt.s32.totalorder %s20, 1
        %s1276 = scalar_select %p1275, %s20, 1
        %p1277 = scmp.lt.s32.totalorder %s21, 3
        %s1278 = scalar_select %p1277, %s21, 3
        %s1279 = smul.addr %s1278, 4
        %s1280 = smul.addr %s1276, 16
        %s1281 = sadd.s32 %s1279, %s1280
        %s1282 = smul.addr %s1281, 8
        %s1283 = scalar_lea.vmem %s3, %s1282
      $region44: #{plane_decoder_forward.7} parent=39 // pred_fallthru
        _
    $region40: #{plane_decoder_forward.7} parent=5 // pred_fallthru
      _
  $region6: #{plane_decoder_forward.7} parent=0 // loop_footer
    %s13 = sadd.s32 1, %s9
  $region7: #{plane_decoder_forward.7} parent=0 // loop_footer_branch
    %8 = sbr.rel target = $region3
  $region8: #{plane_decoder_forward.7} parent=0 // loop_exit
    _

// kernel: plane_decoder_forward.8
$region0: #{plane_decoder_forward.8}
  #allocation0 [shape = 'u32[]', space=smem, size = 0x4, offset = 0x4, fixed_abs, tag = 'smem constant byte address 0x4 - core index']
  #allocation1 [shape = 'u32[144,128]{1,0:T(1,128)}', space=vmem, size = 0x12000, scoped, tag = 'internal scratch']
  %s0 = inlined_call_operand.vmem [shape: bf16[2,4,64,1024], index: 0, kind: input, shape index: {}]
  %s1 = inlined_call_operand.vmem [shape: bf16[4,1024,64], index: 1, kind: input, shape index: {}]
  %s2 = inlined_call_operand.vmem [shape: f32[4,64,64], index: 2, kind: input, shape index: {}]
  %s3 = inlined_call_operand.vmem [shape: f32[2,4,64,64], index: 3, kind: output, shape index: {}]
  %s4 = sld [smem:[#allocation0]]
  $region45: #{plane_decoder_forward.8} parent=0
    _
  %s6 = ssub.s32 1, %s4
  %s7 = scalar_select 0, %s6, %s4
  loop: start=0, step=1, limit=10
  $region2: #{plane_decoder_forward.8} parent=0 // loop_pre_header
    _
  $region3: #{plane_decoder_forward.8} parent=0 // loop_header
    %s9 = sphi 0, %s13
    %p10 = scmp.ge.s32.totalorder %s9, 10
    %s16 = sphi 0, %s28
    %s17 = sphi 0, %s24
    %s18 = sphi 0, %s16
    %s19 = sphi 0, %s17
    %s20 = sphi 0, %s18
    %s21 = sphi 0, %s19
    %s33 = sphi 0, %s35
    %s36 = sphi 0, %s33
    %s37 = sphi 0, %s36
    %s53 = sphi 0, %s37
    %s59 = sphi 0, %s61
    %s62 = sphi 0, %s59
    %s63 = sphi 0, %s62
    %s79 = sphi 0, %s63
    %s85 = sphi 0, %s87
    %s88 = sphi 0, %s85
    %s89 = sphi 0, %s88
    %s105 = sphi 0, %s89
    %s113 = sphi 0, %s115
    %s116 = sphi 0, %s113
    %s117 = sphi 0, %s116
    %s133 = sphi 0, %s117
  $region4: #{plane_decoder_forward.8} parent=0 // loop_header_branch
    %12 = sbr.rel (%p10) target = $region8
  $region5: #{plane_decoder_forward.8} parent=0 // loop_body
    %s14 = ssub.s32 %s9, 1
    %s15 = ssub.s32 %s9, 2
    %s22 = sadd.s32 1, %s17
    %p23 = scmp.ge.s32.totalorder %s22, 4
    %s24 = scalar_select %p23, 0, %s22
    %s25 = sadd.s32 1, %s16
    %s26 = scalar_select %p23, %s25, %s16
    %p27 = scmp.ge.s32.totalorder %s26, 2
    %s28 = scalar_select %p27, 0, %s26
    %s29 = ssub.s32 %s16, %s28
    %s30 = ssub.s32 %s17, %s24
    %s31 = sor.u32 %s29, %s30
    %p32 = scmp.eq.s32.totalorder %s31, 0
    %s34 = sadd.s32 %s33, 1
    %s35 = scalar_select %p32, %s33, %s34
    %p38 = pneg %p32
    %p39 = scmp.eq.s32.totalorder %s9, 7
    %p40 = por %p38, %p39
    %p41 = scmp.ne.s32.totalorder %s33, %s36
    %p42 = scmp.eq.s32.totalorder %s9, 0
    %p43 = por %p41, %p42
    %p44 = scmp.ne.s32.totalorder %s33, %s36
    %p45 = scmp.eq.s32.totalorder %s14, 7
    %p46 = por %p44, %p45
    %p47 = scmp.ne.s32.totalorder %s36, %s37
    %p48 = scmp.eq.s32.totalorder %s14, 0
    %p49 = por %p47, %p48
    %p50 = scmp.ne.s32.totalorder %s36, %s37
    %p51 = scmp.eq.s32.totalorder %s15, 7
    %p52 = por %p50, %p51
    %p54 = scmp.ne.s32.totalorder %s37, %s53
    %p55 = scmp.eq.s32.totalorder %s15, 0
    %p56 = por %p54, %p55
    %s57 = ssub.s32 %s17, %s24
    %p58 = scmp.eq.s32.totalorder %s57, 0
    %s60 = sadd.s32 %s59, 1
    %s61 = scalar_select %p58, %s59, %s60
    %p64 = pneg %p58
    %p65 = scmp.eq.s32.totalorder %s9, 7
    %p66 = por %p64, %p65
    %p67 = scmp.ne.s32.totalorder %s59, %s62
    %p68 = scmp.eq.s32.totalorder %s9, 0
    %p69 = por %p67, %p68
    %p70 = scmp.ne.s32.totalorder %s59, %s62
    %p71 = scmp.eq.s32.totalorder %s14, 7
    %p72 = por %p70, %p71
    %p73 = scmp.ne.s32.totalorder %s62, %s63
    %p74 = scmp.eq.s32.totalorder %s14, 0
    %p75 = por %p73, %p74
    %p76 = scmp.ne.s32.totalorder %s62, %s63
    %p77 = scmp.eq.s32.totalorder %s15, 7
    %p78 = por %p76, %p77
    %p80 = scmp.ne.s32.totalorder %s63, %s79
    %p81 = scmp.eq.s32.totalorder %s15, 0
    %p82 = por %p80, %p81
    %s83 = ssub.s32 %s17, %s24
    %p84 = scmp.eq.s32.totalorder %s83, 0
    %s86 = sadd.s32 %s85, 1
    %s87 = scalar_select %p84, %s85, %s86
    %p90 = pneg %p84
    %p91 = scmp.eq.s32.totalorder %s9, 7
    %p92 = por %p90, %p91
    %p93 = scmp.ne.s32.totalorder %s85, %s88
    %p94 = scmp.eq.s32.totalorder %s9, 0
    %p95 = por %p93, %p94
    %p96 = scmp.ne.s32.totalorder %s85, %s88
    %p97 = scmp.eq.s32.totalorder %s14, 7
    %p98 = por %p96, %p97
    %p99 = scmp.ne.s32.totalorder %s88, %s89
    %p100 = scmp.eq.s32.totalorder %s14, 0
    %p101 = por %p99, %p100
    %p102 = scmp.ne.s32.totalorder %s88, %s89
    %p103 = scmp.eq.s32.totalorder %s15, 7
    %p104 = por %p102, %p103
    %p106 = scmp.ne.s32.totalorder %s89, %s105
    %p107 = scmp.eq.s32.totalorder %s15, 0
    %p108 = por %p106, %p107
    %s109 = ssub.s32 %s16, %s28
    %s110 = ssub.s32 %s17, %s24
    %s111 = sor.u32 %s109, %s110
    %p112 = scmp.eq.s32.totalorder %s111, 0
    %s114 = sadd.s32 %s113, 1
    %s115 = scalar_select %p112, %s113, %s114
    %p118 = pneg %p112
    %p119 = scmp.eq.s32.totalorder %s9, 7
    %p120 = por %p118, %p119
    %p121 = scmp.ne.s32.totalorder %s113, %s116
    %p122 = scmp.eq.s32.totalorder %s9, 0
    %p123 = por %p121, %p122
    %p124 = scmp.ne.s32.totalorder %s113, %s116
    %p125 = scmp.eq.s32.totalorder %s14, 7
    %p126 = por %p124, %p125
    %p127 = scmp.ne.s32.totalorder %s116, %s117
    %p128 = scmp.eq.s32.totalorder %s14, 0
    %p129 = por %p127, %p128
    %p130 = scmp.ne.s32.totalorder %s116, %s117
    %p131 = scmp.eq.s32.totalorder %s15, 7
    %p132 = por %p130, %p131
    %p134 = scmp.ne.s32.totalorder %s117, %s133
    %p135 = scmp.eq.s32.totalorder %s15, 0
    %p136 = por %p134, %p135
    %p137 = scmp.le.s32.totalorder 1, %s9
    %p138 = scmp.lt.s32.totalorder %s9, 9
    %p139 = pnand %p137, %p138
    %p140 = pneg %p139
    // Predicated region
    $region9: #{plane_decoder_forward.8} parent=5 // pred_check
      _
    $region10: #{plane_decoder_forward.8} parent=5 // pred_check_branch
      %142 = sbr.rel (%p139) target = $region12
    $region11: #{plane_decoder_forward.8} parent=5 // pred_region
      %s143 = ssub.s32 %s9, 1
    $region12: #{plane_decoder_forward.8} parent=5 // pred_fallthru
      _
    %p144 = scmp.lt.s32.totalorder %s9, 8
    // Predicated region
    $region13: #{plane_decoder_forward.8} parent=5 // pred_check
      %p145 = pneg %p144
    $region14: #{plane_decoder_forward.8} parent=5 // pred_check_branch
      %147 = sbr.rel (%p145) target = $region16
    $region15: #{plane_decoder_forward.8} parent=5 // pred_region
      // Predicated region
      $region17: #{plane_decoder_forward.8} parent=15 // pred_check
        %p148 = pneg %p43
      $region18: #{plane_decoder_forward.8} parent=15 // pred_check_branch
        %150 = sbr.rel (%p148) target = $region20
      $region19: #{plane_decoder_forward.8} parent=15 // pred_region
        %p151 = scmp.lt.s32.totalorder %s16, 1
        %s152 = scalar_select %p151, %s16, 1
        %p153 = scmp.lt.s32.totalorder %s17, 3
        %s154 = scalar_select %p153, %s17, 3
        %s155 = smul.addr %s154, 64
        %s156 = smul.addr %s152, 256
        %s157 = sadd.s32 %s155, %s156
        %s158 = smul.addr %s157, 4
        %s159 = scalar_lea.vmem %s0, %s158
      $region20: #{plane_decoder_forward.8} parent=15 // pred_fallthru
        _
      // Predicated region
      $region21: #{plane_decoder_forward.8} parent=15 // pred_check
        %p160 = pneg %p69
      $region22: #{plane_decoder_forward.8} parent=15 // pred_check_branch
        %162 = sbr.rel (%p160) target = $region24
      $region23: #{plane_decoder_forward.8} parent=15 // pred_region
        %p163 = scmp.lt.s32.totalorder %s17, 3
        %s164 = scalar_select %p163, %s17, 3
        %s165 = smul.addr %s164, 128
        %s166 = smul.addr %s165, 4
        %s167 = scalar_lea.vmem %s1, %s166
      $region24: #{plane_decoder_forward.8} parent=15 // pred_fallthru
        _
      // Predicated region
      $region25: #{plane_decoder_forward.8} parent=15 // pred_check
        %p168 = pneg %p95
      $region26: #{plane_decoder_forward.8} parent=15 // pred_check_branch
        %170 = sbr.rel (%p168) target = $region28
      $region27: #{plane_decoder_forward.8} parent=15 // pred_region
        %p171 = scmp.lt.s32.totalorder %s17, 3
        %s172 = scalar_select %p171, %s17, 3
        %s173 = smul.addr %s172, 8
        %s174 = smul.addr %s173, 8
        %s175 = scalar_lea.vmem %s2, %s174
      $region28: #{plane_decoder_forward.8} parent=15 // pred_fallthru
        _
    $region16: #{plane_decoder_forward.8} parent=5 // pred_fallthru
      _
    %p176 = scmp.le.s32.totalorder 1, %s9
    %p177 = scmp.lt.s32.totalorder %s9, 9
    %p178 = pnand %p176, %p177
    %p179 = pneg %p178
    // Predicated region
    $region29: #{plane_decoder_forward.8} parent=5 // pred_check
      _
    $region30: #{plane_decoder_forward.8} parent=5 // pred_check_branch
      %181 = sbr.rel (%p178) target = $region32
    $region31: #{plane_decoder_forward.8} parent=5 // pred_region
      %s182 = ssub.s32 %s9, 1
      %p183 = scmp.lt.s32.totalorder %s18, 1
      %s184 = scalar_select %p183, %s18, 1
      %p185 = scmp.lt.s32.totalorder %s19, 3
      %s186 = scalar_select %p185, %s19, 3
      %s187 = smul.addr %s186, 64
      %s188 = smul.addr %s184, 256
      %s189 = sadd.s32 %s187, %s188
      %s190 = smul.addr %s189, 4
      %s191 = scalar_lea.vmem %s0, %s190
      %p192 = pneg %p49
      %p193 = pneg %p46
      %p194 = scmp.lt.s32.totalorder %s19, 3
      %s195 = scalar_select %p194, %s19, 3
      %s196 = smul.addr %s195, 128
      %s197 = smul.addr %s196, 4
      %s198 = scalar_lea.vmem %s1, %s197
      %p199 = pneg %p75
      %p200 = pneg %p72
      %p201 = scmp.lt.s32.totalorder %s19, 3
      %s202 = scalar_select %p201, %s19, 3
      %s203 = smul.addr %s202, 8
      %s204 = smul.addr %s203, 8
      %s205 = scalar_lea.vmem %s2, %s204
      %p206 = pneg %p101
      %p207 = pneg %p98
      %p208 = pneg %p129
      %p209 = pneg %p126
      %p210 = scmp.lt.s32.totalorder %s18, 1
      %s211 = scalar_select %p210, %s18, 1
      %p212 = scmp.lt.s32.totalorder %s19, 3
      %s213 = scalar_select %p212, %s19, 3
      %s214 = smul.addr %s213, 8
      %s215 = smul.addr %s211, 32
      %s216 = sadd.s32 %s214, %s215
      %s217 = smul.addr %s216, 8
      %s218 = scalar_lea.vmem %s3, %s217
      %p219 = scmp.lt.s32.totalorder %s18, 1
      %s220 = scalar_select %p219, %s18, 1
      %p221 = scmp.lt.s32.totalorder %s19, 3
      %s222 = scalar_select %p221, %s19, 3
      %s223 = smul.addr %s222, 64
      %s224 = smul.addr %s220, 256
      %s225 = sadd.s32 %s223, %s224
      %s226 = smul.addr %s225, 4
      %s227 = scalar_lea.vmem %s0, %s226
      %p228 = scmp.lt.s32.totalorder %s19, 3
      %s229 = scalar_select %p228, %s19, 3
      %s230 = smul.addr %s229, 128
      %s231 = smul.addr %s230, 4
      %s232 = scalar_lea.vmem %s1, %s231
      %p233 = scmp.lt.s32.totalorder %s19, 3
      %s234 = scalar_select %p233, %s19, 3
      %s235 = smul.addr %s234, 8
      %s236 = smul.addr %s235, 8
      %s237 = scalar_lea.vmem %s2, %s236
      %p238 = scmp.lt.s32.totalorder %s18, 1
      %s239 = scalar_select %p238, %s18, 1
      %p240 = scmp.lt.s32.totalorder %s19, 3
      %s241 = scalar_select %p240, %s19, 3
      %s242 = smul.addr %s241, 8
      %s243 = smul.addr %s239, 32
      %s244 = sadd.s32 %s242, %s243
      %s245 = smul.addr %s244, 8
      %s246 = scalar_lea.vmem %s3, %s245
      %v248 = vld [vmem:[%s227] sm:$0xff]
      %v249 = vld [vmem:[%s227 + $0x8] sm:$0xff]
      %v250 = vld [vmem:[%s227 + $0x10] sm:$0xff]
      %v251 = vld [vmem:[%s227 + $0x18] sm:$0xff]
      %v252 = vld [vmem:[%s227 + $0x20] sm:$0xff]
      %v253 = vld [vmem:[%s227 + $0x28] sm:$0xff]
      %v254 = vld [vmem:[%s227 + $0x30] sm:$0xff]
      %v255 = vld [vmem:[%s227 + $0x38] sm:$0xff]
      %v256 = vld [vmem:[%s227 + $0x40] sm:$0xff]
      %v257 = vld [vmem:[%s227 + $0x48] sm:$0xff]
      %v258 = vld [vmem:[%s227 + $0x50] sm:$0xff]
      %v259 = vld [vmem:[%s227 + $0x58] sm:$0xff]
      %v260 = vld [vmem:[%s227 + $0x60] sm:$0xff]
      %v261 = vld [vmem:[%s227 + $0x68] sm:$0xff]
      %v262 = vld [vmem:[%s227 + $0x70] sm:$0xff]
      %v263 = vld [vmem:[%s227 + $0x78] sm:$0xff]
      %v264 = vld [vmem:[%s227 + $0x80] sm:$0xff]
      %v265 = vld [vmem:[%s227 + $0x88] sm:$0xff]
      %v266 = vld [vmem:[%s227 + $0x90] sm:$0xff]
      %v267 = vld [vmem:[%s227 + $0x98] sm:$0xff]
      %v268 = vld [vmem:[%s227 + $0xa0] sm:$0xff]
      %v269 = vld [vmem:[%s227 + $0xa8] sm:$0xff]
      %v270 = vld [vmem:[%s227 + $0xb0] sm:$0xff]
      %v271 = vld [vmem:[%s227 + $0xb8] sm:$0xff]
      %v272 = vld [vmem:[%s227 + $0xc0] sm:$0xff]
      %v273 = vld [vmem:[%s227 + $0xc8] sm:$0xff]
      %v274 = vld [vmem:[%s227 + $0xd0] sm:$0xff]
      %v275 = vld [vmem:[%s227 + $0xd8] sm:$0xff]
      %v276 = vld [vmem:[%s227 + $0xe0] sm:$0xff]
      %v277 = vld [vmem:[%s227 + $0xe8] sm:$0xff]
      %v278 = vld [vmem:[%s227 + $0xf0] sm:$0xff]
      %v279 = vld [vmem:[%s227 + $0xf8] sm:$0xff]
      %v280 = vld [vmem:[%s232] sm:$0xf]
      %v281 = vld [vmem:[%s232 + $0x4] sm:$0xf]
      %v282 = vld [vmem:[%s232 + $0x8] sm:$0xf]
      %v283 = vld [vmem:[%s232 + $0xc] sm:$0xf]
      %v284 = vld [vmem:[%s232 + $0x10] sm:$0xf]
      %v285 = vld [vmem:[%s232 + $0x14] sm:$0xf]
      %v286 = vld [vmem:[%s232 + $0x18] sm:$0xf]
      %v287 = vld [vmem:[%s232 + $0x1c] sm:$0xf]
      %v288 = vld [vmem:[%s232 + $0x20] sm:$0xf]
      %v289 = vld [vmem:[%s232 + $0x24] sm:$0xf]
      %v290 = vld [vmem:[%s232 + $0x28] sm:$0xf]
      %v291 = vld [vmem:[%s232 + $0x2c] sm:$0xf]
      %v292 = vld [vmem:[%s232 + $0x30] sm:$0xf]
      %v293 = vld [vmem:[%s232 + $0x34] sm:$0xf]
      %v294 = vld [vmem:[%s232 + $0x38] sm:$0xf]
      %v295 = vld [vmem:[%s232 + $0x3c] sm:$0xf]
      %v296 = vld [vmem:[%s232 + $0x40] sm:$0xf]
      %v297 = vld [vmem:[%s232 + $0x44] sm:$0xf]
      %v298 = vld [vmem:[%s232 + $0x48] sm:$0xf]
      %v299 = vld [vmem:[%s232 + $0x4c] sm:$0xf]
      %v300 = vld [vmem:[%s232 + $0x50] sm:$0xf]
      %v301 = vld [vmem:[%s232 + $0x54] sm:$0xf]
      %v302 = vld [vmem:[%s232 + $0x58] sm:$0xf]
      %v303 = vld [vmem:[%s232 + $0x5c] sm:$0xf]
      %v304 = vld [vmem:[%s232 + $0x60] sm:$0xf]
      %v305 = vld [vmem:[%s232 + $0x64] sm:$0xf]
      %v306 = vld [vmem:[%s232 + $0x68] sm:$0xf]
      %v307 = vld [vmem:[%s232 + $0x6c] sm:$0xf]
      %v308 = vld [vmem:[%s232 + $0x70] sm:$0xf]
      %v309 = vld [vmem:[%s232 + $0x74] sm:$0xf]
      %v310 = vld [vmem:[%s232 + $0x78] sm:$0xf]
      %v311 = vld [vmem:[%s232 + $0x7c] sm:$0xf]
      %v312 = vld [vmem:[%s232 + $0x80] sm:$0xf]
      %v313 = vld [vmem:[%s232 + $0x84] sm:$0xf]
      %v314 = vld [vmem:[%s232 + $0x88] sm:$0xf]
      %v315 = vld [vmem:[%s232 + $0x8c] sm:$0xf]
      %v316 = vld [vmem:[%s232 + $0x90] sm:$0xf]
      %v317 = vld [vmem:[%s232 + $0x94] sm:$0xf]
      %v318 = vld [vmem:[%s232 + $0x98] sm:$0xf]
      %v319 = vld [vmem:[%s232 + $0x9c] sm:$0xf]
      %v320 = vld [vmem:[%s232 + $0xa0] sm:$0xf]
      %v321 = vld [vmem:[%s232 + $0xa4] sm:$0xf]
      %v322 = vld [vmem:[%s232 + $0xa8] sm:$0xf]
      %v323 = vld [vmem:[%s232 + $0xac] sm:$0xf]
      %v324 = vld [vmem:[%s232 + $0xb0] sm:$0xf]
      %v325 = vld [vmem:[%s232 + $0xb4] sm:$0xf]
      %v326 = vld [vmem:[%s232 + $0xb8] sm:$0xf]
      %v327 = vld [vmem:[%s232 + $0xbc] sm:$0xf]
      %v328 = vld [vmem:[%s232 + $0xc0] sm:$0xf]
      %v329 = vld [vmem:[%s232 + $0xc4] sm:$0xf]
      %v330 = vld [vmem:[%s232 + $0xc8] sm:$0xf]
      %v331 = vld [vmem:[%s232 + $0xcc] sm:$0xf]
      %v332 = vld [vmem:[%s232 + $0xd0] sm:$0xf]
      %v333 = vld [vmem:[%s232 + $0xd4] sm:$0xf]
      %v334 = vld [vmem:[%s232 + $0xd8] sm:$0xf]
      %v335 = vld [vmem:[%s232 + $0xdc] sm:$0xf]
      %v336 = vld [vmem:[%s232 + $0xe0] sm:$0xf]
      %v337 = vld [vmem:[%s232 + $0xe4] sm:$0xf]
      %v338 = vld [vmem:[%s232 + $0xe8] sm:$0xf]
      %v339 = vld [vmem:[%s232 + $0xec] sm:$0xf]
      %v340 = vld [vmem:[%s232 + $0xf0] sm:$0xf]
      %v341 = vld [vmem:[%s232 + $0xf4] sm:$0xf]
      %v342 = vld [vmem:[%s232 + $0xf8] sm:$0xf]
      %v343 = vld [vmem:[%s232 + $0xfc] sm:$0xf]
      %v344 = vld [vmem:[%s232 + $0x100] sm:$0xf]
      %v345 = vld [vmem:[%s232 + $0x104] sm:$0xf]
      %v346 = vld [vmem:[%s232 + $0x108] sm:$0xf]
      %v347 = vld [vmem:[%s232 + $0x10c] sm:$0xf]
      %v348 = vld [vmem:[%s232 + $0x110] sm:$0xf]
      %v349 = vld [vmem:[%s232 + $0x114] sm:$0xf]
      %v350 = vld [vmem:[%s232 + $0x118] sm:$0xf]
      %v351 = vld [vmem:[%s232 + $0x11c] sm:$0xf]
      %v352 = vld [vmem:[%s232 + $0x120] sm:$0xf]
      %v353 = vld [vmem:[%s232 + $0x124] sm:$0xf]
      %v354 = vld [vmem:[%s232 + $0x128] sm:$0xf]
      %v355 = vld [vmem:[%s232 + $0x12c] sm:$0xf]
      %v356 = vld [vmem:[%s232 + $0x130] sm:$0xf]
      %v357 = vld [vmem:[%s232 + $0x134] sm:$0xf]
      %v358 = vld [vmem:[%s232 + $0x138] sm:$0xf]
      %v359 = vld [vmem:[%s232 + $0x13c] sm:$0xf]
      %v360 = vld [vmem:[%s232 + $0x140] sm:$0xf]
      %v361 = vld [vmem:[%s232 + $0x144] sm:$0xf]
      %v362 = vld [vmem:[%s232 + $0x148] sm:$0xf]
      %v363 = vld [vmem:[%s232 + $0x14c] sm:$0xf]
      %v364 = vld [vmem:[%s232 + $0x150] sm:$0xf]
      %v365 = vld [vmem:[%s232 + $0x154] sm:$0xf]
      %v366 = vld [vmem:[%s232 + $0x158] sm:$0xf]
      %v367 = vld [vmem:[%s232 + $0x15c] sm:$0xf]
      %v368 = vld [vmem:[%s232 + $0x160] sm:$0xf]
      %v369 = vld [vmem:[%s232 + $0x164] sm:$0xf]
      %v370 = vld [vmem:[%s232 + $0x168] sm:$0xf]
      %v371 = vld [vmem:[%s232 + $0x16c] sm:$0xf]
      %v372 = vld [vmem:[%s232 + $0x170] sm:$0xf]
      %v373 = vld [vmem:[%s232 + $0x174] sm:$0xf]
      %v374 = vld [vmem:[%s232 + $0x178] sm:$0xf]
      %v375 = vld [vmem:[%s232 + $0x17c] sm:$0xf]
      %v376 = vld [vmem:[%s232 + $0x180] sm:$0xf]
      %v377 = vld [vmem:[%s232 + $0x184] sm:$0xf]
      %v378 = vld [vmem:[%s232 + $0x188] sm:$0xf]
      %v379 = vld [vmem:[%s232 + $0x18c] sm:$0xf]
      %v380 = vld [vmem:[%s232 + $0x190] sm:$0xf]
      %v381 = vld [vmem:[%s232 + $0x194] sm:$0xf]
      %v382 = vld [vmem:[%s232 + $0x198] sm:$0xf]
      %v383 = vld [vmem:[%s232 + $0x19c] sm:$0xf]
      %v384 = vld [vmem:[%s232 + $0x1a0] sm:$0xf]
      %v385 = vld [vmem:[%s232 + $0x1a4] sm:$0xf]
      %v386 = vld [vmem:[%s232 + $0x1a8] sm:$0xf]
      %v387 = vld [vmem:[%s232 + $0x1ac] sm:$0xf]
      %v388 = vld [vmem:[%s232 + $0x1b0] sm:$0xf]
      %v389 = vld [vmem:[%s232 + $0x1b4] sm:$0xf]
      %v390 = vld [vmem:[%s232 + $0x1b8] sm:$0xf]
      %v391 = vld [vmem:[%s232 + $0x1bc] sm:$0xf]
      %v392 = vld [vmem:[%s232 + $0x1c0] sm:$0xf]
      %v393 = vld [vmem:[%s232 + $0x1c4] sm:$0xf]
      %v394 = vld [vmem:[%s232 + $0x1c8] sm:$0xf]
      %v395 = vld [vmem:[%s232 + $0x1cc] sm:$0xf]
      %v396 = vld [vmem:[%s232 + $0x1d0] sm:$0xf]
      %v397 = vld [vmem:[%s232 + $0x1d4] sm:$0xf]
      %v398 = vld [vmem:[%s232 + $0x1d8] sm:$0xf]
      %v399 = vld [vmem:[%s232 + $0x1dc] sm:$0xf]
      %v400 = vld [vmem:[%s232 + $0x1e0] sm:$0xf]
      %v401 = vld [vmem:[%s232 + $0x1e4] sm:$0xf]
      %v402 = vld [vmem:[%s232 + $0x1e8] sm:$0xf]
      %v403 = vld [vmem:[%s232 + $0x1ec] sm:$0xf]
      %v404 = vld [vmem:[%s232 + $0x1f0] sm:$0xf]
      %v405 = vld [vmem:[%s232 + $0x1f4] sm:$0xf]
      %v406 = vld [vmem:[%s232 + $0x1f8] sm:$0xf]
      %v407 = vld [vmem:[%s232 + $0x1fc] sm:$0xf]
      %v408 = vld [vmem:[%s237] sm:$0xff]
      %v409 = vld [vmem:[%s237 + $0x8] sm:$0xff]
      %v410 = vld [vmem:[%s237 + $0x10] sm:$0xff]
      %v411 = vld [vmem:[%s237 + $0x18] sm:$0xff]
      %v412 = vld [vmem:[%s237 + $0x20] sm:$0xff]
      %v413 = vld [vmem:[%s237 + $0x28] sm:$0xff]
      %v414 = vld [vmem:[%s237 + $0x30] sm:$0xff]
      %v415 = vld [vmem:[%s237 + $0x38] sm:$0xff]
      %v448 = vunpack.c.l.b16 %v248
      %v449 = vunpack.c.h.b16 %v248
      %v450 = vunpack.c.l.b16 %v249
      %v451 = vunpack.c.h.b16 %v249
      %v452 = vunpack.c.l.b16 %v250
      %v453 = vunpack.c.h.b16 %v250
      %v454 = vunpack.c.l.b16 %v251
      %v455 = vunpack.c.h.b16 %v251
      %v456 = vunpack.c.l.b16 %v252
      %v457 = vunpack.c.h.b16 %v252
      %v458 = vunpack.c.l.b16 %v253
      %v459 = vunpack.c.h.b16 %v253
      %v460 = vunpack.c.l.b16 %v254
      %v461 = vunpack.c.h.b16 %v254
      %v462 = vunpack.c.l.b16 %v255
      %v463 = vunpack.c.h.b16 %v255
      %v464 = vunpack.c.l.b16 %v256
      %v465 = vunpack.c.h.b16 %v256
      %v466 = vunpack.c.l.b16 %v257
      %v467 = vunpack.c.h.b16 %v257
      %v468 = vunpack.c.l.b16 %v258
      %v469 = vunpack.c.h.b16 %v258
      %v470 = vunpack.c.l.b16 %v259
      %v471 = vunpack.c.h.b16 %v259
      %v472 = vunpack.c.l.b16 %v260
      %v473 = vunpack.c.h.b16 %v260
      %v474 = vunpack.c.l.b16 %v261
      %v475 = vunpack.c.h.b16 %v261
      %v476 = vunpack.c.l.b16 %v262
      %v477 = vunpack.c.h.b16 %v262
      %v478 = vunpack.c.l.b16 %v263
      %v479 = vunpack.c.h.b16 %v263
      %v480 = vunpack.c.l.b16 %v264
      %v481 = vunpack.c.h.b16 %v264
      %v482 = vunpack.c.l.b16 %v265
      %v483 = vunpack.c.h.b16 %v265
      %v484 = vunpack.c.l.b16 %v266
      %v485 = vunpack.c.h.b16 %v266
      %v486 = vunpack.c.l.b16 %v267
      %v487 = vunpack.c.h.b16 %v267
      %v488 = vunpack.c.l.b16 %v268
      %v489 = vunpack.c.h.b16 %v268
      %v490 = vunpack.c.l.b16 %v269
      %v491 = vunpack.c.h.b16 %v269
      %v492 = vunpack.c.l.b16 %v270
      %v493 = vunpack.c.h.b16 %v270
      %v494 = vunpack.c.l.b16 %v271
      %v495 = vunpack.c.h.b16 %v271
      %v496 = vunpack.c.l.b16 %v272
      %v497 = vunpack.c.h.b16 %v272
      %v498 = vunpack.c.l.b16 %v273
      %v499 = vunpack.c.h.b16 %v273
      %v500 = vunpack.c.l.b16 %v274
      %v501 = vunpack.c.h.b16 %v274
      %v502 = vunpack.c.l.b16 %v275
      %v503 = vunpack.c.h.b16 %v275
      %v504 = vunpack.c.l.b16 %v276
      %v505 = vunpack.c.h.b16 %v276
      %v506 = vunpack.c.l.b16 %v277
      %v507 = vunpack.c.h.b16 %v277
      %v508 = vunpack.c.l.b16 %v278
      %v509 = vunpack.c.h.b16 %v278
      %v510 = vunpack.c.l.b16 %v279
      %v511 = vunpack.c.h.b16 %v279
      %v512 = vpack.c.b16 %v456, %v448
      %v513 = vpack.c.b16 %v457, %v449
      %v514 = vpack.c.b16 %v458, %v450
      %v515 = vpack.c.b16 %v459, %v451
      %v516 = vpack.c.b16 %v460, %v452
      %v517 = vpack.c.b16 %v461, %v453
      %v518 = vpack.c.b16 %v462, %v454
      %v519 = vpack.c.b16 %v463, %v455
      %v520 = vpack.c.b16 %v472, %v464
      %v521 = vpack.c.b16 %v473, %v465
      %v522 = vpack.c.b16 %v474, %v466
      %v523 = vpack.c.b16 %v475, %v467
      %v524 = vpack.c.b16 %v476, %v468
      %v525 = vpack.c.b16 %v477, %v469
      %v526 = vpack.c.b16 %v478, %v470
      %v527 = vpack.c.b16 %v479, %v471
      %v528 = vpack.c.b16 %v488, %v480
      %v529 = vpack.c.b16 %v489, %v481
      %v530 = vpack.c.b16 %v490, %v482
      %v531 = vpack.c.b16 %v491, %v483
      %v532 = vpack.c.b16 %v492, %v484
      %v533 = vpack.c.b16 %v493, %v485
      %v534 = vpack.c.b16 %v494, %v486
      %v535 = vpack.c.b16 %v495, %v487
      %v536 = vpack.c.b16 %v504, %v496
      %v537 = vpack.c.b16 %v505, %v497
      %v538 = vpack.c.b16 %v506, %v498
      %v539 = vpack.c.b16 %v507, %v499
      %v540 = vpack.c.b16 %v508, %v500
      %v541 = vpack.c.b16 %v509, %v501
      %v542 = vpack.c.b16 %v510, %v502
      %v543 = vpack.c.b16 %v511, %v503
      %v704 = vunpack.c.l.b16 %v280
      %v705 = vunpack.c.l.b16 %v281
      %v706 = vunpack.c.l.b16 %v282
      %v707 = vunpack.c.l.b16 %v283
      %v708 = vunpack.c.l.b16 %v284
      %v709 = vunpack.c.l.b16 %v285
      %v710 = vunpack.c.l.b16 %v286
      %v711 = vunpack.c.l.b16 %v287
      %v712 = vunpack.c.l.b16 %v288
      %v713 = vunpack.c.l.b16 %v289
      %v714 = vunpack.c.l.b16 %v290
      %v715 = vunpack.c.l.b16 %v291
      %v716 = vunpack.c.l.b16 %v292
      %v717 = vunpack.c.l.b16 %v293
      %v718 = vunpack.c.l.b16 %v294
      %v719 = vunpack.c.l.b16 %v295
      %v720 = vunpack.c.l.b16 %v296
      %v721 = vunpack.c.l.b16 %v297
      %v722 = vunpack.c.l.b16 %v298
      %v723 = vunpack.c.l.b16 %v299
      %v724 = vunpack.c.l.b16 %v300
      %v725 = vunpack.c.l.b16 %v301
      %v726 = vunpack.c.l.b16 %v302
      %v727 = vunpack.c.l.b16 %v303
      %v728 = vunpack.c.l.b16 %v304
      %v729 = vunpack.c.l.b16 %v305
      %v730 = vunpack.c.l.b16 %v306
      %v731 = vunpack.c.l.b16 %v307
      %v732 = vunpack.c.l.b16 %v308
      %v733 = vunpack.c.l.b16 %v309
      %v734 = vunpack.c.l.b16 %v310
      %v735 = vunpack.c.l.b16 %v311
      %v736 = vunpack.c.l.b16 %v312
      %v737 = vunpack.c.l.b16 %v313
      %v738 = vunpack.c.l.b16 %v314
      %v739 = vunpack.c.l.b16 %v315
      %v740 = vunpack.c.l.b16 %v316
      %v741 = vunpack.c.l.b16 %v317
      %v742 = vunpack.c.l.b16 %v318
      %v743 = vunpack.c.l.b16 %v319
      %v744 = vunpack.c.l.b16 %v320
      %v745 = vunpack.c.l.b16 %v321
      %v746 = vunpack.c.l.b16 %v322
      %v747 = vunpack.c.l.b16 %v323
      %v748 = vunpack.c.l.b16 %v324
      %v749 = vunpack.c.l.b16 %v325
      %v750 = vunpack.c.l.b16 %v326
      %v751 = vunpack.c.l.b16 %v327
      %v752 = vunpack.c.l.b16 %v328
      %v753 = vunpack.c.l.b16 %v329
      %v754 = vunpack.c.l.b16 %v330
      %v755 = vunpack.c.l.b16 %v331
      %v756 = vunpack.c.l.b16 %v332
      %v757 = vunpack.c.l.b16 %v333
      %v758 = vunpack.c.l.b16 %v334
      %v759 = vunpack.c.l.b16 %v335
      %v760 = vunpack.c.l.b16 %v336
      %v761 = vunpack.c.l.b16 %v337
      %v762 = vunpack.c.l.b16 %v338
      %v763 = vunpack.c.l.b16 %v339
      %v764 = vunpack.c.l.b16 %v340
      %v765 = vunpack.c.l.b16 %v341
      %v766 = vunpack.c.l.b16 %v342
      %v767 = vunpack.c.l.b16 %v343
      %v768 = vunpack.c.l.b16 %v344
      %v769 = vunpack.c.l.b16 %v345
      %v770 = vunpack.c.l.b16 %v346
      %v771 = vunpack.c.l.b16 %v347
      %v772 = vunpack.c.l.b16 %v348
      %v773 = vunpack.c.l.b16 %v349
      %v774 = vunpack.c.l.b16 %v350
      %v775 = vunpack.c.l.b16 %v351
      %v776 = vunpack.c.l.b16 %v352
      %v777 = vunpack.c.l.b16 %v353
      %v778 = vunpack.c.l.b16 %v354
      %v779 = vunpack.c.l.b16 %v355
      %v780 = vunpack.c.l.b16 %v356
      %v781 = vunpack.c.l.b16 %v357
      %v782 = vunpack.c.l.b16 %v358
      %v783 = vunpack.c.l.b16 %v359
      %v784 = vunpack.c.l.b16 %v360
      %v785 = vunpack.c.l.b16 %v361
      %v786 = vunpack.c.l.b16 %v362
      %v787 = vunpack.c.l.b16 %v363
      %v788 = vunpack.c.l.b16 %v364
      %v789 = vunpack.c.l.b16 %v365
      %v790 = vunpack.c.l.b16 %v366
      %v791 = vunpack.c.l.b16 %v367
      %v792 = vunpack.c.l.b16 %v368
      %v793 = vunpack.c.l.b16 %v369
      %v794 = vunpack.c.l.b16 %v370
      %v795 = vunpack.c.l.b16 %v371
      %v796 = vunpack.c.l.b16 %v372
      %v797 = vunpack.c.l.b16 %v373
      %v798 = vunpack.c.l.b16 %v374
      %v799 = vunpack.c.l.b16 %v375
      %v800 = vunpack.c.l.b16 %v376
      %v801 = vunpack.c.l.b16 %v377
      %v802 = vunpack.c.l.b16 %v378
      %v803 = vunpack.c.l.b16 %v379
      %v804 = vunpack.c.l.b16 %v380
      %v805 = vunpack.c.l.b16 %v381
      %v806 = vunpack.c.l.b16 %v382
      %v807 = vunpack.c.l.b16 %v383
      %v808 = vunpack.c.l.b16 %v384
      %v809 = vunpack.c.l.b16 %v385
      %v810 = vunpack.c.l.b16 %v386
      %v811 = vunpack.c.l.b16 %v387
      %v812 = vunpack.c.l.b16 %v388
      %v813 = vunpack.c.l.b16 %v389
      %v814 = vunpack.c.l.b16 %v390
      %v815 = vunpack.c.l.b16 %v391
      %v816 = vunpack.c.l.b16 %v392
      %v817 = vunpack.c.l.b16 %v393
      %v818 = vunpack.c.l.b16 %v394
      %v819 = vunpack.c.l.b16 %v395
      %v820 = vunpack.c.l.b16 %v396
      %v821 = vunpack.c.l.b16 %v397
      %v822 = vunpack.c.l.b16 %v398
      %v823 = vunpack.c.l.b16 %v399
      %v824 = vunpack.c.l.b16 %v400
      %v825 = vunpack.c.l.b16 %v401
      %v826 = vunpack.c.l.b16 %v402
      %v827 = vunpack.c.l.b16 %v403
      %v828 = vunpack.c.l.b16 %v404
      %v829 = vunpack.c.l.b16 %v405
      %v830 = vunpack.c.l.b16 %v406
      %v831 = vunpack.c.l.b16 %v407
      %v832 = vpack.c.b16 %v705, %v704
      %v833 = vpack.c.b16 %v707, %v706
      %v834 = vpack.c.b16 %v709, %v708
      %v835 = vpack.c.b16 %v711, %v710
      %v836 = vpack.c.b16 %v713, %v712
      %v837 = vpack.c.b16 %v715, %v714
      %v838 = vpack.c.b16 %v717, %v716
      %v839 = vpack.c.b16 %v719, %v718
      %v840 = vpack.c.b16 %v721, %v720
      %v841 = vpack.c.b16 %v723, %v722
      %v842 = vpack.c.b16 %v725, %v724
      %v843 = vpack.c.b16 %v727, %v726
      %v844 = vpack.c.b16 %v729, %v728
      %v845 = vpack.c.b16 %v731, %v730
      %v846 = vpack.c.b16 %v733, %v732
      %v847 = vpack.c.b16 %v735, %v734
      %v848 = vpack.c.b16 %v737, %v736
      %v849 = vpack.c.b16 %v739, %v738
      %v850 = vpack.c.b16 %v741, %v740
      %v851 = vpack.c.b16 %v743, %v742
      %v852 = vpack.c.b16 %v745, %v744
      %v853 = vpack.c.b16 %v747, %v746
      %v854 = vpack.c.b16 %v749, %v748
      %v855 = vpack.c.b16 %v751, %v750
      %v856 = vpack.c.b16 %v753, %v752
      %v857 = vpack.c.b16 %v755, %v754
      %v858 = vpack.c.b16 %v757, %v756
      %v859 = vpack.c.b16 %v759, %v758
      %v860 = vpack.c.b16 %v761, %v760
      %v861 = vpack.c.b16 %v763, %v762
      %v862 = vpack.c.b16 %v765, %v764
      %v863 = vpack.c.b16 %v767, %v766
      %v864 = vpack.c.b16 %v769, %v768
      %v865 = vpack.c.b16 %v771, %v770
      %v866 = vpack.c.b16 %v773, %v772
      %v867 = vpack.c.b16 %v775, %v774
      %v868 = vpack.c.b16 %v777, %v776
      %v869 = vpack.c.b16 %v779, %v778
      %v870 = vpack.c.b16 %v781, %v780
      %v871 = vpack.c.b16 %v783, %v782
      %v872 = vpack.c.b16 %v785, %v784
      %v873 = vpack.c.b16 %v787, %v786
      %v874 = vpack.c.b16 %v789, %v788
      %v875 = vpack.c.b16 %v791, %v790
      %v876 = vpack.c.b16 %v793, %v792
      %v877 = vpack.c.b16 %v795, %v794
      %v878 = vpack.c.b16 %v797, %v796
      %v879 = vpack.c.b16 %v799, %v798
      %v880 = vpack.c.b16 %v801, %v800
      %v881 = vpack.c.b16 %v803, %v802
      %v882 = vpack.c.b16 %v805, %v804
      %v883 = vpack.c.b16 %v807, %v806
      %v884 = vpack.c.b16 %v809, %v808
      %v885 = vpack.c.b16 %v811, %v810
      %v886 = vpack.c.b16 %v813, %v812
      %v887 = vpack.c.b16 %v815, %v814
      %v888 = vpack.c.b16 %v817, %v816
      %v889 = vpack.c.b16 %v819, %v818
      %v890 = vpack.c.b16 %v821, %v820
      %v891 = vpack.c.b16 %v823, %v822
      %v892 = vpack.c.b16 %v825, %v824
      %v893 = vpack.c.b16 %v827, %v826
      %v894 = vpack.c.b16 %v829, %v828
      %v895 = vpack.c.b16 %v831, %v830
      %960 = vmatprep.subr.bf16.mxu0 0
      %961 = vmatpush1.bf16.msra.mxu0 %v832
      %962 = vmatprep.subr.bf16.mxu0 0
      %963 = vmatpush1.bf16.msra.mxu0 %v833
      %964 = vmatprep.subr.bf16.mxu0 0
      %965 = vmatpush1.bf16.msra.mxu0 %v834
      %966 = vmatprep.subr.bf16.mxu0 0
      %967 = vmatpush1.bf16.msra.mxu0 %v835
      %968 = vmatprep.subr.bf16.mxu0 0
      %969 = vmatpush1.bf16.msra.mxu0 %v836
      %970 = vmatprep.subr.bf16.mxu0 0
      %971 = vmatpush1.bf16.msra.mxu0 %v837
      %972 = vmatprep.subr.bf16.mxu0 0
      %973 = vmatpush1.bf16.msra.mxu0 %v838
      %974 = vmatprep.subr.bf16.mxu0 0
      %975 = vmatpush1.bf16.msra.mxu0 %v839
      %976 = vmatprep.subr.bf16.mxu0 0
      %977 = vmatpush1.bf16.msra.mxu0 %v840
      %978 = vmatprep.subr.bf16.mxu0 0
      %979 = vmatpush1.bf16.msra.mxu0 %v841
      %980 = vmatprep.subr.bf16.mxu0 0
      %981 = vmatpush1.bf16.msra.mxu0 %v842
      %982 = vmatprep.subr.bf16.mxu0 0
      %983 = vmatpush1.bf16.msra.mxu0 %v843
      %984 = vmatprep.subr.bf16.mxu0 0
      %985 = vmatpush1.bf16.msra.mxu0 %v844
      %986 = vmatprep.subr.bf16.mxu0 0
      %987 = vmatpush1.bf16.msra.mxu0 %v845
      %988 = vmatprep.subr.bf16.mxu0 0
      %989 = vmatpush1.bf16.msra.mxu0 %v846
      %990 = vmatprep.subr.bf16.mxu0 0
      %991 = vmatpush1.bf16.msra.mxu0 %v847
      %992 = vmatprep.mubr.bf16.mxu0 %v513
      %993 = vmatmul.mubr.bf16.gmra.mrb[0].mxu0 %v512
      %v994 = vpop.f32.mrb[0].mxu0
      %v995 = vadd.f32 %v408, %v994
      %v996 = vpop.f32.mrb[0].mxu0
      %v997 = vpop.f32.mrb[0].mxu0
      %v998 = vadd.f32 %v409, %v997
      %v999 = vpop.f32.mrb[0].mxu0
      %1000 = vmatprep.mubr.bf16.mxu0 %v521
      %1001 = vmatmul.mubr.bf16.gmra.mrb[0].mxu0 %v520
      %v1002 = vpop.f32.mrb[0].mxu0
      %v1003 = vadd.f32 %v410, %v1002
      %v1004 = vpop.f32.mrb[0].mxu0
      %v1005 = vpop.f32.mrb[0].mxu0
      %v1006 = vadd.f32 %v411, %v1005
      %v1007 = vpop.f32.mrb[0].mxu0
      %1008 = vmatprep.mubr.bf16.mxu0 %v529
      %1009 = vmatmul.mubr.bf16.gmra.mrb[0].mxu0 %v528
      %v1010 = vpop.f32.mrb[0].mxu0
      %v1011 = vadd.f32 %v412, %v1010
      %v1012 = vpop.f32.mrb[0].mxu0
      %v1013 = vpop.f32.mrb[0].mxu0
      %v1014 = vadd.f32 %v413, %v1013
      %v1015 = vpop.f32.mrb[0].mxu0
      %1016 = vmatprep.mubr.bf16.mxu0 %v537
      %1017 = vmatmul.mubr.bf16.gmra.mrb[0].mxu0 %v536
      %v1018 = vpop.f32.mrb[0].mxu0
      %v1019 = vadd.f32 %v414, %v1018
      %v1020 = vpop.f32.mrb[0].mxu0
      %v1021 = vpop.f32.mrb[0].mxu0
      %v1022 = vadd.f32 %v415, %v1021
      %v1023 = vpop.f32.mrb[0].mxu0
      %1024 = vdwg.mxu0
      %1025 = vmatprep.subr.bf16.mxu0 0
      %1026 = vmatpush1.bf16.msra.mxu0 %v848
      %1027 = vmatprep.subr.bf16.mxu0 0
      %1028 = vmatpush1.bf16.msra.mxu0 %v849
      %1029 = vmatprep.subr.bf16.mxu0 0
      %1030 = vmatpush1.bf16.msra.mxu0 %v850
      %1031 = vmatprep.subr.bf16.mxu0 0
      %1032 = vmatpush1.bf16.msra.mxu0 %v851
      %1033 = vmatprep.subr.bf16.mxu0 0
      %1034 = vmatpush1.bf16.msra.mxu0 %v852
      %1035 = vmatprep.subr.bf16.mxu0 0
      %1036 = vmatpush1.bf16.msra.mxu0 %v853
      %1037 = vmatprep.subr.bf16.mxu0 0
      %1038 = vmatpush1.bf16.msra.mxu0 %v854
      %1039 = vmatprep.subr.bf16.mxu0 0
      %1040 = vmatpush1.bf16.msra.mxu0 %v855
      %1041 = vmatprep.subr.bf16.mxu0 0
      %1042 = vmatpush1.bf16.msra.mxu0 %v856
      %1043 = vmatprep.subr.bf16.mxu0 0
      %1044 = vmatpush1.bf16.msra.mxu0 %v857
      %1045 = vmatprep.subr.bf16.mxu0 0
      %1046 = vmatpush1.bf16.msra.mxu0 %v858
      %1047 = vmatprep.subr.bf16.mxu0 0
      %1048 = vmatpush1.bf16.msra.mxu0 %v859
      %1049 = vmatprep.subr.bf16.mxu0 0
      %1050 = vmatpush1.bf16.msra.mxu0 %v860
      %1051 = vmatprep.subr.bf16.mxu0 0
      %1052 = vmatpush1.bf16.msra.mxu0 %v861
      %1053 = vmatprep.subr.bf16.mxu0 0
      %1054 = vmatpush1.bf16.msra.mxu0 %v862
      %1055 = vmatprep.subr.bf16.mxu0 0
      %1056 = vmatpush1.bf16.msra.mxu0 %v863
      %1057 = vmatprep.mubr.bf16.mxu0 %v515
      %1058 = vmatmul.mubr.bf16.gmra.mrb[0].mxu0 %v514
      %v1059 = vpop.f32.mrb[0].mxu0
      %v1060 = vadd.f32 %v995, %v1059
      %v1061 = vpop.f32.mrb[0].mxu0
      %v1062 = vpop.f32.mrb[0].mxu0
      %v1063 = vadd.f32 %v998, %v1062
      %v1064 = vpop.f32.mrb[0].mxu0
      %1065 = vmatprep.mubr.bf16.mxu0 %v523
      %1066 = vmatmul.mubr.bf16.gmra.mrb[0].mxu0 %v522
      %v1067 = vpop.f32.mrb[0].mxu0
      %v1068 = vadd.f32 %v1003, %v1067
      %v1069 = vpop.f32.mrb[0].mxu0
      %v1070 = vpop.f32.mrb[0].mxu0
      %v1071 = vadd.f32 %v1006, %v1070
      %v1072 = vpop.f32.mrb[0].mxu0
      %1073 = vmatprep.mubr.bf16.mxu0 %v531
      %1074 = vmatmul.mubr.bf16.gmra.mrb[0].mxu0 %v530
      %v1075 = vpop.f32.mrb[0].mxu0
      %v1076 = vadd.f32 %v1011, %v1075
      %v1077 = vpop.f32.mrb[0].mxu0
      %v1078 = vpop.f32.mrb[0].mxu0
      %v1079 = vadd.f32 %v1014, %v1078
      %v1080 = vpop.f32.mrb[0].mxu0
      %1081 = vmatprep.mubr.bf16.mxu0 %v539
      %1082 = vmatmul.mubr.bf16.gmra.mrb[0].mxu0 %v538
      %v1083 = vpop.f32.mrb[0].mxu0
      %v1084 = vadd.f32 %v1019, %v1083
      %v1085 = vpop.f32.mrb[0].mxu0
      %v1086 = vpop.f32.mrb[0].mxu0
      %v1087 = vadd.f32 %v1022, %v1086
      %v1088 = vpop.f32.mrb[0].mxu0
      %1089 = vdwg.mxu0
      %1090 = vmatprep.subr.bf16.mxu0 0
      %1091 = vmatpush1.bf16.msra.mxu0 %v864
      %1092 = vmatprep.subr.bf16.mxu0 0
      %1093 = vmatpush1.bf16.msra.mxu0 %v865
      %1094 = vmatprep.subr.bf16.mxu0 0
      %1095 = vmatpush1.bf16.msra.mxu0 %v866
      %1096 = vmatprep.subr.bf16.mxu0 0
      %1097 = vmatpush1.bf16.msra.mxu0 %v867
      %1098 = vmatprep.subr.bf16.mxu0 0
      %1099 = vmatpush1.bf16.msra.mxu0 %v868
      %1100 = vmatprep.subr.bf16.mxu0 0
      %1101 = vmatpush1.bf16.msra.mxu0 %v869
      %1102 = vmatprep.subr.bf16.mxu0 0
      %1103 = vmatpush1.bf16.msra.mxu0 %v870
      %1104 = vmatprep.subr.bf16.mxu0 0
      %1105 = vmatpush1.bf16.msra.mxu0 %v871
      %1106 = vmatprep.subr.bf16.mxu0 0
      %1107 = vmatpush1.bf16.msra.mxu0 %v872
      %1108 = vmatprep.subr.bf16.mxu0 0
      %1109 = vmatpush1.bf16.msra.mxu0 %v873
      %1110 = vmatprep.subr.bf16.mxu0 0
      %1111 = vmatpush1.bf16.msra.mxu0 %v874
      %1112 = vmatprep.subr.bf16.mxu0 0
      %1113 = vmatpush1.bf16.msra.mxu0 %v875
      %1114 = vmatprep.subr.bf16.mxu0 0
      %1115 = vmatpush1.bf16.msra.mxu0 %v876
      %1116 = vmatprep.subr.bf16.mxu0 0
      %1117 = vmatpush1.bf16.msra.mxu0 %v877
      %1118 = vmatprep.subr.bf16.mxu0 0
      %1119 = vmatpush1.bf16.msra.mxu0 %v878
      %1120 = vmatprep.subr.bf16.mxu0 0
      %1121 = vmatpush1.bf16.msra.mxu0 %v879
      %1122 = vmatprep.mubr.bf16.mxu0 %v517
      %1123 = vmatmul.mubr.bf16.gmra.mrb[0].mxu0 %v516
      %v1124 = vpop.f32.mrb[0].mxu0
      %v1125 = vadd.f32 %v1060, %v1124
      %v1126 = vpop.f32.mrb[0].mxu0
      %v1127 = vpop.f32.mrb[0].mxu0
      %v1128 = vadd.f32 %v1063, %v1127
      %v1129 = vpop.f32.mrb[0].mxu0
      %1130 = vmatprep.mubr.bf16.mxu0 %v525
      %1131 = vmatmul.mubr.bf16.gmra.mrb[0].mxu0 %v524
      %v1132 = vpop.f32.mrb[0].mxu0
      %v1133 = vadd.f32 %v1068, %v1132
      %v1134 = vpop.f32.mrb[0].mxu0
      %v1135 = vpop.f32.mrb[0].mxu0
      %v1136 = vadd.f32 %v1071, %v1135
      %v1137 = vpop.f32.mrb[0].mxu0
      %1138 = vmatprep.mubr.bf16.mxu0 %v533
      %1139 = vmatmul.mubr.bf16.gmra.mrb[0].mxu0 %v532
      %v1140 = vpop.f32.mrb[0].mxu0
      %v1141 = vadd.f32 %v1076, %v1140
      %v1142 = vpop.f32.mrb[0].mxu0
      %v1143 = vpop.f32.mrb[0].mxu0
      %v1144 = vadd.f32 %v1079, %v1143
      %v1145 = vpop.f32.mrb[0].mxu0
      %1146 = vmatprep.mubr.bf16.mxu0 %v541
      %1147 = vmatmul.mubr.bf16.gmra.mrb[0].mxu0 %v540
      %v1148 = vpop.f32.mrb[0].mxu0
      %v1149 = vadd.f32 %v1084, %v1148
      %v1150 = vpop.f32.mrb[0].mxu0
      %v1151 = vpop.f32.mrb[0].mxu0
      %v1152 = vadd.f32 %v1087, %v1151
      %v1153 = vpop.f32.mrb[0].mxu0
      %1154 = vdwg.mxu0
      %1155 = vmatprep.subr.bf16.mxu0 0
      %1156 = vmatpush1.bf16.msra.mxu0 %v880
      %1157 = vmatprep.subr.bf16.mxu0 0
      %1158 = vmatpush1.bf16.msra.mxu0 %v881
      %1159 = vmatprep.subr.bf16.mxu0 0
      %1160 = vmatpush1.bf16.msra.mxu0 %v882
      %1161 = vmatprep.subr.bf16.mxu0 0
      %1162 = vmatpush1.bf16.msra.mxu0 %v883
      %1163 = vmatprep.subr.bf16.mxu0 0
      %1164 = vmatpush1.bf16.msra.mxu0 %v884
      %1165 = vmatprep.subr.bf16.mxu0 0
      %1166 = vmatpush1.bf16.msra.mxu0 %v885
      %1167 = vmatprep.subr.bf16.mxu0 0
      %1168 = vmatpush1.bf16.msra.mxu0 %v886
      %1169 = vmatprep.subr.bf16.mxu0 0
      %1170 = vmatpush1.bf16.msra.mxu0 %v887
      %1171 = vmatprep.subr.bf16.mxu0 0
      %1172 = vmatpush1.bf16.msra.mxu0 %v888
      %1173 = vmatprep.subr.bf16.mxu0 0
      %1174 = vmatpush1.bf16.msra.mxu0 %v889
      %1175 = vmatprep.subr.bf16.mxu0 0
      %1176 = vmatpush1.bf16.msra.mxu0 %v890
      %1177 = vmatprep.subr.bf16.mxu0 0
      %1178 = vmatpush1.bf16.msra.mxu0 %v891
      %1179 = vmatprep.subr.bf16.mxu0 0
      %1180 = vmatpush1.bf16.msra.mxu0 %v892
      %1181 = vmatprep.subr.bf16.mxu0 0
      %1182 = vmatpush1.bf16.msra.mxu0 %v893
      %1183 = vmatprep.subr.bf16.mxu0 0
      %1184 = vmatpush1.bf16.msra.mxu0 %v894
      %1185 = vmatprep.subr.bf16.mxu0 0
      %1186 = vmatpush1.bf16.msra.mxu0 %v895
      %1187 = vmatprep.mubr.bf16.mxu0 %v519
      %1188 = vmatmul.mubr.bf16.gmra.mrb[0].mxu0 %v518
      %v1189 = vpop.f32.mrb[0].mxu0
      %v1190 = vadd.f32 %v1125, %v1189
      %v1191 = vpop.f32.mrb[0].mxu0
      %v1192 = vpop.f32.mrb[0].mxu0
      %v1193 = vadd.f32 %v1128, %v1192
      %v1194 = vpop.f32.mrb[0].mxu0
      %1195 = vmatprep.mubr.bf16.mxu0 %v527
      %1196 = vmatmul.mubr.bf16.gmra.mrb[0].mxu0 %v526
      %v1197 = vpop.f32.mrb[0].mxu0
      %v1198 = vadd.f32 %v1133, %v1197
      %v1199 = vpop.f32.mrb[0].mxu0
      %v1200 = vpop.f32.mrb[0].mxu0
      %v1201 = vadd.f32 %v1136, %v1200
      %v1202 = vpop.f32.mrb[0].mxu0
      %1203 = vmatprep.mubr.bf16.mxu0 %v535
      %1204 = vmatmul.mubr.bf16.gmra.mrb[0].mxu0 %v534
      %v1205 = vpop.f32.mrb[0].mxu0
      %v1206 = vadd.f32 %v1141, %v1205
      %v1207 = vpop.f32.mrb[0].mxu0
      %v1208 = vpop.f32.mrb[0].mxu0
      %v1209 = vadd.f32 %v1144, %v1208
      %v1210 = vpop.f32.mrb[0].mxu0
      %1211 = vmatprep.mubr.bf16.mxu0 %v543
      %1212 = vmatmul.mubr.bf16.gmra.mrb[0].mxu0 %v542
      %v1213 = vpop.f32.mrb[0].mxu0
      %v1214 = vadd.f32 %v1149, %v1213
      %v1215 = vpop.f32.mrb[0].mxu0
      %v1216 = vpop.f32.mrb[0].mxu0
      %v1217 = vadd.f32 %v1152, %v1216
      %v1218 = vpop.f32.mrb[0].mxu0
      %1219 = vdwg.mxu0
      %vm1220 = vcmp.ge.f32.partialorder %v1190, 0.0
      %vm1221 = vcmp.ge.f32.partialorder %v1193, 0.0
      %vm1222 = vcmp.ge.f32.partialorder %v1198, 0.0
      %vm1223 = vcmp.ge.f32.partialorder %v1201, 0.0
      %vm1224 = vcmp.ge.f32.partialorder %v1206, 0.0
      %vm1225 = vcmp.ge.f32.partialorder %v1209, 0.0
      %vm1226 = vcmp.ge.f32.partialorder %v1214, 0.0
      %vm1227 = vcmp.ge.f32.partialorder %v1217, 0.0
      %v1228 = vmul.f32 %v1190, 0.2
      %v1229 = vmul.f32 %v1193, 0.2
      %v1230 = vmul.f32 %v1198, 0.2
      %v1231 = vmul.f32 %v1201, 0.2
      %v1232 = vmul.f32 %v1206, 0.2
      %v1233 = vmul.f32 %v1209, 0.2
      %v1234 = vmul.f32 %v1214, 0.2
      %v1235 = vmul.f32 %v1217, 0.2
      %v1236 = vsel %vm1220, %v1190, %v1228
      %v1237 = vsel %vm1221, %v1193, %v1229
      %v1238 = vsel %vm1222, %v1198, %v1230
      %v1239 = vsel %vm1223, %v1201, %v1231
      %v1240 = vsel %vm1224, %v1206, %v1232
      %v1241 = vsel %vm1225, %v1209, %v1233
      %v1242 = vsel %vm1226, %v1214, %v1234
      %v1243 = vsel %vm1227, %v1217, %v1235
      %vm1244 = vcmask 523264
      %1245 = vst.msk [vmem:[%s246] sm:$0xff] %vm1244, %v1236
      %1246 = vst.msk [vmem:[%s246 + $0x8] sm:$0xff] %vm1244, %v1237
      %1247 = vst.msk [vmem:[%s246 + $0x10] sm:$0xff] %vm1244, %v1238
      %1248 = vst.msk [vmem:[%s246 + $0x18] sm:$0xff] %vm1244, %v1239
      %1249 = vst.msk [vmem:[%s246 + $0x20] sm:$0xff] %vm1244, %v1240
      %1250 = vst.msk [vmem:[%s246 + $0x28] sm:$0xff] %vm1244, %v1241
      %1251 = vst.msk [vmem:[%s246 + $0x30] sm:$0xff] %vm1244, %v1242
      %1252 = vst.msk [vmem:[%s246 + $0x38] sm:$0xff] %vm1244, %v1243
      %p1253 = scmp.lt.s32.totalorder %s18, 1
      %s1254 = scalar_select %p1253, %s18, 1
      %p1255 = scmp.lt.s32.totalorder %s19, 3
      %s1256 = scalar_select %p1255, %s19, 3
      %s1257 = smul.addr %s1256, 8
      %s1258 = smul.addr %s1254, 32
      %s1259 = sadd.s32 %s1257, %s1258
      %s1260 = smul.addr %s1259, 8
      %s1261 = scalar_lea.vmem %s3, %s1260
      // Predicated region
      $region33: #{plane_decoder_forward.8} parent=31 // pred_check
        %p1262 = pneg %p126
      $region34: #{plane_decoder_forward.8} parent=31 // pred_check_branch
        %1264 = sbr.rel (%p1262) target = $region36
      $region35: #{plane_decoder_forward.8} parent=31 // pred_region
        _
      $region36: #{plane_decoder_forward.8} parent=31 // pred_fallthru
        _
    $region32: #{plane_decoder_forward.8} parent=5 // pred_fallthru
      _
    %p1265 = scmp.le.s32.totalorder 2, %s9
    // Predicated region
    $region37: #{plane_decoder_forward.8} parent=5 // pred_check
      %p1266 = pneg %p1265
    $region38: #{plane_decoder_forward.8} parent=5 // pred_check_branch
      %1268 = sbr.rel (%p1266) target = $region40
    $region39: #{plane_decoder_forward.8} parent=5 // pred_region
      %s1269 = ssub.s32 %s9, 2
      // Predicated region
      $region41: #{plane_decoder_forward.8} parent=39 // pred_check
        %p1270 = pneg %p132
      $region42: #{plane_decoder_forward.8} parent=39 // pred_check_branch
        %1272 = sbr.rel (%p1270) target = $region44
      $region43: #{plane_decoder_forward.8} parent=39 // pred_region
        %p1273 = scmp.lt.s32.totalorder %s20, 1
        %s1274 = scalar_select %p1273, %s20, 1
        %p1275 = scmp.lt.s32.totalorder %s21, 3
        %s1276 = scalar_select %p1275, %s21, 3
        %s1277 = smul.addr %s1276, 8
        %s1278 = smul.addr %s1274, 32
        %s1279 = sadd.s32 %s1277, %s1278
        %s1280 = smul.addr %s1279, 8
        %s1281 = scalar_lea.vmem %s3, %s1280
      $region44: #{plane_decoder_forward.8} parent=39 // pred_fallthru
        _
    $region40: #{plane_decoder_forward.8} parent=5 // pred_fallthru
      _
  $region6: #{plane_decoder_forward.8} parent=0 // loop_footer
    %s13 = sadd.s32 1, %s9
  $region7: #{plane_decoder_forward.8} parent=0 // loop_footer_branch
    %8 = sbr.rel target = $region3
  $region8: #{plane_decoder_forward.8} parent=0 // loop_exit
    _

// kernel: plane_decoder_forward.10
$region0: #{plane_decoder_forward.10}
  #allocation0 [shape = 'u32[]', space=smem, size = 0x4, offset = 0x4, fixed_abs, tag = 'smem constant byte address 0x4 - core index']
  #allocation1 [shape = 'u32[144,128]{1,0:T(1,128)}', space=vmem, size = 0x12000, scoped, tag = 'internal scratch']
  %s0 = inlined_call_operand.vmem [shape: bf16[64,576], index: 0, kind: input, shape index: {}]
  %s1 = inlined_call_operand.vmem [shape: bf16[576,128], index: 1, kind: input, shape index: {}]
  %s2 = inlined_call_operand.vmem [shape: f32[64,1], index: 2, kind: input, shape index: {}]
  %s3 = inlined_call_operand.vmem [shape: f32[64,128], index: 3, kind: output, shape index: {}]
  %s4 = sld [smem:[#allocation0]]
  $region45: #{plane_decoder_forward.10} parent=0
    _
  %s6 = ssub.s32 1, %s4
  %s7 = scalar_select 0, %s6, %s4
  loop: start=0, step=1, limit=4
  $region2: #{plane_decoder_forward.10} parent=0 // loop_pre_header
    _
  $region3: #{plane_decoder_forward.10} parent=0 // loop_header
    %s9 = sphi 0, %s13
    %p10 = scmp.ge.s32.totalorder %s9, 4
    %s16 = sphi 0, %s28
    %s17 = sphi 0, %s24
    %s18 = sphi 0, %s16
    %s19 = sphi 0, %s17
    %s20 = sphi 0, %s18
    %s21 = sphi 0, %s19
    %s31 = sphi 0, %s33
    %s34 = sphi 0, %s31
    %s35 = sphi 0, %s34
    %s51 = sphi 0, %s35
    %s57 = sphi 0, %s59
    %s60 = sphi 0, %s57
    %s61 = sphi 0, %s60
    %s77 = sphi 0, %s61
    %s83 = sphi 0, %s85
    %s86 = sphi 0, %s83
    %s87 = sphi 0, %s86
    %s103 = sphi 0, %s87
    %s111 = sphi 0, %s113
    %s114 = sphi 0, %s111
    %s115 = sphi 0, %s114
    %s131 = sphi 0, %s115
  $region4: #{plane_decoder_forward.10} parent=0 // loop_header_branch
    %12 = sbr.rel (%p10) target = $region8
  $region5: #{plane_decoder_forward.10} parent=0 // loop_body
    %s14 = ssub.s32 %s9, 1
    %s15 = ssub.s32 %s9, 2
    %s22 = sadd.s32 1, %s17
    %p23 = scmp.ge.s32.totalorder %s22, 1
    %s24 = scalar_select %p23, 0, %s22
    %s25 = sadd.s32 1, %s16
    %s26 = scalar_select %p23, %s25, %s16
    %p27 = scmp.ge.s32.totalorder %s26, 2
    %s28 = scalar_select %p27, 0, %s26
    %s29 = ssub.s32 %s16, %s28
    %p30 = scmp.eq.s32.totalorder %s29, 0
    %s32 = sadd.s32 %s31, 1
    %s33 = scalar_select %p30, %s31, %s32
    %p36 = pneg %p30
    %p37 = scmp.eq.s32.totalorder %s9, 1
    %p38 = por %p36, %p37
    %p39 = scmp.ne.s32.totalorder %s31, %s34
    %p40 = scmp.eq.s32.totalorder %s9, 0
    %p41 = por %p39, %p40
    %p42 = scmp.ne.s32.totalorder %s31, %s34
    %p43 = scmp.eq.s32.totalorder %s14, 1
    %p44 = por %p42, %p43
    %p45 = scmp.ne.s32.totalorder %s34, %s35
    %p46 = scmp.eq.s32.totalorder %s14, 0
    %p47 = por %p45, %p46
    %p48 = scmp.ne.s32.totalorder %s34, %s35
    %p49 = scmp.eq.s32.totalorder %s15, 1
    %p50 = por %p48, %p49
    %p52 = scmp.ne.s32.totalorder %s35, %s51
    %p53 = scmp.eq.s32.totalorder %s15, 0
    %p54 = por %p52, %p53
    %s55 = ssub.s32 %s17, %s24
    %p56 = scmp.eq.s32.totalorder %s55, 0
    %s58 = sadd.s32 %s57, 1
    %s59 = scalar_select %p56, %s57, %s58
    %p62 = pneg %p56
    %p63 = scmp.eq.s32.totalorder %s9, 1
    %p64 = por %p62, %p63
    %p65 = scmp.ne.s32.totalorder %s57, %s60
    %p66 = scmp.eq.s32.totalorder %s9, 0
    %p67 = por %p65, %p66
    %p68 = scmp.ne.s32.totalorder %s57, %s60
    %p69 = scmp.eq.s32.totalorder %s14, 1
    %p70 = por %p68, %p69
    %p71 = scmp.ne.s32.totalorder %s60, %s61
    %p72 = scmp.eq.s32.totalorder %s14, 0
    %p73 = por %p71, %p72
    %p74 = scmp.ne.s32.totalorder %s60, %s61
    %p75 = scmp.eq.s32.totalorder %s15, 1
    %p76 = por %p74, %p75
    %p78 = scmp.ne.s32.totalorder %s61, %s77
    %p79 = scmp.eq.s32.totalorder %s15, 0
    %p80 = por %p78, %p79
    %s81 = ssub.s32 %s16, %s28
    %p82 = scmp.eq.s32.totalorder %s81, 0
    %s84 = sadd.s32 %s83, 1
    %s85 = scalar_select %p82, %s83, %s84
    %p88 = pneg %p82
    %p89 = scmp.eq.s32.totalorder %s9, 1
    %p90 = por %p88, %p89
    %p91 = scmp.ne.s32.totalorder %s83, %s86
    %p92 = scmp.eq.s32.totalorder %s9, 0
    %p93 = por %p91, %p92
    %p94 = scmp.ne.s32.totalorder %s83, %s86
    %p95 = scmp.eq.s32.totalorder %s14, 1
    %p96 = por %p94, %p95
    %p97 = scmp.ne.s32.totalorder %s86, %s87
    %p98 = scmp.eq.s32.totalorder %s14, 0
    %p99 = por %p97, %p98
    %p100 = scmp.ne.s32.totalorder %s86, %s87
    %p101 = scmp.eq.s32.totalorder %s15, 1
    %p102 = por %p100, %p101
    %p104 = scmp.ne.s32.totalorder %s87, %s103
    %p105 = scmp.eq.s32.totalorder %s15, 0
    %p106 = por %p104, %p105
    %s107 = ssub.s32 %s16, %s28
    %s108 = ssub.s32 %s17, %s24
    %s109 = sor.u32 %s107, %s108
    %p110 = scmp.eq.s32.totalorder %s109, 0
    %s112 = sadd.s32 %s111, 1
    %s113 = scalar_select %p110, %s111, %s112
    %p116 = pneg %p110
    %p117 = scmp.eq.s32.totalorder %s9, 1
    %p118 = por %p116, %p117
    %p119 = scmp.ne.s32.totalorder %s111, %s114
    %p120 = scmp.eq.s32.totalorder %s9, 0
    %p121 = por %p119, %p120
    %p122 = scmp.ne.s32.totalorder %s111, %s114
    %p123 = scmp.eq.s32.totalorder %s14, 1
    %p124 = por %p122, %p123
    %p125 = scmp.ne.s32.totalorder %s114, %s115
    %p126 = scmp.eq.s32.totalorder %s14, 0
    %p127 = por %p125, %p126
    %p128 = scmp.ne.s32.totalorder %s114, %s115
    %p129 = scmp.eq.s32.totalorder %s15, 1
    %p130 = por %p128, %p129
    %p132 = scmp.ne.s32.totalorder %s115, %s131
    %p133 = scmp.eq.s32.totalorder %s15, 0
    %p134 = por %p132, %p133
    %p135 = scmp.le.s32.totalorder 1, %s9
    %p136 = scmp.lt.s32.totalorder %s9, 3
    %p137 = pnand %p135, %p136
    %p138 = pneg %p137
    // Predicated region
    $region9: #{plane_decoder_forward.10} parent=5 // pred_check
      _
    $region10: #{plane_decoder_forward.10} parent=5 // pred_check_branch
      %140 = sbr.rel (%p137) target = $region12
    $region11: #{plane_decoder_forward.10} parent=5 // pred_region
      %s141 = ssub.s32 %s9, 1
      // Predicated region
      $region13: #{plane_decoder_forward.10} parent=11 // pred_check
        %p142 = pneg %p73
      $region14: #{plane_decoder_forward.10} parent=11 // pred_check_branch
        %144 = sbr.rel (%p142) target = $region16
      $region15: #{plane_decoder_forward.10} parent=11 // pred_region
        %p145 = scmp.lt.s32.totalorder %s19, 0
        %s146 = scalar_select %p145, %s19, 0
        %s147 = smul.addr %s146, 4
        %s148 = scalar_lea.vmem %s1, %s147
      $region16: #{plane_decoder_forward.10} parent=11 // pred_fallthru
        _
    $region12: #{plane_decoder_forward.10} parent=5 // pred_fallthru
      _
    %p149 = scmp.lt.s32.totalorder %s9, 2
    // Predicated region
    $region17: #{plane_decoder_forward.10} parent=5 // pred_check
      %p150 = pneg %p149
    $region18: #{plane_decoder_forward.10} parent=5 // pred_check_branch
      %152 = sbr.rel (%p150) target = $region20
    $region19: #{plane_decoder_forward.10} parent=5 // pred_region
      // Predicated region
      $region21: #{plane_decoder_forward.10} parent=19 // pred_check
        %p153 = pneg %p41
      $region22: #{plane_decoder_forward.10} parent=19 // pred_check_branch
        %155 = sbr.rel (%p153) target = $region24
      $region23: #{plane_decoder_forward.10} parent=19 // pred_region
        %s156 = smul.u32 4, %s16
        %p157 = scmp.lt.s32.totalorder %s156, 7
        %s158 = scalar_select %p157, %s156, 7
        %s159 = smul.addr %s158, 5
        %s160 = smul.addr %s159, 4
        %s161 = scalar_lea.vmem %s0, %s160
        %s162 = smul.u32 4, %s16
      $region24: #{plane_decoder_forward.10} parent=19 // pred_fallthru
        _
      // Predicated region
      $region25: #{plane_decoder_forward.10} parent=19 // pred_check
        %p163 = pneg %p93
      $region26: #{plane_decoder_forward.10} parent=19 // pred_check_branch
        %165 = sbr.rel (%p163) target = $region28
      $region27: #{plane_decoder_forward.10} parent=19 // pred_region
        %s166 = smul.u32 4, %s16
        %p167 = scmp.lt.s32.totalorder %s166, 7
        %s168 = scalar_select %p167, %s166, 7
        %s169 = smul.addr %s168, 8
        %s170 = scalar_lea.vmem %s2, %s169
        %s171 = smul.u32 4, %s16
      $region28: #{plane_decoder_forward.10} parent=19 // pred_fallthru
        _
    $region20: #{plane_decoder_forward.10} parent=5 // pred_fallthru
      _
    %p172 = scmp.le.s32.totalorder 1, %s9
    %p173 = scmp.lt.s32.totalorder %s9, 3
    %p174 = pnand %p172, %p173
    %p175 = pneg %p174
    // Predicated region
    $region29: #{plane_decoder_forward.10} parent=5 // pred_check
      _
    $region30: #{plane_decoder_forward.10} parent=5 // pred_check_branch
      %177 = sbr.rel (%p174) target = $region32
    $region31: #{plane_decoder_forward.10} parent=5 // pred_region
      %s178 = ssub.s32 %s9, 1
      %s179 = smul.u32 4, %s18
      %p180 = scmp.lt.s32.totalorder %s179, 7
      %s181 = scalar_select %p180, %s179, 7
      %s182 = smul.addr %s181, 5
      %s183 = smul.addr %s182, 4
      %s184 = scalar_lea.vmem %s0, %s183
      %p185 = pneg %p47
      %p186 = pneg %p44
      %p187 = scmp.lt.s32.totalorder %s19, 0
      %s188 = scalar_select %p187, %s19, 0
      %s189 = smul.addr %s188, 4
      %s190 = scalar_lea.vmem %s1, %s189
      %p191 = pneg %p73
      %p192 = pneg %p70
      %s193 = smul.u32 4, %s18
      %p194 = scmp.lt.s32.totalorder %s193, 7
      %s195 = scalar_select %p194, %s193, 7
      %s196 = smul.addr %s195, 8
      %s197 = scalar_lea.vmem %s2, %s196
      %p198 = pneg %p99
      %p199 = pneg %p96
      %p200 = pneg %p127
      %p201 = pneg %p124
      %s202 = smul.u32 4, %s18
      %p203 = scmp.lt.s32.totalorder %s202, 7
      %s204 = scalar_select %p203, %s202, 7
      %p205 = scmp.lt.s32.totalorder %s19, 0
      %s206 = scalar_select %p205, %s19, 0
      %s207 = sadd.s32 %s206, %s204
      %s208 = smul.addr %s207, 8
      %s209 = scalar_lea.vmem %s3, %s208
      %s210 = smul.u32 4, %s18
      %p211 = scmp.lt.s32.totalorder %s210, 7
      %s212 = scalar_select %p211, %s210, 7
      %s213 = smul.addr %s212, 5
      %s214 = smul.addr %s213, 4
      %s215 = scalar_lea.vmem %s0, %s214
      %s216 = smul.u32 4, %s18
      %p217 = scmp.lt.s32.totalorder %s19, 0
      %s218 = scalar_select %p217, %s19, 0
      %s219 = smul.addr %s218, 4
      %s220 = scalar_lea.vmem %s1, %s219
      %s221 = smul.u32 4, %s18
      %p222 = scmp.lt.s32.totalorder %s221, 7
      %s223 = scalar_select %p222, %s221, 7
      %s224 = smul.addr %s223, 8
      %s225 = scalar_lea.vmem %s2, %s224
      %s226 = smul.u32 4, %s18
      %s227 = smul.u32 4, %s18
      %p228 = scmp.lt.s32.totalorder %s227, 7
      %s229 = scalar_select %p228, %s227, 7
      %p230 = scmp.lt.s32.totalorder %s19, 0
      %s231 = scalar_select %p230, %s19, 0
      %s232 = sadd.s32 %s231, %s229
      %s233 = smul.addr %s232, 8
      %s234 = scalar_lea.vmem %s3, %s233
      %s235 = smul.u32 4, %s18
      %v237 = vld [vmem:[%s215] sm:$0xff]
      %v238 = vld [vmem:[%s215 + $0x8] sm:$0xff]
      %v239 = vld [vmem:[%s215 + $0x10] sm:$0xf]
      %v240 = vld [vmem:[%s215 + $0x14] sm:$0xff]
      %v241 = vld [vmem:[%s215 + $0x1c] sm:$0xff]
      %v242 = vld [vmem:[%s215 + $0x24] sm:$0xf]
      %v243 = vld [vmem:[%s215 + $0x28] sm:$0xff]
      %v244 = vld [vmem:[%s215 + $0x30] sm:$0xff]
      %v245 = vld [vmem:[%s215 + $0x38] sm:$0xf]
      %v246 = vld [vmem:[%s215 + $0x3c] sm:$0xff]
      %v247 = vld [vmem:[%s215 + $0x44] sm:$0xff]
      %v248 = vld [vmem:[%s215 + $0x4c] sm:$0xf]
      %v249 = vld [vmem:[%s220] sm:$0xf]
      %v250 = vld [vmem:[%s220 + $0x4] sm:$0xf]
      %v251 = vld [vmem:[%s220 + $0x8] sm:$0xf]
      %v252 = vld [vmem:[%s220 + $0xc] sm:$0xf]
      %v253 = vld [vmem:[%s220 + $0x10] sm:$0xf]
      %v254 = vld [vmem:[%s220 + $0x14] sm:$0xf]
      %v255 = vld [vmem:[%s220 + $0x18] sm:$0xf]
      %v256 = vld [vmem:[%s220 + $0x1c] sm:$0xf]
      %v257 = vld [vmem:[%s220 + $0x20] sm:$0xf]
      %v258 = vld [vmem:[%s220 + $0x24] sm:$0xf]
      %v259 = vld [vmem:[%s220 + $0x28] sm:$0xf]
      %v260 = vld [vmem:[%s220 + $0x2c] sm:$0xf]
      %v261 = vld [vmem:[%s220 + $0x30] sm:$0xf]
      %v262 = vld [vmem:[%s220 + $0x34] sm:$0xf]
      %v263 = vld [vmem:[%s220 + $0x38] sm:$0xf]
      %v264 = vld [vmem:[%s220 + $0x3c] sm:$0xf]
      %v265 = vld [vmem:[%s220 + $0x40] sm:$0xf]
      %v266 = vld [vmem:[%s220 + $0x44] sm:$0xf]
      %v267 = vld [vmem:[%s220 + $0x48] sm:$0xf]
      %v268 = vld [vmem:[%s220 + $0x4c] sm:$0xf]
      %v269 = vld [vmem:[%s220 + $0x50] sm:$0xf]
      %v270 = vld [vmem:[%s220 + $0x54] sm:$0xf]
      %v271 = vld [vmem:[%s220 + $0x58] sm:$0xf]
      %v272 = vld [vmem:[%s220 + $0x5c] sm:$0xf]
      %v273 = vld [vmem:[%s220 + $0x60] sm:$0xf]
      %v274 = vld [vmem:[%s220 + $0x64] sm:$0xf]
      %v275 = vld [vmem:[%s220 + $0x68] sm:$0xf]
      %v276 = vld [vmem:[%s220 + $0x6c] sm:$0xf]
      %v277 = vld [vmem:[%s220 + $0x70] sm:$0xf]
      %v278 = vld [vmem:[%s220 + $0x74] sm:$0xf]
      %v279 = vld [vmem:[%s220 + $0x78] sm:$0xf]
      %v280 = vld [vmem:[%s220 + $0x7c] sm:$0xf]
      %v281 = vld [vmem:[%s220 + $0x80] sm:$0xf]
      %v282 = vld [vmem:[%s220 + $0x84] sm:$0xf]
      %v283 = vld [vmem:[%s220 + $0x88] sm:$0xf]
      %v284 = vld [vmem:[%s220 + $0x8c] sm:$0xf]
      %v285 = vld [vmem:[%s220 + $0x90] sm:$0xf]
      %v286 = vld [vmem:[%s220 + $0x94] sm:$0xf]
      %v287 = vld [vmem:[%s220 + $0x98] sm:$0xf]
      %v288 = vld [vmem:[%s220 + $0x9c] sm:$0xf]
      %v289 = vld [vmem:[%s220 + $0xa0] sm:$0xf]
      %v290 = vld [vmem:[%s220 + $0xa4] sm:$0xf]
      %v291 = vld [vmem:[%s220 + $0xa8] sm:$0xf]
      %v292 = vld [vmem:[%s220 + $0xac] sm:$0xf]
      %v293 = vld [vmem:[%s220 + $0xb0] sm:$0xf]
      %v294 = vld [vmem:[%s220 + $0xb4] sm:$0xf]
      %v295 = vld [vmem:[%s220 + $0xb8] sm:$0xf]
      %v296 = vld [vmem:[%s220 + $0xbc] sm:$0xf]
      %v297 = vld [vmem:[%s220 + $0xc0] sm:$0xf]
      %v298 = vld [vmem:[%s220 + $0xc4] sm:$0xf]
      %v299 = vld [vmem:[%s220 + $0xc8] sm:$0xf]
      %v300 = vld [vmem:[%s220 + $0xcc] sm:$0xf]
      %v301 = vld [vmem:[%s220 + $0xd0] sm:$0xf]
      %v302 = vld [vmem:[%s220 + $0xd4] sm:$0xf]
      %v303 = vld [vmem:[%s220 + $0xd8] sm:$0xf]
      %v304 = vld [vmem:[%s220 + $0xdc] sm:$0xf]
      %v305 = vld [vmem:[%s220 + $0xe0] sm:$0xf]
      %v306 = vld [vmem:[%s220 + $0xe4] sm:$0xf]
      %v307 = vld [vmem:[%s220 + $0xe8] sm:$0xf]
      %v308 = vld [vmem:[%s220 + $0xec] sm:$0xf]
      %v309 = vld [vmem:[%s220 + $0xf0] sm:$0xf]
      %v310 = vld [vmem:[%s220 + $0xf4] sm:$0xf]
      %v311 = vld [vmem:[%s220 + $0xf8] sm:$0xf]
      %v312 = vld [vmem:[%s220 + $0xfc] sm:$0xf]
      %v313 = vld [vmem:[%s220 + $0x100] sm:$0xf]
      %v314 = vld [vmem:[%s220 + $0x104] sm:$0xf]
      %v315 = vld [vmem:[%s220 + $0x108] sm:$0xf]
      %v316 = vld [vmem:[%s220 + $0x10c] sm:$0xf]
      %v317 = vld [vmem:[%s220 + $0x110] sm:$0xf]
      %v318 = vld [vmem:[%s220 + $0x114] sm:$0xf]
      %v319 = vld [vmem:[%s220 + $0x118] sm:$0xf]
      %v320 = vld [vmem:[%s220 + $0x11c] sm:$0xf]
      %v321 = vld [vmem:[%s225] sm:$0xff]
      %v322 = vld [vmem:[%s225 + $0x8] sm:$0xff]
      %v323 = vld [vmem:[%s225 + $0x10] sm:$0xff]
      %v324 = vld [vmem:[%s225 + $0x18] sm:$0xff]
      %326 = vset.pattern.permute.xlu0 0
      %327 = vperm.xlu0 %326, %v321
      %v328 = vpop.permute.xlu0 %327
      %331 = vset.pattern.permute.xlu0 0
      %332 = vperm.xlu0 %331, %v322
      %v333 = vpop.permute.xlu0 %332
      %336 = vset.pattern.permute.xlu0 0
      %337 = vperm.xlu0 %336, %v323
      %v338 = vpop.permute.xlu0 %337
      %341 = vset.pattern.permute.xlu0 0
      %342 = vperm.xlu0 %341, %v324
      %v343 = vpop.permute.xlu0 %342
      %v357 = vunpack.c.l.b16 %v237
      %v358 = vunpack.c.h.b16 %v237
      %v359 = vunpack.c.l.b16 %v238
      %v360 = vunpack.c.h.b16 %v238
      %v361 = vunpack.c.l.b16 %v239
      %v362 = vunpack.c.l.b16 %v240
      %v363 = vunpack.c.h.b16 %v240
      %v364 = vunpack.c.l.b16 %v241
      %v365 = vunpack.c.h.b16 %v241
      %v366 = vunpack.c.l.b16 %v242
      %v367 = vunpack.c.l.b16 %v243
      %v368 = vunpack.c.h.b16 %v243
      %v369 = vunpack.c.l.b16 %v244
      %v370 = vunpack.c.h.b16 %v244
      %v371 = vunpack.c.l.b16 %v245
      %v372 = vunpack.c.l.b16 %v246
      %v373 = vunpack.c.h.b16 %v246
      %v374 = vunpack.c.l.b16 %v247
      %v375 = vunpack.c.h.b16 %v247
      %v376 = vunpack.c.l.b16 %v248
      %v377 = vpack.c.b16 %v362, %v357
      %v378 = vpack.c.b16 %v363, %v358
      %v379 = vpack.c.b16 %v364, %v359
      %v380 = vpack.c.b16 %v365, %v360
      %v381 = vpack.c.b16 %v366, %v361
      %v382 = vpack.c.b16 %v372, %v367
      %v383 = vpack.c.b16 %v373, %v368
      %v384 = vpack.c.b16 %v374, %v369
      %v385 = vpack.c.b16 %v375, %v370
      %v386 = vpack.c.b16 %v376, %v371
      %v467 = vunpack.c.l.b16 %v249
      %v468 = vunpack.c.l.b16 %v250
      %v469 = vunpack.c.l.b16 %v251
      %v470 = vunpack.c.l.b16 %v252
      %v471 = vunpack.c.l.b16 %v253
      %v472 = vunpack.c.l.b16 %v254
      %v473 = vunpack.c.l.b16 %v255
      %v474 = vunpack.c.l.b16 %v256
      %v475 = vunpack.c.l.b16 %v257
      %v476 = vunpack.c.l.b16 %v258
      %v477 = vunpack.c.l.b16 %v259
      %v478 = vunpack.c.l.b16 %v260
      %v479 = vunpack.c.l.b16 %v261
      %v480 = vunpack.c.l.b16 %v262
      %v481 = vunpack.c.l.b16 %v263
      %v482 = vunpack.c.l.b16 %v264
      %v483 = vunpack.c.l.b16 %v265
      %v484 = vunpack.c.l.b16 %v266
      %v485 = vunpack.c.l.b16 %v267
      %v486 = vunpack.c.l.b16 %v268
      %v487 = vunpack.c.l.b16 %v269
      %v488 = vunpack.c.l.b16 %v270
      %v489 = vunpack.c.l.b16 %v271
      %v490 = vunpack.c.l.b16 %v272
      %v491 = vunpack.c.l.b16 %v273
      %v492 = vunpack.c.l.b16 %v274
      %v493 = vunpack.c.l.b16 %v275
      %v494 = vunpack.c.l.b16 %v276
      %v495 = vunpack.c.l.b16 %v277
      %v496 = vunpack.c.l.b16 %v278
      %v497 = vunpack.c.l.b16 %v279
      %v498 = vunpack.c.l.b16 %v280
      %v499 = vunpack.c.l.b16 %v281
      %v500 = vunpack.c.l.b16 %v282
      %v501 = vunpack.c.l.b16 %v283
      %v502 = vunpack.c.l.b16 %v284
      %v503 = vunpack.c.l.b16 %v285
      %v504 = vunpack.c.l.b16 %v286
      %v505 = vunpack.c.l.b16 %v287
      %v506 = vunpack.c.l.b16 %v288
      %v507 = vunpack.c.l.b16 %v289
      %v508 = vunpack.c.l.b16 %v290
      %v509 = vunpack.c.l.b16 %v291
      %v510 = vunpack.c.l.b16 %v292
      %v511 = vunpack.c.l.b16 %v293
      %v512 = vunpack.c.l.b16 %v294
      %v513 = vunpack.c.l.b16 %v295
      %v514 = vunpack.c.l.b16 %v296
      %v515 = vunpack.c.l.b16 %v297
      %v516 = vunpack.c.l.b16 %v298
      %v517 = vunpack.c.l.b16 %v299
      %v518 = vunpack.c.l.b16 %v300
      %v519 = vunpack.c.l.b16 %v301
      %v520 = vunpack.c.l.b16 %v302
      %v521 = vunpack.c.l.b16 %v303
      %v522 = vunpack.c.l.b16 %v304
      %v523 = vunpack.c.l.b16 %v305
      %v524 = vunpack.c.l.b16 %v306
      %v525 = vunpack.c.l.b16 %v307
      %v526 = vunpack.c.l.b16 %v308
      %v527 = vunpack.c.l.b16 %v309
      %v528 = vunpack.c.l.b16 %v310
      %v529 = vunpack.c.l.b16 %v311
      %v530 = vunpack.c.l.b16 %v312
      %v531 = vunpack.c.l.b16 %v313
      %v532 = vunpack.c.l.b16 %v314
      %v533 = vunpack.c.l.b16 %v315
      %v534 = vunpack.c.l.b16 %v316
      %v535 = vunpack.c.l.b16 %v317
      %v536 = vunpack.c.l.b16 %v318
      %v537 = vunpack.c.l.b16 %v319
      %v538 = vunpack.c.l.b16 %v320
      %v539 = vpack.c.b16 %v468, %v467
      %v540 = vpack.c.b16 %v470, %v469
      %v541 = vpack.c.b16 %v472, %v471
      %v542 = vpack.c.b16 %v474, %v473
      %v543 = vpack.c.b16 %v476, %v475
      %v544 = vpack.c.b16 %v478, %v477
      %v545 = vpack.c.b16 %v480, %v479
      %v546 = vpack.c.b16 %v482, %v481
      %v547 = vpack.c.b16 %v484, %v483
      %v548 = vpack.c.b16 %v486, %v485
      %v549 = vpack.c.b16 %v488, %v487
      %v550 = vpack.c.b16 %v490, %v489
      %v551 = vpack.c.b16 %v492, %v491
      %v552 = vpack.c.b16 %v494, %v493
      %v553 = vpack.c.b16 %v496, %v495
      %v554 = vpack.c.b16 %v498, %v497
      %v555 = vpack.c.b16 %v500, %v499
      %v556 = vpack.c.b16 %v502, %v501
      %v557 = vpack.c.b16 %v504, %v503
      %v558 = vpack.c.b16 %v506, %v505
      %v559 = vpack.c.b16 %v508, %v507
      %v560 = vpack.c.b16 %v510, %v509
      %v561 = vpack.c.b16 %v512, %v511
      %v562 = vpack.c.b16 %v514, %v513
      %v563 = vpack.c.b16 %v516, %v515
      %v564 = vpack.c.b16 %v518, %v517
      %v565 = vpack.c.b16 %v520, %v519
      %v566 = vpack.c.b16 %v522, %v521
      %v567 = vpack.c.b16 %v524, %v523
      %v568 = vpack.c.b16 %v526, %v525
      %v569 = vpack.c.b16 %v528, %v527
      %v570 = vpack.c.b16 %v530, %v529
      %v571 = vpack.c.b16 %v532, %v531
      %v572 = vpack.c.b16 %v534, %v533
      %v573 = vpack.c.b16 %v536, %v535
      %v574 = vpack.c.b16 %v538, %v537
      %vm611 = vcmask 523264
      %v613 = vsel %vm611, %v381, 0
      %v616 = vsel %vm611, %v386, 0
      %618 = vmatprep.subr.bf16.mxu0 0
      %619 = vmatpush1.bf16.msra.mxu0 %v539
      %620 = vmatprep.subr.bf16.mxu0 0
      %621 = vmatpush1.bf16.msra.mxu0 %v540
      %622 = vmatprep.subr.bf16.mxu0 0
      %623 = vmatpush1.bf16.msra.mxu0 %v541
      %624 = vmatprep.subr.bf16.mxu0 0
      %625 = vmatpush1.bf16.msra.mxu0 %v542
      %626 = vmatprep.subr.bf16.mxu0 0
      %627 = vmatpush1.bf16.msra.mxu0 %v543
      %628 = vmatprep.subr.bf16.mxu0 0
      %629 = vmatpush1.bf16.msra.mxu0 %v544
      %630 = vmatprep.subr.bf16.mxu0 0
      %631 = vmatpush1.bf16.msra.mxu0 %v545
      %632 = vmatprep.subr.bf16.mxu0 0
      %633 = vmatpush1.bf16.msra.mxu0 %v546
      %634 = vmatprep.subr.bf16.mxu0 0
      %635 = vmatpush1.bf16.msra.mxu0 %v547
      %636 = vmatprep.subr.bf16.mxu0 0
      %637 = vmatpush1.bf16.msra.mxu0 %v548
      %638 = vmatprep.subr.bf16.mxu0 0
      %639 = vmatpush1.bf16.msra.mxu0 %v549
      %640 = vmatprep.subr.bf16.mxu0 0
      %641 = vmatpush1.bf16.msra.mxu0 %v550
      %642 = vmatprep.subr.bf16.mxu0 0
      %643 = vmatpush1.bf16.msra.mxu0 %v551
      %644 = vmatprep.subr.bf16.mxu0 0
      %645 = vmatpush1.bf16.msra.mxu0 %v552
      %646 = vmatprep.subr.bf16.mxu0 0
      %647 = vmatpush1.bf16.msra.mxu0 %v553
      %648 = vmatprep.subr.bf16.mxu0 0
      %649 = vmatpush1.bf16.msra.mxu0 %v554
      %650 = vmatprep.mubr.bf16.mxu0 %v378
      %651 = vmatmul.mubr.bf16.gmra.mrb[0].mxu0 %v377
      %v652 = vpop.f32.mrb[0].mxu0
      %v653 = vadd.f32 %v328, %v652
      %v654 = vpop.f32.mrb[0].mxu0
      %v655 = vpop.f32.mrb[0].mxu0
      %v656 = vadd.f32 %v333, %v655
      %v657 = vpop.f32.mrb[0].mxu0
      %658 = vmatprep.mubr.bf16.mxu0 %v383
      %659 = vmatmul.mubr.bf16.gmra.mrb[0].mxu0 %v382
      %v660 = vpop.f32.mrb[0].mxu0
      %v661 = vadd.f32 %v338, %v660
      %v662 = vpop.f32.mrb[0].mxu0
      %v663 = vpop.f32.mrb[0].mxu0
      %v664 = vadd.f32 %v343, %v663
      %v665 = vpop.f32.mrb[0].mxu0
      %666 = vdwg.mxu0
      %667 = vmatprep.subr.bf16.mxu0 0
      %668 = vmatpush1.bf16.msra.mxu0 %v555
      %669 = vmatprep.subr.bf16.mxu0 0
      %670 = vmatpush1.bf16.msra.mxu0 %v556
      %671 = vmatprep.subr.bf16.mxu0 0
      %672 = vmatpush1.bf16.msra.mxu0 %v557
      %673 = vmatprep.subr.bf16.mxu0 0
      %674 = vmatpush1.bf16.msra.mxu0 %v558
      %675 = vmatprep.subr.bf16.mxu0 0
      %676 = vmatpush1.bf16.msra.mxu0 %v559
      %677 = vmatprep.subr.bf16.mxu0 0
      %678 = vmatpush1.bf16.msra.mxu0 %v560
      %679 = vmatprep.subr.bf16.mxu0 0
      %680 = vmatpush1.bf16.msra.mxu0 %v561
      %681 = vmatprep.subr.bf16.mxu0 0
      %682 = vmatpush1.bf16.msra.mxu0 %v562
      %683 = vmatprep.subr.bf16.mxu0 0
      %684 = vmatpush1.bf16.msra.mxu0 %v563
      %685 = vmatprep.subr.bf16.mxu0 0
      %686 = vmatpush1.bf16.msra.mxu0 %v564
      %687 = vmatprep.subr.bf16.mxu0 0
      %688 = vmatpush1.bf16.msra.mxu0 %v565
      %689 = vmatprep.subr.bf16.mxu0 0
      %690 = vmatpush1.bf16.msra.mxu0 %v566
      %691 = vmatprep.subr.bf16.mxu0 0
      %692 = vmatpush1.bf16.msra.mxu0 %v567
      %693 = vmatprep.subr.bf16.mxu0 0
      %694 = vmatpush1.bf16.msra.mxu0 %v568
      %695 = vmatprep.subr.bf16.mxu0 0
      %696 = vmatpush1.bf16.msra.mxu0 %v569
      %697 = vmatprep.subr.bf16.mxu0 0
      %698 = vmatpush1.bf16.msra.mxu0 %v570
      %699 = vmatprep.mubr.bf16.mxu0 %v380
      %700 = vmatmul.mubr.bf16.gmra.mrb[0].mxu0 %v379
      %v701 = vpop.f32.mrb[0].mxu0
      %v702 = vadd.f32 %v653, %v701
      %v703 = vpop.f32.mrb[0].mxu0
      %v704 = vpop.f32.mrb[0].mxu0
      %v705 = vadd.f32 %v656, %v704
      %v706 = vpop.f32.mrb[0].mxu0
      %707 = vmatprep.mubr.bf16.mxu0 %v385
      %708 = vmatmul.mubr.bf16.gmra.mrb[0].mxu0 %v384
      %v709 = vpop.f32.mrb[0].mxu0
      %v710 = vadd.f32 %v661, %v709
      %v711 = vpop.f32.mrb[0].mxu0
      %v712 = vpop.f32.mrb[0].mxu0
      %v713 = vadd.f32 %v664, %v712
      %v714 = vpop.f32.mrb[0].mxu0
      %715 = vdwg.mxu0
      %716 = vmatprep.subr.bf16.mxu0 0
      %717 = vmatpush1.bf16.msra.mxu0 %v571
      %718 = vmatprep.subr.bf16.mxu0 0
      %719 = vmatpush1.bf16.msra.mxu0 %v572
      %720 = vmatprep.subr.bf16.mxu0 0
      %721 = vmatpush1.bf16.msra.mxu0 %v573
      %722 = vmatprep.subr.bf16.mxu0 0
      %723 = vmatpush1.bf16.msra.mxu0 %v574
      %724 = vmatprep.subr.bf16.mxu0 0
      %725 = vmatpush1.bf16.msra.mxu0 0
      %726 = vmatprep.subr.bf16.mxu0 0
      %727 = vmatpush1.bf16.msra.mxu0 0
      %728 = vmatprep.subr.bf16.mxu0 0
      %729 = vmatpush1.bf16.msra.mxu0 0
      %730 = vmatprep.subr.bf16.mxu0 0
      %731 = vmatpush1.bf16.msra.mxu0 0
      %732 = vmatprep.subr.bf16.mxu0 0
      %733 = vmatpush1.bf16.msra.mxu0 0
      %734 = vmatprep.subr.bf16.mxu0 0
      %735 = vmatpush1.bf16.msra.mxu0 0
      %736 = vmatprep.subr.bf16.mxu0 0
      %737 = vmatpush1.bf16.msra.mxu0 0
      %738 = vmatprep.subr.bf16.mxu0 0
      %739 = vmatpush1.bf16.msra.mxu0 0
      %740 = vmatprep.subr.bf16.mxu0 0
      %741 = vmatpush1.bf16.msra.mxu0 0
      %742 = vmatprep.subr.bf16.mxu0 0
      %743 = vmatpush1.bf16.msra.mxu0 0
      %744 = vmatprep.subr.bf16.mxu0 0
      %745 = vmatpush1.bf16.msra.mxu0 0
      %746 = vmatprep.subr.bf16.mxu0 0
      %747 = vmatpush1.bf16.msra.mxu0 0
      %748 = vmatprep.mubr.bf16.mxu0 0
      %749 = vmatmul.mubr.bf16.gmra.mrb[0].mxu0 %v613
      %v750 = vpop.f32.mrb[0].mxu0
      %v751 = vadd.f32 %v702, %v750
      %v752 = vpop.f32.mrb[0].mxu0
      %v753 = vpop.f32.mrb[0].mxu0
      %v754 = vadd.f32 %v705, %v753
      %v755 = vpop.f32.mrb[0].mxu0
      %756 = vmatprep.mubr.bf16.mxu0 0
      %757 = vmatmul.mubr.bf16.gmra.mrb[0].mxu0 %v616
      %v758 = vpop.f32.mrb[0].mxu0
      %v759 = vadd.f32 %v710, %v758
      %v760 = vpop.f32.mrb[0].mxu0
      %v761 = vpop.f32.mrb[0].mxu0
      %v762 = vadd.f32 %v713, %v761
      %v763 = vpop.f32.mrb[0].mxu0
      %764 = vdwg.mxu0
      %v765 = vmax.f32 %v751, 0.0
      %v766 = vmax.f32 %v754, 0.0
      %v767 = vmax.f32 %v759, 0.0
      %v768 = vmax.f32 %v762, 0.0
      %769 = vst [vmem:[%s234] sm:$0xff] %v765
      %770 = vst [vmem:[%s234 + $0x8] sm:$0xff] %v766
      %771 = vst [vmem:[%s234 + $0x10] sm:$0xff] %v767
      %772 = vst [vmem:[%s234 + $0x18] sm:$0xff] %v768
      %s773 = smul.u32 4, %s18
      %p774 = scmp.lt.s32.totalorder %s773, 7
      %s775 = scalar_select %p774, %s773, 7
      %p776 = scmp.lt.s32.totalorder %s19, 0
      %s777 = scalar_select %p776, %s19, 0
      %s778 = sadd.s32 %s777, %s775
      %s779 = smul.addr %s778, 8
      %s780 = scalar_lea.vmem %s3, %s779
      // Predicated region
      $region33: #{plane_decoder_forward.10} parent=31 // pred_check
        %p781 = pneg %p124
      $region34: #{plane_decoder_forward.10} parent=31 // pred_check_branch
        %783 = sbr.rel (%p781) target = $region36
      $region35: #{plane_decoder_forward.10} parent=31 // pred_region
        %s784 = smul.u32 4, %s18
      $region36: #{plane_decoder_forward.10} parent=31 // pred_fallthru
        _
    $region32: #{plane_decoder_forward.10} parent=5 // pred_fallthru
      _
    %p785 = scmp.le.s32.totalorder 2, %s9
    // Predicated region
    $region37: #{plane_decoder_forward.10} parent=5 // pred_check
      %p786 = pneg %p785
    $region38: #{plane_decoder_forward.10} parent=5 // pred_check_branch
      %788 = sbr.rel (%p786) target = $region40
    $region39: #{plane_decoder_forward.10} parent=5 // pred_region
      %s789 = ssub.s32 %s9, 2
      // Predicated region
      $region41: #{plane_decoder_forward.10} parent=39 // pred_check
        %p790 = pneg %p130
      $region42: #{plane_decoder_forward.10} parent=39 // pred_check_branch
        %792 = sbr.rel (%p790) target = $region44
      $region43: #{plane_decoder_forward.10} parent=39 // pred_region
        %s793 = smul.u32 4, %s20
        %p794 = scmp.lt.s32.totalorder %s793, 7
        %s795 = scalar_select %p794, %s793, 7
        %p796 = scmp.lt.s32.totalorder %s21, 0
        %s797 = scalar_select %p796, %s21, 0
        %s798 = sadd.s32 %s797, %s795
        %s799 = smul.addr %s798, 8
        %s800 = scalar_lea.vmem %s3, %s799
      $region44: #{plane_decoder_forward.10} parent=39 // pred_fallthru
        _
    $region40: #{plane_decoder_forward.10} parent=5 // pred_fallthru
      _
  $region6: #{plane_decoder_forward.10} parent=0 // loop_footer
    %s13 = sadd.s32 1, %s9
  $region7: #{plane_decoder_forward.10} parent=0 // loop_footer_branch
    %8 = sbr.rel target = $region3
  $region8: #{plane_decoder_forward.10} parent=0 // loop_exit
    _

// kernel: plane_decoder_forward.11
$region0: #{plane_decoder_forward.11}
  #allocation0 [shape = 'u32[]', space=smem, size = 0x4, offset = 0x4, fixed_abs, tag = 'smem constant byte address 0x4 - core index']
  #allocation1 [shape = 'u32[144,128]{1,0:T(1,128)}', space=vmem, size = 0x12000, scoped, tag = 'internal scratch']
  %s0 = inlined_call_operand.vmem [shape: bf16[48,576], index: 0, kind: input, shape index: {}]
  %s1 = inlined_call_operand.vmem [shape: bf16[576,128], index: 1, kind: input, shape index: {}]
  %s2 = inlined_call_operand.vmem [shape: f32[48,1], index: 2, kind: input, shape index: {}]
  %s3 = inlined_call_operand.vmem [shape: f32[48,128], index: 3, kind: output, shape index: {}]
  %s4 = sld [smem:[#allocation0]]
  $region45: #{plane_decoder_forward.11} parent=0
    _
  %s6 = ssub.s32 1, %s4
  %s7 = scalar_select 0, %s6, %s4
  loop: start=0, step=1, limit=4
  $region2: #{plane_decoder_forward.11} parent=0 // loop_pre_header
    _
  $region3: #{plane_decoder_forward.11} parent=0 // loop_header
    %s9 = sphi 0, %s13
    %p10 = scmp.ge.s32.totalorder %s9, 4
    %s16 = sphi 0, %s28
    %s17 = sphi 0, %s24
    %s18 = sphi 0, %s16
    %s19 = sphi 0, %s17
    %s20 = sphi 0, %s18
    %s21 = sphi 0, %s19
    %s31 = sphi 0, %s33
    %s34 = sphi 0, %s31
    %s35 = sphi 0, %s34
    %s51 = sphi 0, %s35
    %s57 = sphi 0, %s59
    %s60 = sphi 0, %s57
    %s61 = sphi 0, %s60
    %s77 = sphi 0, %s61
    %s83 = sphi 0, %s85
    %s86 = sphi 0, %s83
    %s87 = sphi 0, %s86
    %s103 = sphi 0, %s87
    %s111 = sphi 0, %s113
    %s114 = sphi 0, %s111
    %s115 = sphi 0, %s114
    %s131 = sphi 0, %s115
  $region4: #{plane_decoder_forward.11} parent=0 // loop_header_branch
    %12 = sbr.rel (%p10) target = $region8
  $region5: #{plane_decoder_forward.11} parent=0 // loop_body
    %s14 = ssub.s32 %s9, 1
    %s15 = ssub.s32 %s9, 2
    %s22 = sadd.s32 1, %s17
    %p23 = scmp.ge.s32.totalorder %s22, 1
    %s24 = scalar_select %p23, 0, %s22
    %s25 = sadd.s32 1, %s16
    %s26 = scalar_select %p23, %s25, %s16
    %p27 = scmp.ge.s32.totalorder %s26, 2
    %s28 = scalar_select %p27, 0, %s26
    %s29 = ssub.s32 %s16, %s28
    %p30 = scmp.eq.s32.totalorder %s29, 0
    %s32 = sadd.s32 %s31, 1
    %s33 = scalar_select %p30, %s31, %s32
    %p36 = pneg %p30
    %p37 = scmp.eq.s32.totalorder %s9, 1
    %p38 = por %p36, %p37
    %p39 = scmp.ne.s32.totalorder %s31, %s34
    %p40 = scmp.eq.s32.totalorder %s9, 0
    %p41 = por %p39, %p40
    %p42 = scmp.ne.s32.totalorder %s31, %s34
    %p43 = scmp.eq.s32.totalorder %s14, 1
    %p44 = por %p42, %p43
    %p45 = scmp.ne.s32.totalorder %s34, %s35
    %p46 = scmp.eq.s32.totalorder %s14, 0
    %p47 = por %p45, %p46
    %p48 = scmp.ne.s32.totalorder %s34, %s35
    %p49 = scmp.eq.s32.totalorder %s15, 1
    %p50 = por %p48, %p49
    %p52 = scmp.ne.s32.totalorder %s35, %s51
    %p53 = scmp.eq.s32.totalorder %s15, 0
    %p54 = por %p52, %p53
    %s55 = ssub.s32 %s17, %s24
    %p56 = scmp.eq.s32.totalorder %s55, 0
    %s58 = sadd.s32 %s57, 1
    %s59 = scalar_select %p56, %s57, %s58
    %p62 = pneg %p56
    %p63 = scmp.eq.s32.totalorder %s9, 1
    %p64 = por %p62, %p63
    %p65 = scmp.ne.s32.totalorder %s57, %s60
    %p66 = scmp.eq.s32.totalorder %s9, 0
    %p67 = por %p65, %p66
    %p68 = scmp.ne.s32.totalorder %s57, %s60
    %p69 = scmp.eq.s32.totalorder %s14, 1
    %p70 = por %p68, %p69
    %p71 = scmp.ne.s32.totalorder %s60, %s61
    %p72 = scmp.eq.s32.totalorder %s14, 0
    %p73 = por %p71, %p72
    %p74 = scmp.ne.s32.totalorder %s60, %s61
    %p75 = scmp.eq.s32.totalorder %s15, 1
    %p76 = por %p74, %p75
    %p78 = scmp.ne.s32.totalorder %s61, %s77
    %p79 = scmp.eq.s32.totalorder %s15, 0
    %p80 = por %p78, %p79
    %s81 = ssub.s32 %s16, %s28
    %p82 = scmp.eq.s32.totalorder %s81, 0
    %s84 = sadd.s32 %s83, 1
    %s85 = scalar_select %p82, %s83, %s84
    %p88 = pneg %p82
    %p89 = scmp.eq.s32.totalorder %s9, 1
    %p90 = por %p88, %p89
    %p91 = scmp.ne.s32.totalorder %s83, %s86
    %p92 = scmp.eq.s32.totalorder %s9, 0
    %p93 = por %p91, %p92
    %p94 = scmp.ne.s32.totalorder %s83, %s86
    %p95 = scmp.eq.s32.totalorder %s14, 1
    %p96 = por %p94, %p95
    %p97 = scmp.ne.s32.totalorder %s86, %s87
    %p98 = scmp.eq.s32.totalorder %s14, 0
    %p99 = por %p97, %p98
    %p100 = scmp.ne.s32.totalorder %s86, %s87
    %p101 = scmp.eq.s32.totalorder %s15, 1
    %p102 = por %p100, %p101
    %p104 = scmp.ne.s32.totalorder %s87, %s103
    %p105 = scmp.eq.s32.totalorder %s15, 0
    %p106 = por %p104, %p105
    %s107 = ssub.s32 %s16, %s28
    %s108 = ssub.s32 %s17, %s24
    %s109 = sor.u32 %s107, %s108
    %p110 = scmp.eq.s32.totalorder %s109, 0
    %s112 = sadd.s32 %s111, 1
    %s113 = scalar_select %p110, %s111, %s112
    %p116 = pneg %p110
    %p117 = scmp.eq.s32.totalorder %s9, 1
    %p118 = por %p116, %p117
    %p119 = scmp.ne.s32.totalorder %s111, %s114
    %p120 = scmp.eq.s32.totalorder %s9, 0
    %p121 = por %p119, %p120
    %p122 = scmp.ne.s32.totalorder %s111, %s114
    %p123 = scmp.eq.s32.totalorder %s14, 1
    %p124 = por %p122, %p123
    %p125 = scmp.ne.s32.totalorder %s114, %s115
    %p126 = scmp.eq.s32.totalorder %s14, 0
    %p127 = por %p125, %p126
    %p128 = scmp.ne.s32.totalorder %s114, %s115
    %p129 = scmp.eq.s32.totalorder %s15, 1
    %p130 = por %p128, %p129
    %p132 = scmp.ne.s32.totalorder %s115, %s131
    %p133 = scmp.eq.s32.totalorder %s15, 0
    %p134 = por %p132, %p133
    %p135 = scmp.le.s32.totalorder 1, %s9
    %p136 = scmp.lt.s32.totalorder %s9, 3
    %p137 = pnand %p135, %p136
    %p138 = pneg %p137
    // Predicated region
    $region9: #{plane_decoder_forward.11} parent=5 // pred_check
      _
    $region10: #{plane_decoder_forward.11} parent=5 // pred_check_branch
      %140 = sbr.rel (%p137) target = $region12
    $region11: #{plane_decoder_forward.11} parent=5 // pred_region
      %s141 = ssub.s32 %s9, 1
      // Predicated region
      $region13: #{plane_decoder_forward.11} parent=11 // pred_check
        %p142 = pneg %p73
      $region14: #{plane_decoder_forward.11} parent=11 // pred_check_branch
        %144 = sbr.rel (%p142) target = $region16
      $region15: #{plane_decoder_forward.11} parent=11 // pred_region
        %p145 = scmp.lt.s32.totalorder %s19, 0
        %s146 = scalar_select %p145, %s19, 0
        %s147 = smul.addr %s146, 4
        %s148 = scalar_lea.vmem %s1, %s147
      $region16: #{plane_decoder_forward.11} parent=11 // pred_fallthru
        _
    $region12: #{plane_decoder_forward.11} parent=5 // pred_fallthru
      _
    %p149 = scmp.lt.s32.totalorder %s9, 2
    // Predicated region
    $region17: #{plane_decoder_forward.11} parent=5 // pred_check
      %p150 = pneg %p149
    $region18: #{plane_decoder_forward.11} parent=5 // pred_check_branch
      %152 = sbr.rel (%p150) target = $region20
    $region19: #{plane_decoder_forward.11} parent=5 // pred_region
      // Predicated region
      $region21: #{plane_decoder_forward.11} parent=19 // pred_check
        %p153 = pneg %p41
      $region22: #{plane_decoder_forward.11} parent=19 // pred_check_branch
        %155 = sbr.rel (%p153) target = $region24
      $region23: #{plane_decoder_forward.11} parent=19 // pred_region
        %s156 = smul.u32 3, %s16
        %p157 = scmp.lt.s32.totalorder %s156, 5
        %s158 = scalar_select %p157, %s156, 5
        %s159 = smul.addr %s158, 5
        %s160 = smul.addr %s159, 4
        %s161 = scalar_lea.vmem %s0, %s160
        %s162 = smul.u32 3, %s16
      $region24: #{plane_decoder_forward.11} parent=19 // pred_fallthru
        _
      // Predicated region
      $region25: #{plane_decoder_forward.11} parent=19 // pred_check
        %p163 = pneg %p93
      $region26: #{plane_decoder_forward.11} parent=19 // pred_check_branch
        %165 = sbr.rel (%p163) target = $region28
      $region27: #{plane_decoder_forward.11} parent=19 // pred_region
        %s166 = smul.u32 3, %s16
        %p167 = scmp.lt.s32.totalorder %s166, 5
        %s168 = scalar_select %p167, %s166, 5
        %s169 = smul.addr %s168, 8
        %s170 = scalar_lea.vmem %s2, %s169
        %s171 = smul.u32 3, %s16
      $region28: #{plane_decoder_forward.11} parent=19 // pred_fallthru
        _
    $region20: #{plane_decoder_forward.11} parent=5 // pred_fallthru
      _
    %p172 = scmp.le.s32.totalorder 1, %s9
    %p173 = scmp.lt.s32.totalorder %s9, 3
    %p174 = pnand %p172, %p173
    %p175 = pneg %p174
    // Predicated region
    $region29: #{plane_decoder_forward.11} parent=5 // pred_check
      _
    $region30: #{plane_decoder_forward.11} parent=5 // pred_check_branch
      %177 = sbr.rel (%p174) target = $region32
    $region31: #{plane_decoder_forward.11} parent=5 // pred_region
      %s178 = ssub.s32 %s9, 1
      %s179 = smul.u32 3, %s18
      %p180 = scmp.lt.s32.totalorder %s179, 5
      %s181 = scalar_select %p180, %s179, 5
      %s182 = smul.addr %s181, 5
      %s183 = smul.addr %s182, 4
      %s184 = scalar_lea.vmem %s0, %s183
      %p185 = pneg %p47
      %p186 = pneg %p44
      %p187 = scmp.lt.s32.totalorder %s19, 0
      %s188 = scalar_select %p187, %s19, 0
      %s189 = smul.addr %s188, 4
      %s190 = scalar_lea.vmem %s1, %s189
      %p191 = pneg %p73
      %p192 = pneg %p70
      %s193 = smul.u32 3, %s18
      %p194 = scmp.lt.s32.totalorder %s193, 5
      %s195 = scalar_select %p194, %s193, 5
      %s196 = smul.addr %s195, 8
      %s197 = scalar_lea.vmem %s2, %s196
      %p198 = pneg %p99
      %p199 = pneg %p96
      %p200 = pneg %p127
      %p201 = pneg %p124
      %s202 = smul.u32 3, %s18
      %p203 = scmp.lt.s32.totalorder %s202, 5
      %s204 = scalar_select %p203, %s202, 5
      %p205 = scmp.lt.s32.totalorder %s19, 0
      %s206 = scalar_select %p205, %s19, 0
      %s207 = sadd.s32 %s206, %s204
      %s208 = smul.addr %s207, 8
      %s209 = scalar_lea.vmem %s3, %s208
      %s210 = smul.u32 3, %s18
      %p211 = scmp.lt.s32.totalorder %s210, 5
      %s212 = scalar_select %p211, %s210, 5
      %s213 = smul.addr %s212, 5
      %s214 = smul.addr %s213, 4
      %s215 = scalar_lea.vmem %s0, %s214
      %s216 = smul.u32 3, %s18
      %p217 = scmp.lt.s32.totalorder %s19, 0
      %s218 = scalar_select %p217, %s19, 0
      %s219 = smul.addr %s218, 4
      %s220 = scalar_lea.vmem %s1, %s219
      %s221 = smul.u32 3, %s18
      %p222 = scmp.lt.s32.totalorder %s221, 5
      %s223 = scalar_select %p222, %s221, 5
      %s224 = smul.addr %s223, 8
      %s225 = scalar_lea.vmem %s2, %s224
      %s226 = smul.u32 3, %s18
      %s227 = smul.u32 3, %s18
      %p228 = scmp.lt.s32.totalorder %s227, 5
      %s229 = scalar_select %p228, %s227, 5
      %p230 = scmp.lt.s32.totalorder %s19, 0
      %s231 = scalar_select %p230, %s19, 0
      %s232 = sadd.s32 %s231, %s229
      %s233 = smul.addr %s232, 8
      %s234 = scalar_lea.vmem %s3, %s233
      %s235 = smul.u32 3, %s18
      %v237 = vld [vmem:[%s215] sm:$0xff]
      %v238 = vld [vmem:[%s215 + $0x8] sm:$0xff]
      %v239 = vld [vmem:[%s215 + $0x10] sm:$0xf]
      %v240 = vld [vmem:[%s215 + $0x14] sm:$0xff]
      %v241 = vld [vmem:[%s215 + $0x1c] sm:$0xff]
      %v242 = vld [vmem:[%s215 + $0x24] sm:$0xf]
      %v243 = vld [vmem:[%s215 + $0x28] sm:$0xff]
      %v244 = vld [vmem:[%s215 + $0x30] sm:$0xff]
      %v245 = vld [vmem:[%s215 + $0x38] sm:$0xf]
      %v246 = vld [vmem:[%s220] sm:$0xf]
      %v247 = vld [vmem:[%s220 + $0x4] sm:$0xf]
      %v248 = vld [vmem:[%s220 + $0x8] sm:$0xf]
      %v249 = vld [vmem:[%s220 + $0xc] sm:$0xf]
      %v250 = vld [vmem:[%s220 + $0x10] sm:$0xf]
      %v251 = vld [vmem:[%s220 + $0x14] sm:$0xf]
      %v252 = vld [vmem:[%s220 + $0x18] sm:$0xf]
      %v253 = vld [vmem:[%s220 + $0x1c] sm:$0xf]
      %v254 = vld [vmem:[%s220 + $0x20] sm:$0xf]
      %v255 = vld [vmem:[%s220 + $0x24] sm:$0xf]
      %v256 = vld [vmem:[%s220 + $0x28] sm:$0xf]
      %v257 = vld [vmem:[%s220 + $0x2c] sm:$0xf]
      %v258 = vld [vmem:[%s220 + $0x30] sm:$0xf]
      %v259 = vld [vmem:[%s220 + $0x34] sm:$0xf]
      %v260 = vld [vmem:[%s220 + $0x38] sm:$0xf]
      %v261 = vld [vmem:[%s220 + $0x3c] sm:$0xf]
      %v262 = vld [vmem:[%s220 + $0x40] sm:$0xf]
      %v263 = vld [vmem:[%s220 + $0x44] sm:$0xf]
      %v264 = vld [vmem:[%s220 + $0x48] sm:$0xf]
      %v265 = vld [vmem:[%s220 + $0x4c] sm:$0xf]
      %v266 = vld [vmem:[%s220 + $0x50] sm:$0xf]
      %v267 = vld [vmem:[%s220 + $0x54] sm:$0xf]
      %v268 = vld [vmem:[%s220 + $0x58] sm:$0xf]
      %v269 = vld [vmem:[%s220 + $0x5c] sm:$0xf]
      %v270 = vld [vmem:[%s220 + $0x60] sm:$0xf]
      %v271 = vld [vmem:[%s220 + $0x64] sm:$0xf]
      %v272 = vld [vmem:[%s220 + $0x68] sm:$0xf]
      %v273 = vld [vmem:[%s220 + $0x6c] sm:$0xf]
      %v274 = vld [vmem:[%s220 + $0x70] sm:$0xf]
      %v275 = vld [vmem:[%s220 + $0x74] sm:$0xf]
      %v276 = vld [vmem:[%s220 + $0x78] sm:$0xf]
      %v277 = vld [vmem:[%s220 + $0x7c] sm:$0xf]
      %v278 = vld [vmem:[%s220 + $0x80] sm:$0xf]
      %v279 = vld [vmem:[%s220 + $0x84] sm:$0xf]
      %v280 = vld [vmem:[%s220 + $0x88] sm:$0xf]
      %v281 = vld [vmem:[%s220 + $0x8c] sm:$0xf]
      %v282 = vld [vmem:[%s220 + $0x90] sm:$0xf]
      %v283 = vld [vmem:[%s220 + $0x94] sm:$0xf]
      %v284 = vld [vmem:[%s220 + $0x98] sm:$0xf]
      %v285 = vld [vmem:[%s220 + $0x9c] sm:$0xf]
      %v286 = vld [vmem:[%s220 + $0xa0] sm:$0xf]
      %v287 = vld [vmem:[%s220 + $0xa4] sm:$0xf]
      %v288 = vld [vmem:[%s220 + $0xa8] sm:$0xf]
      %v289 = vld [vmem:[%s220 + $0xac] sm:$0xf]
      %v290 = vld [vmem:[%s220 + $0xb0] sm:$0xf]
      %v291 = vld [vmem:[%s220 + $0xb4] sm:$0xf]
      %v292 = vld [vmem:[%s220 + $0xb8] sm:$0xf]
      %v293 = vld [vmem:[%s220 + $0xbc] sm:$0xf]
      %v294 = vld [vmem:[%s220 + $0xc0] sm:$0xf]
      %v295 = vld [vmem:[%s220 + $0xc4] sm:$0xf]
      %v296 = vld [vmem:[%s220 + $0xc8] sm:$0xf]
      %v297 = vld [vmem:[%s220 + $0xcc] sm:$0xf]
      %v298 = vld [vmem:[%s220 + $0xd0] sm:$0xf]
      %v299 = vld [vmem:[%s220 + $0xd4] sm:$0xf]
      %v300 = vld [vmem:[%s220 + $0xd8] sm:$0xf]
      %v301 = vld [vmem:[%s220 + $0xdc] sm:$0xf]
      %v302 = vld [vmem:[%s220 + $0xe0] sm:$0xf]
      %v303 = vld [vmem:[%s220 + $0xe4] sm:$0xf]
      %v304 = vld [vmem:[%s220 + $0xe8] sm:$0xf]
      %v305 = vld [vmem:[%s220 + $0xec] sm:$0xf]
      %v306 = vld [vmem:[%s220 + $0xf0] sm:$0xf]
      %v307 = vld [vmem:[%s220 + $0xf4] sm:$0xf]
      %v308 = vld [vmem:[%s220 + $0xf8] sm:$0xf]
      %v309 = vld [vmem:[%s220 + $0xfc] sm:$0xf]
      %v310 = vld [vmem:[%s220 + $0x100] sm:$0xf]
      %v311 = vld [vmem:[%s220 + $0x104] sm:$0xf]
      %v312 = vld [vmem:[%s220 + $0x108] sm:$0xf]
      %v313 = vld [vmem:[%s220 + $0x10c] sm:$0xf]
      %v314 = vld [vmem:[%s220 + $0x110] sm:$0xf]
      %v315 = vld [vmem:[%s220 + $0x114] sm:$0xf]
      %v316 = vld [vmem:[%s220 + $0x118] sm:$0xf]
      %v317 = vld [vmem:[%s220 + $0x11c] sm:$0xf]
      %v318 = vld [vmem:[%s225] sm:$0xff]
      %v319 = vld [vmem:[%s225 + $0x8] sm:$0xff]
      %v320 = vld [vmem:[%s225 + $0x10] sm:$0xff]
      %322 = vset.pattern.permute.xlu0 0
      %323 = vperm.xlu0 %322, %v318
      %v324 = vpop.permute.xlu0 %323
      %327 = vset.pattern.permute.xlu0 0
      %328 = vperm.xlu0 %327, %v319
      %v329 = vpop.permute.xlu0 %328
      %332 = vset.pattern.permute.xlu0 0
      %333 = vperm.xlu0 %332, %v320
      %v334 = vpop.permute.xlu0 %333
      %v345 = vunpack.c.l.b16 %v237
      %v346 = vunpack.c.h.b16 %v237
      %v347 = vunpack.c.l.b16 %v238
      %v348 = vunpack.c.h.b16 %v238
      %v349 = vunpack.c.l.b16 %v239
      %v350 = vunpack.c.l.b16 %v240
      %v351 = vunpack.c.h.b16 %v240
      %v352 = vunpack.c.l.b16 %v241
      %v353 = vunpack.c.h.b16 %v241
      %v354 = vunpack.c.l.b16 %v242
      %v355 = vunpack.c.l.b16 %v243
      %v356 = vunpack.c.h.b16 %v243
      %v357 = vunpack.c.l.b16 %v244
      %v358 = vunpack.c.h.b16 %v244
      %v359 = vunpack.c.l.b16 %v245
      %v360 = vpack.c.b16 %v350, %v345
      %v361 = vpack.c.b16 %v351, %v346
      %v362 = vpack.c.b16 %v352, %v347
      %v363 = vpack.c.b16 %v353, %v348
      %v364 = vpack.c.b16 %v354, %v349
      %v365 = vpack.c.b16 %v355, %v355
      %v366 = vpack.c.b16 %v356, %v356
      %v367 = vpack.c.b16 %v357, %v357
      %v368 = vpack.c.b16 %v358, %v358
      %v369 = vpack.c.b16 %v359, %v359
      %v450 = vunpack.c.l.b16 %v246
      %v451 = vunpack.c.l.b16 %v247
      %v452 = vunpack.c.l.b16 %v248
      %v453 = vunpack.c.l.b16 %v249
      %v454 = vunpack.c.l.b16 %v250
      %v455 = vunpack.c.l.b16 %v251
      %v456 = vunpack.c.l.b16 %v252
      %v457 = vunpack.c.l.b16 %v253
      %v458 = vunpack.c.l.b16 %v254
      %v459 = vunpack.c.l.b16 %v255
      %v460 = vunpack.c.l.b16 %v256
      %v461 = vunpack.c.l.b16 %v257
      %v462 = vunpack.c.l.b16 %v258
      %v463 = vunpack.c.l.b16 %v259
      %v464 = vunpack.c.l.b16 %v260
      %v465 = vunpack.c.l.b16 %v261
      %v466 = vunpack.c.l.b16 %v262
      %v467 = vunpack.c.l.b16 %v263
      %v468 = vunpack.c.l.b16 %v264
      %v469 = vunpack.c.l.b16 %v265
      %v470 = vunpack.c.l.b16 %v266
      %v471 = vunpack.c.l.b16 %v267
      %v472 = vunpack.c.l.b16 %v268
      %v473 = vunpack.c.l.b16 %v269
      %v474 = vunpack.c.l.b16 %v270
      %v475 = vunpack.c.l.b16 %v271
      %v476 = vunpack.c.l.b16 %v272
      %v477 = vunpack.c.l.b16 %v273
      %v478 = vunpack.c.l.b16 %v274
      %v479 = vunpack.c.l.b16 %v275
      %v480 = vunpack.c.l.b16 %v276
      %v481 = vunpack.c.l.b16 %v277
      %v482 = vunpack.c.l.b16 %v278
      %v483 = vunpack.c.l.b16 %v279
      %v484 = vunpack.c.l.b16 %v280
      %v485 = vunpack.c.l.b16 %v281
      %v486 = vunpack.c.l.b16 %v282
      %v487 = vunpack.c.l.b16 %v283
      %v488 = vunpack.c.l.b16 %v284
      %v489 = vunpack.c.l.b16 %v285
      %v490 = vunpack.c.l.b16 %v286
      %v491 = vunpack.c.l.b16 %v287
      %v492 = vunpack.c.l.b16 %v288
      %v493 = vunpack.c.l.b16 %v289
      %v494 = vunpack.c.l.b16 %v290
      %v495 = vunpack.c.l.b16 %v291
      %v496 = vunpack.c.l.b16 %v292
      %v497 = vunpack.c.l.b16 %v293
      %v498 = vunpack.c.l.b16 %v294
      %v499 = vunpack.c.l.b16 %v295
      %v500 = vunpack.c.l.b16 %v296
      %v501 = vunpack.c.l.b16 %v297
      %v502 = vunpack.c.l.b16 %v298
      %v503 = vunpack.c.l.b16 %v299
      %v504 = vunpack.c.l.b16 %v300
      %v505 = vunpack.c.l.b16 %v301
      %v506 = vunpack.c.l.b16 %v302
      %v507 = vunpack.c.l.b16 %v303
      %v508 = vunpack.c.l.b16 %v304
      %v509 = vunpack.c.l.b16 %v305
      %v510 = vunpack.c.l.b16 %v306
      %v511 = vunpack.c.l.b16 %v307
      %v512 = vunpack.c.l.b16 %v308
      %v513 = vunpack.c.l.b16 %v309
      %v514 = vunpack.c.l.b16 %v310
      %v515 = vunpack.c.l.b16 %v311
      %v516 = vunpack.c.l.b16 %v312
      %v517 = vunpack.c.l.b16 %v313
      %v518 = vunpack.c.l.b16 %v314
      %v519 = vunpack.c.l.b16 %v315
      %v520 = vunpack.c.l.b16 %v316
      %v521 = vunpack.c.l.b16 %v317
      %v522 = vpack.c.b16 %v451, %v450
      %v523 = vpack.c.b16 %v453, %v452
      %v524 = vpack.c.b16 %v455, %v454
      %v525 = vpack.c.b16 %v457, %v456
      %v526 = vpack.c.b16 %v459, %v458
      %v527 = vpack.c.b16 %v461, %v460
      %v528 = vpack.c.b16 %v463, %v462
      %v529 = vpack.c.b16 %v465, %v464
      %v530 = vpack.c.b16 %v467, %v466
      %v531 = vpack.c.b16 %v469, %v468
      %v532 = vpack.c.b16 %v471, %v470
      %v533 = vpack.c.b16 %v473, %v472
      %v534 = vpack.c.b16 %v475, %v474
      %v535 = vpack.c.b16 %v477, %v476
      %v536 = vpack.c.b16 %v479, %v478
      %v537 = vpack.c.b16 %v481, %v480
      %v538 = vpack.c.b16 %v483, %v482
      %v539 = vpack.c.b16 %v485, %v484
      %v540 = vpack.c.b16 %v487, %v486
      %v541 = vpack.c.b16 %v489, %v488
      %v542 = vpack.c.b16 %v491, %v490
      %v543 = vpack.c.b16 %v493, %v492
      %v544 = vpack.c.b16 %v495, %v494
      %v545 = vpack.c.b16 %v497, %v496
      %v546 = vpack.c.b16 %v499, %v498
      %v547 = vpack.c.b16 %v501, %v500
      %v548 = vpack.c.b16 %v503, %v502
      %v549 = vpack.c.b16 %v505, %v504
      %v550 = vpack.c.b16 %v507, %v506
      %v551 = vpack.c.b16 %v509, %v508
      %v552 = vpack.c.b16 %v511, %v510
      %v553 = vpack.c.b16 %v513, %v512
      %v554 = vpack.c.b16 %v515, %v514
      %v555 = vpack.c.b16 %v517, %v516
      %v556 = vpack.c.b16 %v519, %v518
      %v557 = vpack.c.b16 %v521, %v520
      %vm594 = vcmask 523264
      %v596 = vsel %vm594, %v364, 0
      %v599 = vsel %vm594, %v369, 0
      %601 = vmatprep.subr.bf16.mxu0 0
      %602 = vmatpush1.bf16.msra.mxu0 %v522
      %603 = vmatprep.subr.bf16.mxu0 0
      %604 = vmatpush1.bf16.msra.mxu0 %v523
      %605 = vmatprep.subr.bf16.mxu0 0
      %606 = vmatpush1.bf16.msra.mxu0 %v524
      %607 = vmatprep.subr.bf16.mxu0 0
      %608 = vmatpush1.bf16.msra.mxu0 %v525
      %609 = vmatprep.subr.bf16.mxu0 0
      %610 = vmatpush1.bf16.msra.mxu0 %v526
      %611 = vmatprep.subr.bf16.mxu0 0
      %612 = vmatpush1.bf16.msra.mxu0 %v527
      %613 = vmatprep.subr.bf16.mxu0 0
      %614 = vmatpush1.bf16.msra.mxu0 %v528
      %615 = vmatprep.subr.bf16.mxu0 0
      %616 = vmatpush1.bf16.msra.mxu0 %v529
      %617 = vmatprep.subr.bf16.mxu0 0
      %618 = vmatpush1.bf16.msra.mxu0 %v530
      %619 = vmatprep.subr.bf16.mxu0 0
      %620 = vmatpush1.bf16.msra.mxu0 %v531
      %621 = vmatprep.subr.bf16.mxu0 0
      %622 = vmatpush1.bf16.msra.mxu0 %v532
      %623 = vmatprep.subr.bf16.mxu0 0
      %624 = vmatpush1.bf16.msra.mxu0 %v533
      %625 = vmatprep.subr.bf16.mxu0 0
      %626 = vmatpush1.bf16.msra.mxu0 %v534
      %627 = vmatprep.subr.bf16.mxu0 0
      %628 = vmatpush1.bf16.msra.mxu0 %v535
      %629 = vmatprep.subr.bf16.mxu0 0
      %630 = vmatpush1.bf16.msra.mxu0 %v536
      %631 = vmatprep.subr.bf16.mxu0 0
      %632 = vmatpush1.bf16.msra.mxu0 %v537
      %633 = vmatprep.mubr.bf16.mxu0 %v361
      %634 = vmatmul.mubr.bf16.gmra.mrb[0].mxu0 %v360
      %v635 = vpop.f32.mrb[0].mxu0
      %v636 = vadd.f32 %v324, %v635
      %v637 = vpop.f32.mrb[0].mxu0
      %v638 = vpop.f32.mrb[0].mxu0
      %v639 = vadd.f32 %v329, %v638
      %v640 = vpop.f32.mrb[0].mxu0
      %641 = vmatprep.mubr.bf16.mxu0 %v366
      %642 = vmatmul.mubr.bf16.gmra.mrb[0].mxu0 %v365
      %v643 = vpop.f32.mrb[0].mxu0
      %v644 = vadd.f32 %v334, %v643
      %v645 = vpop.f32.mrb[0].mxu0
      %v646 = vpop.f32.mrb[0].mxu0
      %v647 = vpop.f32.mrb[0].mxu0
      %648 = vdwg.mxu0
      %649 = vmatprep.subr.bf16.mxu0 0
      %650 = vmatpush1.bf16.msra.mxu0 %v538
      %651 = vmatprep.subr.bf16.mxu0 0
      %652 = vmatpush1.bf16.msra.mxu0 %v539
      %653 = vmatprep.subr.bf16.mxu0 0
      %654 = vmatpush1.bf16.msra.mxu0 %v540
      %655 = vmatprep.subr.bf16.mxu0 0
      %656 = vmatpush1.bf16.msra.mxu0 %v541
      %657 = vmatprep.subr.bf16.mxu0 0
      %658 = vmatpush1.bf16.msra.mxu0 %v542
      %659 = vmatprep.subr.bf16.mxu0 0
      %660 = vmatpush1.bf16.msra.mxu0 %v543
      %661 = vmatprep.subr.bf16.mxu0 0
      %662 = vmatpush1.bf16.msra.mxu0 %v544
      %663 = vmatprep.subr.bf16.mxu0 0
      %664 = vmatpush1.bf16.msra.mxu0 %v545
      %665 = vmatprep.subr.bf16.mxu0 0
      %666 = vmatpush1.bf16.msra.mxu0 %v546
      %667 = vmatprep.subr.bf16.mxu0 0
      %668 = vmatpush1.bf16.msra.mxu0 %v547
      %669 = vmatprep.subr.bf16.mxu0 0
      %670 = vmatpush1.bf16.msra.mxu0 %v548
      %671 = vmatprep.subr.bf16.mxu0 0
      %672 = vmatpush1.bf16.msra.mxu0 %v549
      %673 = vmatprep.subr.bf16.mxu0 0
      %674 = vmatpush1.bf16.msra.mxu0 %v550
      %675 = vmatprep.subr.bf16.mxu0 0
      %676 = vmatpush1.bf16.msra.mxu0 %v551
      %677 = vmatprep.subr.bf16.mxu0 0
      %678 = vmatpush1.bf16.msra.mxu0 %v552
      %679 = vmatprep.subr.bf16.mxu0 0
      %680 = vmatpush1.bf16.msra.mxu0 %v553
      %681 = vmatprep.mubr.bf16.mxu0 %v363
      %682 = vmatmul.mubr.bf16.gmra.mrb[0].mxu0 %v362
      %v683 = vpop.f32.mrb[0].mxu0
      %v684 = vadd.f32 %v636, %v683
      %v685 = vpop.f32.mrb[0].mxu0
      %v686 = vpop.f32.mrb[0].mxu0
      %v687 = vadd.f32 %v639, %v686
      %v688 = vpop.f32.mrb[0].mxu0
      %689 = vmatprep.mubr.bf16.mxu0 %v368
      %690 = vmatmul.mubr.bf16.gmra.mrb[0].mxu0 %v367
      %v691 = vpop.f32.mrb[0].mxu0
      %v692 = vadd.f32 %v644, %v691
      %v693 = vpop.f32.mrb[0].mxu0
      %v694 = vpop.f32.mrb[0].mxu0
      %v695 = vpop.f32.mrb[0].mxu0
      %696 = vdwg.mxu0
      %697 = vmatprep.subr.bf16.mxu0 0
      %698 = vmatpush1.bf16.msra.mxu0 %v554
      %699 = vmatprep.subr.bf16.mxu0 0
      %700 = vmatpush1.bf16.msra.mxu0 %v555
      %701 = vmatprep.subr.bf16.mxu0 0
      %702 = vmatpush1.bf16.msra.mxu0 %v556
      %703 = vmatprep.subr.bf16.mxu0 0
      %704 = vmatpush1.bf16.msra.mxu0 %v557
      %705 = vmatprep.subr.bf16.mxu0 0
      %706 = vmatpush1.bf16.msra.mxu0 0
      %707 = vmatprep.subr.bf16.mxu0 0
      %708 = vmatpush1.bf16.msra.mxu0 0
      %709 = vmatprep.subr.bf16.mxu0 0
      %710 = vmatpush1.bf16.msra.mxu0 0
      %711 = vmatprep.subr.bf16.mxu0 0
      %712 = vmatpush1.bf16.msra.mxu0 0
      %713 = vmatprep.subr.bf16.mxu0 0
      %714 = vmatpush1.bf16.msra.mxu0 0
      %715 = vmatprep.subr.bf16.mxu0 0
      %716 = vmatpush1.bf16.msra.mxu0 0
      %717 = vmatprep.subr.bf16.mxu0 0
      %718 = vmatpush1.bf16.msra.mxu0 0
      %719 = vmatprep.subr.bf16.mxu0 0
      %720 = vmatpush1.bf16.msra.mxu0 0
      %721 = vmatprep.subr.bf16.mxu0 0
      %722 = vmatpush1.bf16.msra.mxu0 0
      %723 = vmatprep.subr.bf16.mxu0 0
      %724 = vmatpush1.bf16.msra.mxu0 0
      %725 = vmatprep.subr.bf16.mxu0 0
      %726 = vmatpush1.bf16.msra.mxu0 0
      %727 = vmatprep.subr.bf16.mxu0 0
      %728 = vmatpush1.bf16.msra.mxu0 0
      %729 = vmatprep.mubr.bf16.mxu0 0
      %730 = vmatmul.mubr.bf16.gmra.mrb[0].mxu0 %v596
      %v731 = vpop.f32.mrb[0].mxu0
      %v732 = vadd.f32 %v684, %v731
      %v733 = vpop.f32.mrb[0].mxu0
      %v734 = vpop.f32.mrb[0].mxu0
      %v735 = vadd.f32 %v687, %v734
      %v736 = vpop.f32.mrb[0].mxu0
      %737 = vmatprep.mubr.bf16.mxu0 0
      %738 = vmatmul.mubr.bf16.gmra.mrb[0].mxu0 %v599
      %v739 = vpop.f32.mrb[0].mxu0
      %v740 = vadd.f32 %v692, %v739
      %v741 = vpop.f32.mrb[0].mxu0
      %v742 = vpop.f32.mrb[0].mxu0
      %v743 = vpop.f32.mrb[0].mxu0
      %744 = vdwg.mxu0
      %745 = vst [vmem:[%s234] sm:$0xff] %v732
      %746 = vst [vmem:[%s234 + $0x8] sm:$0xff] %v735
      %747 = vst [vmem:[%s234 + $0x10] sm:$0xff] %v740
      %s748 = smul.u32 3, %s18
      %p749 = scmp.lt.s32.totalorder %s748, 5
      %s750 = scalar_select %p749, %s748, 5
      %p751 = scmp.lt.s32.totalorder %s19, 0
      %s752 = scalar_select %p751, %s19, 0
      %s753 = sadd.s32 %s752, %s750
      %s754 = smul.addr %s753, 8
      %s755 = scalar_lea.vmem %s3, %s754
      // Predicated region
      $region33: #{plane_decoder_forward.11} parent=31 // pred_check
        %p756 = pneg %p124
      $region34: #{plane_decoder_forward.11} parent=31 // pred_check_branch
        %758 = sbr.rel (%p756) target = $region36
      $region35: #{plane_decoder_forward.11} parent=31 // pred_region
        %s759 = smul.u32 3, %s18
      $region36: #{plane_decoder_forward.11} parent=31 // pred_fallthru
        _
    $region32: #{plane_decoder_forward.11} parent=5 // pred_fallthru
      _
    %p760 = scmp.le.s32.totalorder 2, %s9
    // Predicated region
    $region37: #{plane_decoder_forward.11} parent=5 // pred_check
      %p761 = pneg %p760
    $region38: #{plane_decoder_forward.11} parent=5 // pred_check_branch
      %763 = sbr.rel (%p761) target = $region40
    $region39: #{plane_decoder_forward.11} parent=5 // pred_region
      %s764 = ssub.s32 %s9, 2
      // Predicated region
      $region41: #{plane_decoder_forward.11} parent=39 // pred_check
        %p765 = pneg %p130
      $region42: #{plane_decoder_forward.11} parent=39 // pred_check_branch
        %767 = sbr.rel (%p765) target = $region44
      $region43: #{plane_decoder_forward.11} parent=39 // pred_region
        %s768 = smul.u32 3, %s20
        %p769 = scmp.lt.s32.totalorder %s768, 5
        %s770 = scalar_select %p769, %s768, 5
        %p771 = scmp.lt.s32.totalorder %s21, 0
        %s772 = scalar_select %p771, %s21, 0
        %s773 = sadd.s32 %s772, %s770
        %s774 = smul.addr %s773, 8
        %s775 = scalar_lea.vmem %s3, %s774
      $region44: #{plane_decoder_forward.11} parent=39 // pred_fallthru
        _
    $region40: #{plane_decoder_forward.11} parent=5 // pred_fallthru
      _
  $region6: #{plane_decoder_forward.11} parent=0 // loop_footer
    %s13 = sadd.s32 1, %s9
  $region7: #{plane_decoder_forward.11} parent=0 // loop_footer_branch
    %8 = sbr.rel target = $region3
  $region8: #{plane_decoder_forward.11} parent=0 // loop_exit
    _

// kernel: plane_decoder_forward.9
$region0: #{plane_decoder_forward.9}
  #allocation0 [shape = 'u32[]', space=smem, size = 0x4, offset = 0x4, fixed_abs, tag = 'smem constant byte address 0x4 - core index']
  #allocation1 [shape = 'u32[144,128]{1,0:T(1,128)}', space=vmem, size = 0x12000, scoped, tag = 'internal scratch']
  %s0 = inlined_call_operand.vmem [shape: bf16[24,576], index: 0, kind: input, shape index: {}]
  %s1 = inlined_call_operand.vmem [shape: bf16[576,512], index: 1, kind: input, shape index: {}]
  %s2 = inlined_call_operand.vmem [shape: f32[24,1], index: 2, kind: input, shape index: {}]
  %s3 = inlined_call_operand.vmem [shape: f32[24,512], index: 3, kind: output, shape index: {}]
  %s4 = sld [smem:[#allocation0]]
  $region102: #{plane_decoder_forward.9} parent=0
    _
  %s6 = ssub.s32 1, %s4
  %s7 = scalar_select 0, %s6, %s4
  $region1: #{plane_decoder_forward.9} parent=0
    #allocation2 [shape = 'u8[589824]{0}', space=vmem, size = 0x90000, scoped, tag = 'input window, operand 1']
    #allocation3 [shape = 'u8[49152]{0}', space=vmem, size = 0xc000, scoped, tag = 'output window, operand 0']
    loop: start=0, step=1, limit=4
    $region2: #{plane_decoder_forward.9} parent=1 // loop_pre_header
      _
    $region3: #{plane_decoder_forward.9} parent=1 // loop_header
      %s9 = sphi 0, %s13
      %p10 = scmp.ge.s32.totalorder %s9, 4
      %s16 = sphi 0, %s28
      %s17 = sphi 0, %s24
      %s18 = sphi 0, %s16
      %s19 = sphi 0, %s17
      %s20 = sphi 0, %s18
      %s21 = sphi 0, %s19
      %s31 = sphi 0, %s33
      %s34 = sphi 0, %s31
      %s35 = sphi 0, %s34
      %s51 = sphi 0, %s35
      %s57 = sphi 0, %s59
      %s60 = sphi 0, %s57
      %s61 = sphi 0, %s60
      %s77 = sphi 0, %s61
      %s83 = sphi 0, %s85
      %s86 = sphi 0, %s83
      %s87 = sphi 0, %s86
      %s103 = sphi 0, %s87
      %s111 = sphi 0, %s113
      %s114 = sphi 0, %s111
      %s115 = sphi 0, %s114
      %s131 = sphi 0, %s115
    $region4: #{plane_decoder_forward.9} parent=1 // loop_header_branch
      %12 = sbr.rel (%p10) target = $region8
    $region5: #{plane_decoder_forward.9} parent=1 // loop_body
      %s14 = ssub.s32 %s9, 1
      %s15 = ssub.s32 %s9, 2
      %s22 = sadd.s32 1, %s17
      %p23 = scmp.ge.s32.totalorder %s22, 2
      %s24 = scalar_select %p23, 0, %s22
      %s25 = sadd.s32 1, %s16
      %s26 = scalar_select %p23, %s25, %s16
      %p27 = scmp.ge.s32.totalorder %s26, 1
      %s28 = scalar_select %p27, 0, %s26
      %s29 = ssub.s32 %s16, %s28
      %p30 = scmp.eq.s32.totalorder %s29, 0
      %s32 = sadd.s32 %s31, 1
      %s33 = scalar_select %p30, %s31, %s32
      %p36 = pneg %p30
      %p37 = scmp.eq.s32.totalorder %s9, 1
      %p38 = por %p36, %p37
      %p39 = scmp.ne.s32.totalorder %s31, %s34
      %p40 = scmp.eq.s32.totalorder %s9, 0
      %p41 = por %p39, %p40
      %p42 = scmp.ne.s32.totalorder %s31, %s34
      %p43 = scmp.eq.s32.totalorder %s14, 1
      %p44 = por %p42, %p43
      %p45 = scmp.ne.s32.totalorder %s34, %s35
      %p46 = scmp.eq.s32.totalorder %s14, 0
      %p47 = por %p45, %p46
      %p48 = scmp.ne.s32.totalorder %s34, %s35
      %p49 = scmp.eq.s32.totalorder %s15, 1
      %p50 = por %p48, %p49
      %p52 = scmp.ne.s32.totalorder %s35, %s51
      %p53 = scmp.eq.s32.totalorder %s15, 0
      %p54 = por %p52, %p53
      %s55 = ssub.s32 %s17, %s24
      %p56 = scmp.eq.s32.totalorder %s55, 0
      %s58 = sadd.s32 %s57, 1
      %s59 = scalar_select %p56, %s57, %s58
      %p62 = pneg %p56
      %p63 = scmp.eq.s32.totalorder %s9, 1
      %p64 = por %p62, %p63
      %p65 = scmp.ne.s32.totalorder %s57, %s60
      %p66 = scmp.eq.s32.totalorder %s9, 0
      %p67 = por %p65, %p66
      %p68 = scmp.ne.s32.totalorder %s57, %s60
      %p69 = scmp.eq.s32.totalorder %s14, 1
      %p70 = por %p68, %p69
      %p71 = scmp.ne.s32.totalorder %s60, %s61
      %p72 = scmp.eq.s32.totalorder %s14, 0
      %p73 = por %p71, %p72
      %p74 = scmp.ne.s32.totalorder %s60, %s61
      %p75 = scmp.eq.s32.totalorder %s15, 1
      %p76 = por %p74, %p75
      %p78 = scmp.ne.s32.totalorder %s61, %s77
      %p79 = scmp.eq.s32.totalorder %s15, 0
      %p80 = por %p78, %p79
      %s81 = ssub.s32 %s16, %s28
      %p82 = scmp.eq.s32.totalorder %s81, 0
      %s84 = sadd.s32 %s83, 1
      %s85 = scalar_select %p82, %s83, %s84
      %p88 = pneg %p82
      %p89 = scmp.eq.s32.totalorder %s9, 1
      %p90 = por %p88, %p89
      %p91 = scmp.ne.s32.totalorder %s83, %s86
      %p92 = scmp.eq.s32.totalorder %s9, 0
      %p93 = por %p91, %p92
      %p94 = scmp.ne.s32.totalorder %s83, %s86
      %p95 = scmp.eq.s32.totalorder %s14, 1
      %p96 = por %p94, %p95
      %p97 = scmp.ne.s32.totalorder %s86, %s87
      %p98 = scmp.eq.s32.totalorder %s14, 0
      %p99 = por %p97, %p98
      %p100 = scmp.ne.s32.totalorder %s86, %s87
      %p101 = scmp.eq.s32.totalorder %s15, 1
      %p102 = por %p100, %p101
      %p104 = scmp.ne.s32.totalorder %s87, %s103
      %p105 = scmp.eq.s32.totalorder %s15, 0
      %p106 = por %p104, %p105
      %s107 = ssub.s32 %s16, %s28
      %s108 = ssub.s32 %s17, %s24
      %s109 = sor.u32 %s107, %s108
      %p110 = scmp.eq.s32.totalorder %s109, 0
      %s112 = sadd.s32 %s111, 1
      %s113 = scalar_select %p110, %s111, %s112
      %p116 = pneg %p110
      %p117 = scmp.eq.s32.totalorder %s9, 1
      %p118 = por %p116, %p117
      %p119 = scmp.ne.s32.totalorder %s111, %s114
      %p120 = scmp.eq.s32.totalorder %s9, 0
      %p121 = por %p119, %p120
      %p122 = scmp.ne.s32.totalorder %s111, %s114
      %p123 = scmp.eq.s32.totalorder %s14, 1
      %p124 = por %p122, %p123
      %p125 = scmp.ne.s32.totalorder %s114, %s115
      %p126 = scmp.eq.s32.totalorder %s14, 0
      %p127 = por %p125, %p126
      %p128 = scmp.ne.s32.totalorder %s114, %s115
      %p129 = scmp.eq.s32.totalorder %s15, 1
      %p130 = por %p128, %p129
      %p132 = scmp.ne.s32.totalorder %s115, %s131
      %p133 = scmp.eq.s32.totalorder %s15, 0
      %p134 = por %p132, %p133
      %p135 = scmp.le.s32.totalorder 1, %s9
      %p136 = scmp.lt.s32.totalorder %s9, 3
      %p137 = pnand %p135, %p136
      %p138 = pneg %p137
      // Predicated region
      $region9: #{plane_decoder_forward.9} parent=5 // pred_check
        _
      $region10: #{plane_decoder_forward.9} parent=5 // pred_check_branch
        %140 = sbr.rel (%p137) target = $region12
      $region11: #{plane_decoder_forward.9} parent=5 // pred_region
        %s141 = ssub.s32 %s9, 1
        // Predicated region
        $region13: #{plane_decoder_forward.9} parent=11 // pred_check
          %p142 = pneg %p47
        $region14: #{plane_decoder_forward.9} parent=11 // pred_check_branch
          %144 = sbr.rel (%p142) target = $region16
        $region15: #{plane_decoder_forward.9} parent=11 // pred_region
          %s145 = smul.u32 3, %s18
          %p146 = scmp.lt.s32.totalorder %s145, 2
          %s147 = scalar_select %p146, %s145, 2
          %s148 = smul.addr %s147, 5
          %s149 = smul.addr %s148, 4
          %s150 = scalar_lea.vmem %s0, %s149
          %s151 = smul.u32 3, %s18
        $region16: #{plane_decoder_forward.9} parent=11 // pred_fallthru
          _
        // Predicated region
        $region17: #{plane_decoder_forward.9} parent=11 // pred_check
          %p152 = pneg %p99
        $region18: #{plane_decoder_forward.9} parent=11 // pred_check_branch
          %154 = sbr.rel (%p152) target = $region20
        $region19: #{plane_decoder_forward.9} parent=11 // pred_region
          %s155 = smul.u32 3, %s18
          %p156 = scmp.lt.s32.totalorder %s155, 2
          %s157 = scalar_select %p156, %s155, 2
          %s158 = smul.addr %s157, 8
          %s159 = scalar_lea.vmem %s2, %s158
          %s160 = smul.u32 3, %s18
        $region20: #{plane_decoder_forward.9} parent=11 // pred_fallthru
          _
      $region12: #{plane_decoder_forward.9} parent=5 // pred_fallthru
        _
      %p161 = scmp.lt.s32.totalorder %s9, 2
      // Predicated region
      $region21: #{plane_decoder_forward.9} parent=5 // pred_check
        %p162 = pneg %p161
      $region22: #{plane_decoder_forward.9} parent=5 // pred_check_branch
        %164 = sbr.rel (%p162) target = $region24
      $region23: #{plane_decoder_forward.9} parent=5 // pred_region
        // Predicated region
        $region25: #{plane_decoder_forward.9} parent=23 // pred_check
          %p165 = pneg %p67
        $region26: #{plane_decoder_forward.9} parent=23 // pred_check_branch
          %167 = sbr.rel (%p165) target = $region28
        $region27: #{plane_decoder_forward.9} parent=23 // pred_region
          %s168 = sand.u32 %s57, 1
          %s169 = sand.u32 %s57, 1
          %s170 = smul.addr %s169, 576
          %s171 = scalar_lea.vmem [#allocation2], %s170
          %s172 = smul.u32 2, %s17
          %s173 = smul.addr %s172, 4
          %s174 = scalar_lea.vmem %s1, %s173
          // Predicated region
          $region29: #{plane_decoder_forward.9} parent=27 // pred_check
            _
          $region30: #{plane_decoder_forward.9} parent=27 // pred_check_branch
            %176 = sbr.rel (0) target = $region32
          $region31: #{plane_decoder_forward.9} parent=27 // pred_region
            // Predicated region
            $region33: #{plane_decoder_forward.9} parent=31 // pred_check
              _
            $region34: #{plane_decoder_forward.9} parent=31 // pred_check_branch
              %178 = sbr.rel (0) target = $region36
            $region35: #{plane_decoder_forward.9} parent=31 // pred_region
              // Predicated region
              $region48: #{plane_decoder_forward.9} parent=35 // pred_check
                _
              $region49: #{plane_decoder_forward.9} parent=35 // pred_check_branch
                %335 = sbr.rel (0) target = $region51
              $region50: #{plane_decoder_forward.9} parent=35 // pred_region
                loop: start=0, step=1, limit=1
                $region52: #{plane_decoder_forward.9} parent=50 // loop_pre_header
                  _
                $region53: #{plane_decoder_forward.9} parent=50 // loop_header
                  %s337 = sphi 0, %s341
                  %p338 = scmp.ge.s32.totalorder %s337, 1
                  %s342 = sphi %s174, %s174
                  %s343 = sphi %s171, %s171
                $region54: #{plane_decoder_forward.9} parent=50 // loop_header_branch
                  %340 = sbr.rel (%p338) target = $region58
                $region55: #{plane_decoder_forward.9} parent=50 // loop_body
                  %v344 = vld [vmem:[%s342] sm:$0xff]
                  %345 = vst [vmem:[%s343] sm:$0xff] %v344
                  %v346 = vld [vmem:[%s342 + $0x10] sm:$0xff]
                  %347 = vst [vmem:[%s343 + $0x8] sm:$0xff] %v346
                  %v348 = vld [vmem:[%s342 + $0x20] sm:$0xff]
                  %349 = vst [vmem:[%s343 + $0x10] sm:$0xff] %v348
                  %v350 = vld [vmem:[%s342 + $0x30] sm:$0xff]
                  %351 = vst [vmem:[%s343 + $0x18] sm:$0xff] %v350
                  %v352 = vld [vmem:[%s342 + $0x40] sm:$0xff]
                  %353 = vst [vmem:[%s343 + $0x20] sm:$0xff] %v352
                  %v354 = vld [vmem:[%s342 + $0x50] sm:$0xff]
                  %355 = vst [vmem:[%s343 + $0x28] sm:$0xff] %v354
                  %v356 = vld [vmem:[%s342 + $0x60] sm:$0xff]
                  %357 = vst [vmem:[%s343 + $0x30] sm:$0xff] %v356
                  %v358 = vld [vmem:[%s342 + $0x70] sm:$0xff]
                  %359 = vst [vmem:[%s343 + $0x38] sm:$0xff] %v358
                  %v360 = vld [vmem:[%s342 + $0x80] sm:$0xff]
                  %361 = vst [vmem:[%s343 + $0x40] sm:$0xff] %v360
                  %v362 = vld [vmem:[%s342 + $0x90] sm:$0xff]
                  %363 = vst [vmem:[%s343 + $0x48] sm:$0xff] %v362
                  %v364 = vld [vmem:[%s342 + $0xa0] sm:$0xff]
                  %365 = vst [vmem:[%s343 + $0x50] sm:$0xff] %v364
                  %v366 = vld [vmem:[%s342 + $0xb0] sm:$0xff]
                  %367 = vst [vmem:[%s343 + $0x58] sm:$0xff] %v366
                  %v368 = vld [vmem:[%s342 + $0xc0] sm:$0xff]
                  %369 = vst [vmem:[%s343 + $0x60] sm:$0xff] %v368
                  %v370 = vld [vmem:[%s342 + $0xd0] sm:$0xff]
                  %371 = vst [vmem:[%s343 + $0x68] sm:$0xff] %v370
                  %v372 = vld [vmem:[%s342 + $0xe0] sm:$0xff]
                  %373 = vst [vmem:[%s343 + $0x70] sm:$0xff] %v372
                  %v374 = vld [vmem:[%s342 + $0xf0] sm:$0xff]
                  %375 = vst [vmem:[%s343 + $0x78] sm:$0xff] %v374
                  %v376 = vld [vmem:[%s342 + $0x100] sm:$0xff]
                  %377 = vst [vmem:[%s343 + $0x80] sm:$0xff] %v376
                  %v378 = vld [vmem:[%s342 + $0x110] sm:$0xff]
                  %379 = vst [vmem:[%s343 + $0x88] sm:$0xff] %v378
                  %v380 = vld [vmem:[%s342 + $0x120] sm:$0xff]
                  %381 = vst [vmem:[%s343 + $0x90] sm:$0xff] %v380
                  %v382 = vld [vmem:[%s342 + $0x130] sm:$0xff]
                  %383 = vst [vmem:[%s343 + $0x98] sm:$0xff] %v382
                  %v384 = vld [vmem:[%s342 + $0x140] sm:$0xff]
                  %385 = vst [vmem:[%s343 + $0xa0] sm:$0xff] %v384
                  %v386 = vld [vmem:[%s342 + $0x150] sm:$0xff]
                  %387 = vst [vmem:[%s343 + $0xa8] sm:$0xff] %v386
                  %v388 = vld [vmem:[%s342 + $0x160] sm:$0xff]
                  %389 = vst [vmem:[%s343 + $0xb0] sm:$0xff] %v388
                  %v390 = vld [vmem:[%s342 + $0x170] sm:$0xff]
                  %391 = vst [vmem:[%s343 + $0xb8] sm:$0xff] %v390
                  %v392 = vld [vmem:[%s342 + $0x180] sm:$0xff]
                  %393 = vst [vmem:[%s343 + $0xc0] sm:$0xff] %v392
                  %v394 = vld [vmem:[%s342 + $0x190] sm:$0xff]
                  %395 = vst [vmem:[%s343 + $0xc8] sm:$0xff] %v394
                  %v396 = vld [vmem:[%s342 + $0x1a0] sm:$0xff]
                  %397 = vst [vmem:[%s343 + $0xd0] sm:$0xff] %v396
                  %v398 = vld [vmem:[%s342 + $0x1b0] sm:$0xff]
                  %399 = vst [vmem:[%s343 + $0xd8] sm:$0xff] %v398
                  %v400 = vld [vmem:[%s342 + $0x1c0] sm:$0xff]
                  %401 = vst [vmem:[%s343 + $0xe0] sm:$0xff] %v400
                  %v402 = vld [vmem:[%s342 + $0x1d0] sm:$0xff]
                  %403 = vst [vmem:[%s343 + $0xe8] sm:$0xff] %v402
                  %v404 = vld [vmem:[%s342 + $0x1e0] sm:$0xff]
                  %405 = vst [vmem:[%s343 + $0xf0] sm:$0xff] %v404
                  %v406 = vld [vmem:[%s342 + $0x1f0] sm:$0xff]
                  %407 = vst [vmem:[%s343 + $0xf8] sm:$0xff] %v406
                  %v408 = vld [vmem:[%s342 + $0x200] sm:$0xff]
                  %409 = vst [vmem:[%s343 + $0x100] sm:$0xff] %v408
                  %v410 = vld [vmem:[%s342 + $0x210] sm:$0xff]
                  %411 = vst [vmem:[%s343 + $0x108] sm:$0xff] %v410
                  %v412 = vld [vmem:[%s342 + $0x220] sm:$0xff]
                  %413 = vst [vmem:[%s343 + $0x110] sm:$0xff] %v412
                  %v414 = vld [vmem:[%s342 + $0x230] sm:$0xff]
                  %415 = vst [vmem:[%s343 + $0x118] sm:$0xff] %v414
                  %v416 = vld [vmem:[%s342 + $0x240] sm:$0xff]
                  %417 = vst [vmem:[%s343 + $0x120] sm:$0xff] %v416
                  %v418 = vld [vmem:[%s342 + $0x250] sm:$0xff]
                  %419 = vst [vmem:[%s343 + $0x128] sm:$0xff] %v418
                  %v420 = vld [vmem:[%s342 + $0x260] sm:$0xff]
                  %421 = vst [vmem:[%s343 + $0x130] sm:$0xff] %v420
                  %v422 = vld [vmem:[%s342 + $0x270] sm:$0xff]
                  %423 = vst [vmem:[%s343 + $0x138] sm:$0xff] %v422
                  %v424 = vld [vmem:[%s342 + $0x280] sm:$0xff]
                  %425 = vst [vmem:[%s343 + $0x140] sm:$0xff] %v424
                  %v426 = vld [vmem:[%s342 + $0x290] sm:$0xff]
                  %427 = vst [vmem:[%s343 + $0x148] sm:$0xff] %v426
                  %v428 = vld [vmem:[%s342 + $0x2a0] sm:$0xff]
                  %429 = vst [vmem:[%s343 + $0x150] sm:$0xff] %v428
                  %v430 = vld [vmem:[%s342 + $0x2b0] sm:$0xff]
                  %431 = vst [vmem:[%s343 + $0x158] sm:$0xff] %v430
                  %v432 = vld [vmem:[%s342 + $0x2c0] sm:$0xff]
                  %433 = vst [vmem:[%s343 + $0x160] sm:$0xff] %v432
                  %v434 = vld [vmem:[%s342 + $0x2d0] sm:$0xff]
                  %435 = vst [vmem:[%s343 + $0x168] sm:$0xff] %v434
                  %v436 = vld [vmem:[%s342 + $0x2e0] sm:$0xff]
                  %437 = vst [vmem:[%s343 + $0x170] sm:$0xff] %v436
                  %v438 = vld [vmem:[%s342 + $0x2f0] sm:$0xff]
                  %439 = vst [vmem:[%s343 + $0x178] sm:$0xff] %v438
                  %v440 = vld [vmem:[%s342 + $0x300] sm:$0xff]
                  %441 = vst [vmem:[%s343 + $0x180] sm:$0xff] %v440
                  %v442 = vld [vmem:[%s342 + $0x310] sm:$0xff]
                  %443 = vst [vmem:[%s343 + $0x188] sm:$0xff] %v442
                  %v444 = vld [vmem:[%s342 + $0x320] sm:$0xff]
                  %445 = vst [vmem:[%s343 + $0x190] sm:$0xff] %v444
                  %v446 = vld [vmem:[%s342 + $0x330] sm:$0xff]
                  %447 = vst [vmem:[%s343 + $0x198] sm:$0xff] %v446
                  %v448 = vld [vmem:[%s342 + $0x340] sm:$0xff]
                  %449 = vst [vmem:[%s343 + $0x1a0] sm:$0xff] %v448
                  %v450 = vld [vmem:[%s342 + $0x350] sm:$0xff]
                  %451 = vst [vmem:[%s343 + $0x1a8] sm:$0xff] %v450
                  %v452 = vld [vmem:[%s342 + $0x360] sm:$0xff]
                  %453 = vst [vmem:[%s343 + $0x1b0] sm:$0xff] %v452
                  %v454 = vld [vmem:[%s342 + $0x370] sm:$0xff]
                  %455 = vst [vmem:[%s343 + $0x1b8] sm:$0xff] %v454
                  %v456 = vld [vmem:[%s342 + $0x380] sm:$0xff]
                  %457 = vst [vmem:[%s343 + $0x1c0] sm:$0xff] %v456
                  %v458 = vld [vmem:[%s342 + $0x390] sm:$0xff]
                  %459 = vst [vmem:[%s343 + $0x1c8] sm:$0xff] %v458
                  %v460 = vld [vmem:[%s342 + $0x3a0] sm:$0xff]
                  %461 = vst [vmem:[%s343 + $0x1d0] sm:$0xff] %v460
                  %v462 = vld [vmem:[%s342 + $0x3b0] sm:$0xff]
                  %463 = vst [vmem:[%s343 + $0x1d8] sm:$0xff] %v462
                  %v464 = vld [vmem:[%s342 + $0x3c0] sm:$0xff]
                  %465 = vst [vmem:[%s343 + $0x1e0] sm:$0xff] %v464
                  %v466 = vld [vmem:[%s342 + $0x3d0] sm:$0xff]
                  %467 = vst [vmem:[%s343 + $0x1e8] sm:$0xff] %v466
                  %v468 = vld [vmem:[%s342 + $0x3e0] sm:$0xff]
                  %469 = vst [vmem:[%s343 + $0x1f0] sm:$0xff] %v468
                  %v470 = vld [vmem:[%s342 + $0x3f0] sm:$0xff]
                  %471 = vst [vmem:[%s343 + $0x1f8] sm:$0xff] %v470
                  %v472 = vld [vmem:[%s342 + $0x400] sm:$0xff]
                  %473 = vst [vmem:[%s343 + $0x200] sm:$0xff] %v472
                  %v474 = vld [vmem:[%s342 + $0x410] sm:$0xff]
                  %475 = vst [vmem:[%s343 + $0x208] sm:$0xff] %v474
                  %v476 = vld [vmem:[%s342 + $0x420] sm:$0xff]
                  %477 = vst [vmem:[%s343 + $0x210] sm:$0xff] %v476
                  %v478 = vld [vmem:[%s342 + $0x430] sm:$0xff]
                  %479 = vst [vmem:[%s343 + $0x218] sm:$0xff] %v478
                  %v480 = vld [vmem:[%s342 + $0x440] sm:$0xff]
                  %481 = vst [vmem:[%s343 + $0x220] sm:$0xff] %v480
                  %v482 = vld [vmem:[%s342 + $0x450] sm:$0xff]
                  %483 = vst [vmem:[%s343 + $0x228] sm:$0xff] %v482
                  %v484 = vld [vmem:[%s342 + $0x460] sm:$0xff]
                  %485 = vst [vmem:[%s343 + $0x230] sm:$0xff] %v484
                  %v486 = vld [vmem:[%s342 + $0x470] sm:$0xff]
                  %487 = vst [vmem:[%s343 + $0x238] sm:$0xff] %v486
                $region56: #{plane_decoder_forward.9} parent=50 // loop_footer
                  %s341 = sadd.s32 1, %s337
                $region57: #{plane_decoder_forward.9} parent=50 // loop_footer_branch
                  %336 = sbr.rel target = $region53
                $region58: #{plane_decoder_forward.9} parent=50 // loop_exit
                  _
              $region51: #{plane_decoder_forward.9} parent=35 // pred_fallthru
                _
              // Predicated region
              $region59: #{plane_decoder_forward.9} parent=35 // pred_check
                _
              $region60: #{plane_decoder_forward.9} parent=35 // pred_check_branch
                %489 = sbr.rel target = $region62
              $region61: #{plane_decoder_forward.9} parent=35 // pred_region
                _
              $region62: #{plane_decoder_forward.9} parent=35 // pred_fallthru
                _
            $region36: #{plane_decoder_forward.9} parent=31 // pred_fallthru
              _
            // Predicated region
            $region37: #{plane_decoder_forward.9} parent=31 // pred_check
              _
            $region38: #{plane_decoder_forward.9} parent=31 // pred_check_branch
              %180 = sbr.rel target = $region40
            $region39: #{plane_decoder_forward.9} parent=31 // pred_region
              loop: start=0, step=1, limit=1
              $region41: #{plane_decoder_forward.9} parent=39 // loop_pre_header
                _
              $region42: #{plane_decoder_forward.9} parent=39 // loop_header
                %s183 = sphi 0, %s187
                %p184 = scmp.ge.s32.totalorder %s183, 1
                %s188 = sphi %s174, %s174
                %s189 = sphi %s171, %s171
              $region43: #{plane_decoder_forward.9} parent=39 // loop_header_branch
                %186 = sbr.rel (%p184) target = $region47
              $region44: #{plane_decoder_forward.9} parent=39 // loop_body
                %v190 = vld [vmem:[%s188] sm:$0xff]
                %191 = vst [vmem:[%s189] sm:$0xff] %v190
                %v192 = vld [vmem:[%s188 + $0x10] sm:$0xff]
                %193 = vst [vmem:[%s189 + $0x8] sm:$0xff] %v192
                %v194 = vld [vmem:[%s188 + $0x20] sm:$0xff]
                %195 = vst [vmem:[%s189 + $0x10] sm:$0xff] %v194
                %v196 = vld [vmem:[%s188 + $0x30] sm:$0xff]
                %197 = vst [vmem:[%s189 + $0x18] sm:$0xff] %v196
                %v198 = vld [vmem:[%s188 + $0x40] sm:$0xff]
                %199 = vst [vmem:[%s189 + $0x20] sm:$0xff] %v198
                %v200 = vld [vmem:[%s188 + $0x50] sm:$0xff]
                %201 = vst [vmem:[%s189 + $0x28] sm:$0xff] %v200
                %v202 = vld [vmem:[%s188 + $0x60] sm:$0xff]
                %203 = vst [vmem:[%s189 + $0x30] sm:$0xff] %v202
                %v204 = vld [vmem:[%s188 + $0x70] sm:$0xff]
                %205 = vst [vmem:[%s189 + $0x38] sm:$0xff] %v204
                %v206 = vld [vmem:[%s188 + $0x80] sm:$0xff]
                %207 = vst [vmem:[%s189 + $0x40] sm:$0xff] %v206
                %v208 = vld [vmem:[%s188 + $0x90] sm:$0xff]
                %209 = vst [vmem:[%s189 + $0x48] sm:$0xff] %v208
                %v210 = vld [vmem:[%s188 + $0xa0] sm:$0xff]
                %211 = vst [vmem:[%s189 + $0x50] sm:$0xff] %v210
                %v212 = vld [vmem:[%s188 + $0xb0] sm:$0xff]
                %213 = vst [vmem:[%s189 + $0x58] sm:$0xff] %v212
                %v214 = vld [vmem:[%s188 + $0xc0] sm:$0xff]
                %215 = vst [vmem:[%s189 + $0x60] sm:$0xff] %v214
                %v216 = vld [vmem:[%s188 + $0xd0] sm:$0xff]
                %217 = vst [vmem:[%s189 + $0x68] sm:$0xff] %v216
                %v218 = vld [vmem:[%s188 + $0xe0] sm:$0xff]
                %219 = vst [vmem:[%s189 + $0x70] sm:$0xff] %v218
                %v220 = vld [vmem:[%s188 + $0xf0] sm:$0xff]
                %221 = vst [vmem:[%s189 + $0x78] sm:$0xff] %v220
                %v222 = vld [vmem:[%s188 + $0x100] sm:$0xff]
                %223 = vst [vmem:[%s189 + $0x80] sm:$0xff] %v222
                %v224 = vld [vmem:[%s188 + $0x110] sm:$0xff]
                %225 = vst [vmem:[%s189 + $0x88] sm:$0xff] %v224
                %v226 = vld [vmem:[%s188 + $0x120] sm:$0xff]
                %227 = vst [vmem:[%s189 + $0x90] sm:$0xff] %v226
                %v228 = vld [vmem:[%s188 + $0x130] sm:$0xff]
                %229 = vst [vmem:[%s189 + $0x98] sm:$0xff] %v228
                %v230 = vld [vmem:[%s188 + $0x140] sm:$0xff]
                %231 = vst [vmem:[%s189 + $0xa0] sm:$0xff] %v230
                %v232 = vld [vmem:[%s188 + $0x150] sm:$0xff]
                %233 = vst [vmem:[%s189 + $0xa8] sm:$0xff] %v232
                %v234 = vld [vmem:[%s188 + $0x160] sm:$0xff]
                %235 = vst [vmem:[%s189 + $0xb0] sm:$0xff] %v234
                %v236 = vld [vmem:[%s188 + $0x170] sm:$0xff]
                %237 = vst [vmem:[%s189 + $0xb8] sm:$0xff] %v236
                %v238 = vld [vmem:[%s188 + $0x180] sm:$0xff]
                %239 = vst [vmem:[%s189 + $0xc0] sm:$0xff] %v238
                %v240 = vld [vmem:[%s188 + $0x190] sm:$0xff]
                %241 = vst [vmem:[%s189 + $0xc8] sm:$0xff] %v240
                %v242 = vld [vmem:[%s188 + $0x1a0] sm:$0xff]
                %243 = vst [vmem:[%s189 + $0xd0] sm:$0xff] %v242
                %v244 = vld [vmem:[%s188 + $0x1b0] sm:$0xff]
                %245 = vst [vmem:[%s189 + $0xd8] sm:$0xff] %v244
                %v246 = vld [vmem:[%s188 + $0x1c0] sm:$0xff]
                %247 = vst [vmem:[%s189 + $0xe0] sm:$0xff] %v246
                %v248 = vld [vmem:[%s188 + $0x1d0] sm:$0xff]
                %249 = vst [vmem:[%s189 + $0xe8] sm:$0xff] %v248
                %v250 = vld [vmem:[%s188 + $0x1e0] sm:$0xff]
                %251 = vst [vmem:[%s189 + $0xf0] sm:$0xff] %v250
                %v252 = vld [vmem:[%s188 + $0x1f0] sm:$0xff]
                %253 = vst [vmem:[%s189 + $0xf8] sm:$0xff] %v252
                %v254 = vld [vmem:[%s188 + $0x200] sm:$0xff]
                %255 = vst [vmem:[%s189 + $0x100] sm:$0xff] %v254
                %v256 = vld [vmem:[%s188 + $0x210] sm:$0xff]
                %257 = vst [vmem:[%s189 + $0x108] sm:$0xff] %v256
                %v258 = vld [vmem:[%s188 + $0x220] sm:$0xff]
                %259 = vst [vmem:[%s189 + $0x110] sm:$0xff] %v258
                %v260 = vld [vmem:[%s188 + $0x230] sm:$0xff]
                %261 = vst [vmem:[%s189 + $0x118] sm:$0xff] %v260
                %v262 = vld [vmem:[%s188 + $0x240] sm:$0xff]
                %263 = vst [vmem:[%s189 + $0x120] sm:$0xff] %v262
                %v264 = vld [vmem:[%s188 + $0x250] sm:$0xff]
                %265 = vst [vmem:[%s189 + $0x128] sm:$0xff] %v264
                %v266 = vld [vmem:[%s188 + $0x260] sm:$0xff]
                %267 = vst [vmem:[%s189 + $0x130] sm:$0xff] %v266
                %v268 = vld [vmem:[%s188 + $0x270] sm:$0xff]
                %269 = vst [vmem:[%s189 + $0x138] sm:$0xff] %v268
                %v270 = vld [vmem:[%s188 + $0x280] sm:$0xff]
                %271 = vst [vmem:[%s189 + $0x140] sm:$0xff] %v270
                %v272 = vld [vmem:[%s188 + $0x290] sm:$0xff]
                %273 = vst [vmem:[%s189 + $0x148] sm:$0xff] %v272
                %v274 = vld [vmem:[%s188 + $0x2a0] sm:$0xff]
                %275 = vst [vmem:[%s189 + $0x150] sm:$0xff] %v274
                %v276 = vld [vmem:[%s188 + $0x2b0] sm:$0xff]
                %277 = vst [vmem:[%s189 + $0x158] sm:$0xff] %v276
                %v278 = vld [vmem:[%s188 + $0x2c0] sm:$0xff]
                %279 = vst [vmem:[%s189 + $0x160] sm:$0xff] %v278
                %v280 = vld [vmem:[%s188 + $0x2d0] sm:$0xff]
                %281 = vst [vmem:[%s189 + $0x168] sm:$0xff] %v280
                %v282 = vld [vmem:[%s188 + $0x2e0] sm:$0xff]
                %283 = vst [vmem:[%s189 + $0x170] sm:$0xff] %v282
                %v284 = vld [vmem:[%s188 + $0x2f0] sm:$0xff]
                %285 = vst [vmem:[%s189 + $0x178] sm:$0xff] %v284
                %v286 = vld [vmem:[%s188 + $0x300] sm:$0xff]
                %287 = vst [vmem:[%s189 + $0x180] sm:$0xff] %v286
                %v288 = vld [vmem:[%s188 + $0x310] sm:$0xff]
                %289 = vst [vmem:[%s189 + $0x188] sm:$0xff] %v288
                %v290 = vld [vmem:[%s188 + $0x320] sm:$0xff]
                %291 = vst [vmem:[%s189 + $0x190] sm:$0xff] %v290
                %v292 = vld [vmem:[%s188 + $0x330] sm:$0xff]
                %293 = vst [vmem:[%s189 + $0x198] sm:$0xff] %v292
                %v294 = vld [vmem:[%s188 + $0x340] sm:$0xff]
                %295 = vst [vmem:[%s189 + $0x1a0] sm:$0xff] %v294
                %v296 = vld [vmem:[%s188 + $0x350] sm:$0xff]
                %297 = vst [vmem:[%s189 + $0x1a8] sm:$0xff] %v296
                %v298 = vld [vmem:[%s188 + $0x360] sm:$0xff]
                %299 = vst [vmem:[%s189 + $0x1b0] sm:$0xff] %v298
                %v300 = vld [vmem:[%s188 + $0x370] sm:$0xff]
                %301 = vst [vmem:[%s189 + $0x1b8] sm:$0xff] %v300
                %v302 = vld [vmem:[%s188 + $0x380] sm:$0xff]
                %303 = vst [vmem:[%s189 + $0x1c0] sm:$0xff] %v302
                %v304 = vld [vmem:[%s188 + $0x390] sm:$0xff]
                %305 = vst [vmem:[%s189 + $0x1c8] sm:$0xff] %v304
                %v306 = vld [vmem:[%s188 + $0x3a0] sm:$0xff]
                %307 = vst [vmem:[%s189 + $0x1d0] sm:$0xff] %v306
                %v308 = vld [vmem:[%s188 + $0x3b0] sm:$0xff]
                %309 = vst [vmem:[%s189 + $0x1d8] sm:$0xff] %v308
                %v310 = vld [vmem:[%s188 + $0x3c0] sm:$0xff]
                %311 = vst [vmem:[%s189 + $0x1e0] sm:$0xff] %v310
                %v312 = vld [vmem:[%s188 + $0x3d0] sm:$0xff]
                %313 = vst [vmem:[%s189 + $0x1e8] sm:$0xff] %v312
                %v314 = vld [vmem:[%s188 + $0x3e0] sm:$0xff]
                %315 = vst [vmem:[%s189 + $0x1f0] sm:$0xff] %v314
                %v316 = vld [vmem:[%s188 + $0x3f0] sm:$0xff]
                %317 = vst [vmem:[%s189 + $0x1f8] sm:$0xff] %v316
                %v318 = vld [vmem:[%s188 + $0x400] sm:$0xff]
                %319 = vst [vmem:[%s189 + $0x200] sm:$0xff] %v318
                %v320 = vld [vmem:[%s188 + $0x410] sm:$0xff]
                %321 = vst [vmem:[%s189 + $0x208] sm:$0xff] %v320
                %v322 = vld [vmem:[%s188 + $0x420] sm:$0xff]
                %323 = vst [vmem:[%s189 + $0x210] sm:$0xff] %v322
                %v324 = vld [vmem:[%s188 + $0x430] sm:$0xff]
                %325 = vst [vmem:[%s189 + $0x218] sm:$0xff] %v324
                %v326 = vld [vmem:[%s188 + $0x440] sm:$0xff]
                %327 = vst [vmem:[%s189 + $0x220] sm:$0xff] %v326
                %v328 = vld [vmem:[%s188 + $0x450] sm:$0xff]
                %329 = vst [vmem:[%s189 + $0x228] sm:$0xff] %v328
                %v330 = vld [vmem:[%s188 + $0x460] sm:$0xff]
                %331 = vst [vmem:[%s189 + $0x230] sm:$0xff] %v330
                %v332 = vld [vmem:[%s188 + $0x470] sm:$0xff]
                %333 = vst [vmem:[%s189 + $0x238] sm:$0xff] %v332
              $region45: #{plane_decoder_forward.9} parent=39 // loop_footer
                %s187 = sadd.s32 1, %s183
              $region46: #{plane_decoder_forward.9} parent=39 // loop_footer_branch
                %182 = sbr.rel target = $region42
              $region47: #{plane_decoder_forward.9} parent=39 // loop_exit
                _
            $region40: #{plane_decoder_forward.9} parent=31 // pred_fallthru
              _
          $region32: #{plane_decoder_forward.9} parent=27 // pred_fallthru
            _
          %490 = vnop
        $region28: #{plane_decoder_forward.9} parent=23 // pred_fallthru
          _
      $region24: #{plane_decoder_forward.9} parent=5 // pred_fallthru
        _
      %p491 = scmp.le.s32.totalorder 1, %s9
      %p492 = scmp.lt.s32.totalorder %s9, 3
      %p493 = pnand %p491, %p492
      %p494 = pneg %p493
      // Predicated region
      $region63: #{plane_decoder_forward.9} parent=5 // pred_check
        _
      $region64: #{plane_decoder_forward.9} parent=5 // pred_check_branch
        %496 = sbr.rel (%p493) target = $region66
      $region65: #{plane_decoder_forward.9} parent=5 // pred_region
        %s497 = ssub.s32 %s9, 1
        %s498 = sand.u32 %s60, 1
        %s499 = sand.u32 %s60, 1
        %s500 = smul.addr %s499, 576
        %s501 = scalar_lea.vmem [#allocation2], %s500
        // Predicated region
        $region67: #{plane_decoder_forward.9} parent=65 // pred_check
          %p502 = pneg %p73
        $region68: #{plane_decoder_forward.9} parent=65 // pred_check_branch
          %504 = sbr.rel (%p502) target = $region70
        $region69: #{plane_decoder_forward.9} parent=65 // pred_region
          _
        $region70: #{plane_decoder_forward.9} parent=65 // pred_fallthru
          _
        %s505 = smul.u32 3, %s18
        %p506 = scmp.lt.s32.totalorder %s505, 2
        %s507 = scalar_select %p506, %s505, 2
        %s508 = smul.addr %s507, 5
        %s509 = smul.addr %s508, 4
        %s510 = scalar_lea.vmem %s0, %s509
        %p511 = pneg %p47
        %p512 = pneg %p44
        %s513 = sand.u32 %s60, 1
        %s514 = sand.u32 %s60, 1
        %s515 = smul.addr %s514, 576
        %s516 = scalar_lea.vmem [#allocation2], %s515
        %p517 = pneg %p73
        %p518 = pneg %p70
        %s519 = smul.u32 3, %s18
        %p520 = scmp.lt.s32.totalorder %s519, 2
        %s521 = scalar_select %p520, %s519, 2
        %s522 = smul.addr %s521, 8
        %s523 = scalar_lea.vmem %s2, %s522
        %p524 = pneg %p99
        %p525 = pneg %p96
        %p526 = pneg %p127
        %p527 = pneg %p124
        %s528 = sand.u32 %s114, 1
        %s529 = sand.u32 %s114, 1
        %s530 = smul.addr %s529, 48
        %s531 = scalar_lea.vmem [#allocation3], %s530
        %s532 = smul.u32 3, %s18
        %p533 = scmp.lt.s32.totalorder %s532, 2
        %s534 = scalar_select %p533, %s532, 2
        %s535 = smul.addr %s534, 5
        %s536 = smul.addr %s535, 4
        %s537 = scalar_lea.vmem %s0, %s536
        %s538 = smul.u32 3, %s18
        %s539 = smul.u32 2, %s19
        %s540 = smul.u32 3, %s18
        %p541 = scmp.lt.s32.totalorder %s540, 2
        %s542 = scalar_select %p541, %s540, 2
        %s543 = smul.addr %s542, 8
        %s544 = scalar_lea.vmem %s2, %s543
        %s545 = smul.u32 3, %s18
        %s546 = smul.u32 3, %s18
        %s547 = smul.u32 2, %s19
        %v549 = vld [vmem:[%s537] sm:$0xff]
        %v550 = vld [vmem:[%s537 + $0x8] sm:$0xff]
        %v551 = vld [vmem:[%s537 + $0x10] sm:$0xf]
        %v552 = vld [vmem:[%s537 + $0x14] sm:$0xff]
        %v553 = vld [vmem:[%s537 + $0x1c] sm:$0xff]
        %v554 = vld [vmem:[%s537 + $0x24] sm:$0xf]
        %v555 = vld [vmem:[%s537 + $0x28] sm:$0xff]
        %v556 = vld [vmem:[%s537 + $0x30] sm:$0xff]
        %v557 = vld [vmem:[%s537 + $0x38] sm:$0xf]
        %v558 = vld [vmem:[%s501] sm:$0xff]
        %v559 = vld [vmem:[%s501 + $0x8] sm:$0xff]
        %v560 = vld [vmem:[%s501 + $0x10] sm:$0xff]
        %v561 = vld [vmem:[%s501 + $0x18] sm:$0xff]
        %v562 = vld [vmem:[%s501 + $0x20] sm:$0xff]
        %v563 = vld [vmem:[%s501 + $0x28] sm:$0xff]
        %v564 = vld [vmem:[%s501 + $0x30] sm:$0xff]
        %v565 = vld [vmem:[%s501 + $0x38] sm:$0xff]
        %v566 = vld [vmem:[%s501 + $0x40] sm:$0xff]
        %v567 = vld [vmem:[%s501 + $0x48] sm:$0xff]
        %v568 = vld [vmem:[%s501 + $0x50] sm:$0xff]
        %v569 = vld [vmem:[%s501 + $0x58] sm:$0xff]
        %v570 = vld [vmem:[%s501 + $0x60] sm:$0xff]
        %v571 = vld [vmem:[%s501 + $0x68] sm:$0xff]
        %v572 = vld [vmem:[%s501 + $0x70] sm:$0xff]
        %v573 = vld [vmem:[%s501 + $0x78] sm:$0xff]
        %v574 = vld [vmem:[%s501 + $0x80] sm:$0xff]
        %v575 = vld [vmem:[%s501 + $0x88] sm:$0xff]
        %v576 = vld [vmem:[%s501 + $0x90] sm:$0xff]
        %v577 = vld [vmem:[%s501 + $0x98] sm:$0xff]
        %v578 = vld [vmem:[%s501 + $0xa0] sm:$0xff]
        %v579 = vld [vmem:[%s501 + $0xa8] sm:$0xff]
        %v580 = vld [vmem:[%s501 + $0xb0] sm:$0xff]
        %v581 = vld [vmem:[%s501 + $0xb8] sm:$0xff]
        %v582 = vld [vmem:[%s501 + $0xc0] sm:$0xff]
        %v583 = vld [vmem:[%s501 + $0xc8] sm:$0xff]
        %v584 = vld [vmem:[%s501 + $0xd0] sm:$0xff]
        %v585 = vld [vmem:[%s501 + $0xd8] sm:$0xff]
        %v586 = vld [vmem:[%s501 + $0xe0] sm:$0xff]
        %v587 = vld [vmem:[%s501 + $0xe8] sm:$0xff]
        %v588 = vld [vmem:[%s501 + $0xf0] sm:$0xff]
        %v589 = vld [vmem:[%s501 + $0xf8] sm:$0xff]
        %v590 = vld [vmem:[%s501 + $0x100] sm:$0xff]
        %v591 = vld [vmem:[%s501 + $0x108] sm:$0xff]
        %v592 = vld [vmem:[%s501 + $0x110] sm:$0xff]
        %v593 = vld [vmem:[%s501 + $0x118] sm:$0xff]
        %v594 = vld [vmem:[%s501 + $0x120] sm:$0xff]
        %v595 = vld [vmem:[%s501 + $0x128] sm:$0xff]
        %v596 = vld [vmem:[%s501 + $0x130] sm:$0xff]
        %v597 = vld [vmem:[%s501 + $0x138] sm:$0xff]
        %v598 = vld [vmem:[%s501 + $0x140] sm:$0xff]
        %v599 = vld [vmem:[%s501 + $0x148] sm:$0xff]
        %v600 = vld [vmem:[%s501 + $0x150] sm:$0xff]
        %v601 = vld [vmem:[%s501 + $0x158] sm:$0xff]
        %v602 = vld [vmem:[%s501 + $0x160] sm:$0xff]
        %v603 = vld [vmem:[%s501 + $0x168] sm:$0xff]
        %v604 = vld [vmem:[%s501 + $0x170] sm:$0xff]
        %v605 = vld [vmem:[%s501 + $0x178] sm:$0xff]
        %v606 = vld [vmem:[%s501 + $0x180] sm:$0xff]
        %v607 = vld [vmem:[%s501 + $0x188] sm:$0xff]
        %v608 = vld [vmem:[%s501 + $0x190] sm:$0xff]
        %v609 = vld [vmem:[%s501 + $0x198] sm:$0xff]
        %v610 = vld [vmem:[%s501 + $0x1a0] sm:$0xff]
        %v611 = vld [vmem:[%s501 + $0x1a8] sm:$0xff]
        %v612 = vld [vmem:[%s501 + $0x1b0] sm:$0xff]
        %v613 = vld [vmem:[%s501 + $0x1b8] sm:$0xff]
        %v614 = vld [vmem:[%s501 + $0x1c0] sm:$0xff]
        %v615 = vld [vmem:[%s501 + $0x1c8] sm:$0xff]
        %v616 = vld [vmem:[%s501 + $0x1d0] sm:$0xff]
        %v617 = vld [vmem:[%s501 + $0x1d8] sm:$0xff]
        %v618 = vld [vmem:[%s501 + $0x1e0] sm:$0xff]
        %v619 = vld [vmem:[%s501 + $0x1e8] sm:$0xff]
        %v620 = vld [vmem:[%s501 + $0x1f0] sm:$0xff]
        %v621 = vld [vmem:[%s501 + $0x1f8] sm:$0xff]
        %v622 = vld [vmem:[%s501 + $0x200] sm:$0xff]
        %v623 = vld [vmem:[%s501 + $0x208] sm:$0xff]
        %v624 = vld [vmem:[%s501 + $0x210] sm:$0xff]
        %v625 = vld [vmem:[%s501 + $0x218] sm:$0xff]
        %v626 = vld [vmem:[%s501 + $0x220] sm:$0xff]
        %v627 = vld [vmem:[%s501 + $0x228] sm:$0xff]
        %v628 = vld [vmem:[%s501 + $0x230] sm:$0xff]
        %v629 = vld [vmem:[%s501 + $0x238] sm:$0xff]
        %v630 = vld [vmem:[%s544] sm:$0xff]
        %v631 = vld [vmem:[%s544 + $0x8] sm:$0xff]
        %v632 = vld [vmem:[%s544 + $0x10] sm:$0xff]
        %634 = vset.pattern.permute.xlu0 0
        %635 = vperm.xlu0 %634, %v630
        %v636 = vpop.permute.xlu0 %635
        %639 = vset.pattern.permute.xlu0 0
        %640 = vperm.xlu0 %639, %v631
        %v641 = vpop.permute.xlu0 %640
        %644 = vset.pattern.permute.xlu0 0
        %645 = vperm.xlu0 %644, %v632
        %v646 = vpop.permute.xlu0 %645
        %v657 = vunpack.c.l.b16 %v549
        %v658 = vunpack.c.h.b16 %v549
        %v659 = vunpack.c.l.b16 %v550
        %v660 = vunpack.c.h.b16 %v550
        %v661 = vunpack.c.l.b16 %v551
        %v662 = vunpack.c.l.b16 %v552
        %v663 = vunpack.c.h.b16 %v552
        %v664 = vunpack.c.l.b16 %v553
        %v665 = vunpack.c.h.b16 %v553
        %v666 = vunpack.c.l.b16 %v554
        %v667 = vunpack.c.l.b16 %v555
        %v668 = vunpack.c.h.b16 %v555
        %v669 = vunpack.c.l.b16 %v556
        %v670 = vunpack.c.h.b16 %v556
        %v671 = vunpack.c.l.b16 %v557
        %v672 = vpack.c.b16 %v662, %v657
        %v673 = vpack.c.b16 %v663, %v658
        %v674 = vpack.c.b16 %v664, %v659
        %v675 = vpack.c.b16 %v665, %v660
        %v676 = vpack.c.b16 %v666, %v661
        %v677 = vpack.c.b16 %v667, %v667
        %v678 = vpack.c.b16 %v668, %v668
        %v679 = vpack.c.b16 %v669, %v669
        %v680 = vpack.c.b16 %v670, %v670
        %v681 = vpack.c.b16 %v671, %v671
        %v762 = vunpack.c.l.b16 %v558
        %v763 = vunpack.c.h.b16 %v558
        %v764 = vunpack.c.l.b16 %v559
        %v765 = vunpack.c.h.b16 %v559
        %v766 = vunpack.c.l.b16 %v560
        %v767 = vunpack.c.h.b16 %v560
        %v768 = vunpack.c.l.b16 %v561
        %v769 = vunpack.c.h.b16 %v561
        %v770 = vunpack.c.l.b16 %v562
        %v771 = vunpack.c.h.b16 %v562
        %v772 = vunpack.c.l.b16 %v563
        %v773 = vunpack.c.h.b16 %v563
        %v774 = vunpack.c.l.b16 %v564
        %v775 = vunpack.c.h.b16 %v564
        %v776 = vunpack.c.l.b16 %v565
        %v777 = vunpack.c.h.b16 %v565
        %v778 = vunpack.c.l.b16 %v566
        %v779 = vunpack.c.h.b16 %v566
        %v780 = vunpack.c.l.b16 %v567
        %v781 = vunpack.c.h.b16 %v567
        %v782 = vunpack.c.l.b16 %v568
        %v783 = vunpack.c.h.b16 %v568
        %v784 = vunpack.c.l.b16 %v569
        %v785 = vunpack.c.h.b16 %v569
        %v786 = vunpack.c.l.b16 %v570
        %v787 = vunpack.c.h.b16 %v570
        %v788 = vunpack.c.l.b16 %v571
        %v789 = vunpack.c.h.b16 %v571
        %v790 = vunpack.c.l.b16 %v572
        %v791 = vunpack.c.h.b16 %v572
        %v792 = vunpack.c.l.b16 %v573
        %v793 = vunpack.c.h.b16 %v573
        %v794 = vunpack.c.l.b16 %v574
        %v795 = vunpack.c.h.b16 %v574
        %v796 = vunpack.c.l.b16 %v575
        %v797 = vunpack.c.h.b16 %v575
        %v798 = vunpack.c.l.b16 %v576
        %v799 = vunpack.c.h.b16 %v576
        %v800 = vunpack.c.l.b16 %v577
        %v801 = vunpack.c.h.b16 %v577
        %v802 = vunpack.c.l.b16 %v578
        %v803 = vunpack.c.h.b16 %v578
        %v804 = vunpack.c.l.b16 %v579
        %v805 = vunpack.c.h.b16 %v579
        %v806 = vunpack.c.l.b16 %v580
        %v807 = vunpack.c.h.b16 %v580
        %v808 = vunpack.c.l.b16 %v581
        %v809 = vunpack.c.h.b16 %v581
        %v810 = vunpack.c.l.b16 %v582
        %v811 = vunpack.c.h.b16 %v582
        %v812 = vunpack.c.l.b16 %v583
        %v813 = vunpack.c.h.b16 %v583
        %v814 = vunpack.c.l.b16 %v584
        %v815 = vunpack.c.h.b16 %v584
        %v816 = vunpack.c.l.b16 %v585
        %v817 = vunpack.c.h.b16 %v585
        %v818 = vunpack.c.l.b16 %v586
        %v819 = vunpack.c.h.b16 %v586
        %v820 = vunpack.c.l.b16 %v587
        %v821 = vunpack.c.h.b16 %v587
        %v822 = vunpack.c.l.b16 %v588
        %v823 = vunpack.c.h.b16 %v588
        %v824 = vunpack.c.l.b16 %v589
        %v825 = vunpack.c.h.b16 %v589
        %v826 = vunpack.c.l.b16 %v590
        %v827 = vunpack.c.h.b16 %v590
        %v828 = vunpack.c.l.b16 %v591
        %v829 = vunpack.c.h.b16 %v591
        %v830 = vunpack.c.l.b16 %v592
        %v831 = vunpack.c.h.b16 %v592
        %v832 = vunpack.c.l.b16 %v593
        %v833 = vunpack.c.h.b16 %v593
        %v834 = vunpack.c.l.b16 %v594
        %v835 = vunpack.c.h.b16 %v594
        %v836 = vunpack.c.l.b16 %v595
        %v837 = vunpack.c.h.b16 %v595
        %v838 = vunpack.c.l.b16 %v596
        %v839 = vunpack.c.h.b16 %v596
        %v840 = vunpack.c.l.b16 %v597
        %v841 = vunpack.c.h.b16 %v597
        %v842 = vunpack.c.l.b16 %v598
        %v843 = vunpack.c.h.b16 %v598
        %v844 = vunpack.c.l.b16 %v599
        %v845 = vunpack.c.h.b16 %v599
        %v846 = vunpack.c.l.b16 %v600
        %v847 = vunpack.c.h.b16 %v600
        %v848 = vunpack.c.l.b16 %v601
        %v849 = vunpack.c.h.b16 %v601
        %v850 = vunpack.c.l.b16 %v602
        %v851 = vunpack.c.h.b16 %v602
        %v852 = vunpack.c.l.b16 %v603
        %v853 = vunpack.c.h.b16 %v603
        %v854 = vunpack.c.l.b16 %v604
        %v855 = vunpack.c.h.b16 %v604
        %v856 = vunpack.c.l.b16 %v605
        %v857 = vunpack.c.h.b16 %v605
        %v858 = vunpack.c.l.b16 %v606
        %v859 = vunpack.c.h.b16 %v606
        %v860 = vunpack.c.l.b16 %v607
        %v861 = vunpack.c.h.b16 %v607
        %v862 = vunpack.c.l.b16 %v608
        %v863 = vunpack.c.h.b16 %v608
        %v864 = vunpack.c.l.b16 %v609
        %v865 = vunpack.c.h.b16 %v609
        %v866 = vunpack.c.l.b16 %v610
        %v867 = vunpack.c.h.b16 %v610
        %v868 = vunpack.c.l.b16 %v611
        %v869 = vunpack.c.h.b16 %v611
        %v870 = vunpack.c.l.b16 %v612
        %v871 = vunpack.c.h.b16 %v612
        %v872 = vunpack.c.l.b16 %v613
        %v873 = vunpack.c.h.b16 %v613
        %v874 = vunpack.c.l.b16 %v614
        %v875 = vunpack.c.h.b16 %v614
        %v876 = vunpack.c.l.b16 %v615
        %v877 = vunpack.c.h.b16 %v615
        %v878 = vunpack.c.l.b16 %v616
        %v879 = vunpack.c.h.b16 %v616
        %v880 = vunpack.c.l.b16 %v617
        %v881 = vunpack.c.h.b16 %v617
        %v882 = vunpack.c.l.b16 %v618
        %v883 = vunpack.c.h.b16 %v618
        %v884 = vunpack.c.l.b16 %v619
        %v885 = vunpack.c.h.b16 %v619
        %v886 = vunpack.c.l.b16 %v620
        %v887 = vunpack.c.h.b16 %v620
        %v888 = vunpack.c.l.b16 %v621
        %v889 = vunpack.c.h.b16 %v621
        %v890 = vunpack.c.l.b16 %v622
        %v891 = vunpack.c.h.b16 %v622
        %v892 = vunpack.c.l.b16 %v623
        %v893 = vunpack.c.h.b16 %v623
        %v894 = vunpack.c.l.b16 %v624
        %v895 = vunpack.c.h.b16 %v624
        %v896 = vunpack.c.l.b16 %v625
        %v897 = vunpack.c.h.b16 %v625
        %v898 = vunpack.c.l.b16 %v626
        %v899 = vunpack.c.h.b16 %v626
        %v900 = vunpack.c.l.b16 %v627
        %v901 = vunpack.c.h.b16 %v627
        %v902 = vunpack.c.l.b16 %v628
        %v903 = vunpack.c.h.b16 %v628
        %v904 = vunpack.c.l.b16 %v629
        %v905 = vunpack.c.h.b16 %v629
        %v906 = vpack.c.b16 %v764, %v762
        %v907 = vpack.c.b16 %v765, %v763
        %v908 = vpack.c.b16 %v768, %v766
        %v909 = vpack.c.b16 %v769, %v767
        %v910 = vpack.c.b16 %v772, %v770
        %v911 = vpack.c.b16 %v773, %v771
        %v912 = vpack.c.b16 %v776, %v774
        %v913 = vpack.c.b16 %v777, %v775
        %v914 = vpack.c.b16 %v780, %v778
        %v915 = vpack.c.b16 %v781, %v779
        %v916 = vpack.c.b16 %v784, %v782
        %v917 = vpack.c.b16 %v785, %v783
        %v918 = vpack.c.b16 %v788, %v786
        %v919 = vpack.c.b16 %v789, %v787
        %v920 = vpack.c.b16 %v792, %v790
        %v921 = vpack.c.b16 %v793, %v791
        %v922 = vpack.c.b16 %v796, %v794
        %v923 = vpack.c.b16 %v797, %v795
        %v924 = vpack.c.b16 %v800, %v798
        %v925 = vpack.c.b16 %v801, %v799
        %v926 = vpack.c.b16 %v804, %v802
        %v927 = vpack.c.b16 %v805, %v803
        %v928 = vpack.c.b16 %v808, %v806
        %v929 = vpack.c.b16 %v809, %v807
        %v930 = vpack.c.b16 %v812, %v810
        %v931 = vpack.c.b16 %v813, %v811
        %v932 = vpack.c.b16 %v816, %v814
        %v933 = vpack.c.b16 %v817, %v815
        %v934 = vpack.c.b16 %v820, %v818
        %v935 = vpack.c.b16 %v821, %v819
        %v936 = vpack.c.b16 %v824, %v822
        %v937 = vpack.c.b16 %v825, %v823
        %v938 = vpack.c.b16 %v828, %v826
        %v939 = vpack.c.b16 %v829, %v827
        %v940 = vpack.c.b16 %v832, %v830
        %v941 = vpack.c.b16 %v833, %v831
        %v942 = vpack.c.b16 %v836, %v834
        %v943 = vpack.c.b16 %v837, %v835
        %v944 = vpack.c.b16 %v840, %v838
        %v945 = vpack.c.b16 %v841, %v839
        %v946 = vpack.c.b16 %v844, %v842
        %v947 = vpack.c.b16 %v845, %v843
        %v948 = vpack.c.b16 %v848, %v846
        %v949 = vpack.c.b16 %v849, %v847
        %v950 = vpack.c.b16 %v852, %v850
        %v951 = vpack.c.b16 %v853, %v851
        %v952 = vpack.c.b16 %v856, %v854
        %v953 = vpack.c.b16 %v857, %v855
        %v954 = vpack.c.b16 %v860, %v858
        %v955 = vpack.c.b16 %v861, %v859
        %v956 = vpack.c.b16 %v864, %v862
        %v957 = vpack.c.b16 %v865, %v863
        %v958 = vpack.c.b16 %v868, %v866
        %v959 = vpack.c.b16 %v869, %v867
        %v960 = vpack.c.b16 %v872, %v870
        %v961 = vpack.c.b16 %v873, %v871
        %v962 = vpack.c.b16 %v876, %v874
        %v963 = vpack.c.b16 %v877, %v875
        %v964 = vpack.c.b16 %v880, %v878
        %v965 = vpack.c.b16 %v881, %v879
        %v966 = vpack.c.b16 %v884, %v882
        %v967 = vpack.c.b16 %v885, %v883
        %v968 = vpack.c.b16 %v888, %v886
        %v969 = vpack.c.b16 %v889, %v887
        %v970 = vpack.c.b16 %v892, %v890
        %v971 = vpack.c.b16 %v893, %v891
        %v972 = vpack.c.b16 %v896, %v894
        %v973 = vpack.c.b16 %v897, %v895
        %v974 = vpack.c.b16 %v900, %v898
        %v975 = vpack.c.b16 %v901, %v899
        %v976 = vpack.c.b16 %v904, %v902
        %v977 = vpack.c.b16 %v905, %v903
        %vm1050 = vcmask 523264
        %v1052 = vsel %vm1050, %v676, 0
        %v1055 = vsel %vm1050, %v681, 0
        %1057 = vmatprep.subr.bf16.mxu0 %v907
        %1058 = vmatpush1.bf16.msra.mxu0 %v906
        %1059 = vmatprep.subr.bf16.mxu0 %v909
        %1060 = vmatpush1.bf16.msra.mxu0 %v908
        %1061 = vmatprep.subr.bf16.mxu0 %v911
        %1062 = vmatpush1.bf16.msra.mxu0 %v910
        %1063 = vmatprep.subr.bf16.mxu0 %v913
        %1064 = vmatpush1.bf16.msra.mxu0 %v912
        %1065 = vmatprep.subr.bf16.mxu0 %v915
        %1066 = vmatpush1.bf16.msra.mxu0 %v914
        %1067 = vmatprep.subr.bf16.mxu0 %v917
        %1068 = vmatpush1.bf16.msra.mxu0 %v916
        %1069 = vmatprep.subr.bf16.mxu0 %v919
        %1070 = vmatpush1.bf16.msra.mxu0 %v918
        %1071 = vmatprep.subr.bf16.mxu0 %v921
        %1072 = vmatpush1.bf16.msra.mxu0 %v920
        %1073 = vmatprep.subr.bf16.mxu0 %v923
        %1074 = vmatpush1.bf16.msra.mxu0 %v922
        %1075 = vmatprep.subr.bf16.mxu0 %v925
        %1076 = vmatpush1.bf16.msra.mxu0 %v924
        %1077 = vmatprep.subr.bf16.mxu0 %v927
        %1078 = vmatpush1.bf16.msra.mxu0 %v926
        %1079 = vmatprep.subr.bf16.mxu0 %v929
        %1080 = vmatpush1.bf16.msra.mxu0 %v928
        %1081 = vmatprep.subr.bf16.mxu0 %v931
        %1082 = vmatpush1.bf16.msra.mxu0 %v930
        %1083 = vmatprep.subr.bf16.mxu0 %v933
        %1084 = vmatpush1.bf16.msra.mxu0 %v932
        %1085 = vmatprep.subr.bf16.mxu0 %v935
        %1086 = vmatpush1.bf16.msra.mxu0 %v934
        %1087 = vmatprep.subr.bf16.mxu0 %v937
        %1088 = vmatpush1.bf16.msra.mxu0 %v936
        %1089 = vmatprep.mubr.bf16.mxu0 %v673
        %1090 = vmatmul.mubr.bf16.gmra.mrb[0].mxu0 %v672
        %v1091 = vpop.f32.mrb[0].mxu0
        %v1092 = vadd.f32 %v636, %v1091
        %v1093 = vpop.f32.mrb[0].mxu0
        %v1094 = vadd.f32 %v636, %v1093
        %v1095 = vpop.f32.mrb[0].mxu0
        %v1096 = vadd.f32 %v641, %v1095
        %v1097 = vpop.f32.mrb[0].mxu0
        %v1098 = vadd.f32 %v641, %v1097
        %1099 = vmatprep.mubr.bf16.mxu0 %v678
        %1100 = vmatmul.mubr.bf16.gmra.mrb[0].mxu0 %v677
        %v1101 = vpop.f32.mrb[0].mxu0
        %v1102 = vadd.f32 %v646, %v1101
        %v1103 = vpop.f32.mrb[0].mxu0
        %v1104 = vadd.f32 %v646, %v1103
        %v1105 = vpop.f32.mrb[0].mxu0
        %v1106 = vpop.f32.mrb[0].mxu0
        %1107 = vdwg.mxu0
        %1108 = vmatprep.subr.bf16.mxu0 %v939
        %1109 = vmatpush1.bf16.msra.mxu0 %v938
        %1110 = vmatprep.subr.bf16.mxu0 %v941
        %1111 = vmatpush1.bf16.msra.mxu0 %v940
        %1112 = vmatprep.subr.bf16.mxu0 %v943
        %1113 = vmatpush1.bf16.msra.mxu0 %v942
        %1114 = vmatprep.subr.bf16.mxu0 %v945
        %1115 = vmatpush1.bf16.msra.mxu0 %v944
        %1116 = vmatprep.subr.bf16.mxu0 %v947
        %1117 = vmatpush1.bf16.msra.mxu0 %v946
        %1118 = vmatprep.subr.bf16.mxu0 %v949
        %1119 = vmatpush1.bf16.msra.mxu0 %v948
        %1120 = vmatprep.subr.bf16.mxu0 %v951
        %1121 = vmatpush1.bf16.msra.mxu0 %v950
        %1122 = vmatprep.subr.bf16.mxu0 %v953
        %1123 = vmatpush1.bf16.msra.mxu0 %v952
        %1124 = vmatprep.subr.bf16.mxu0 %v955
        %1125 = vmatpush1.bf16.msra.mxu0 %v954
        %1126 = vmatprep.subr.bf16.mxu0 %v957
        %1127 = vmatpush1.bf16.msra.mxu0 %v956
        %1128 = vmatprep.subr.bf16.mxu0 %v959
        %1129 = vmatpush1.bf16.msra.mxu0 %v958
        %1130 = vmatprep.subr.bf16.mxu0 %v961
        %1131 = vmatpush1.bf16.msra.mxu0 %v960
        %1132 = vmatprep.subr.bf16.mxu0 %v963
        %1133 = vmatpush1.bf16.msra.mxu0 %v962
        %1134 = vmatprep.subr.bf16.mxu0 %v965
        %1135 = vmatpush1.bf16.msra.mxu0 %v964
        %1136 = vmatprep.subr.bf16.mxu0 %v967
        %1137 = vmatpush1.bf16.msra.mxu0 %v966
        %1138 = vmatprep.subr.bf16.mxu0 %v969
        %1139 = vmatpush1.bf16.msra.mxu0 %v968
        %1140 = vmatprep.mubr.bf16.mxu0 %v675
        %1141 = vmatmul.mubr.bf16.gmra.mrb[0].mxu0 %v674
        %v1142 = vpop.f32.mrb[0].mxu0
        %v1143 = vadd.f32 %v1092, %v1142
        %v1144 = vpop.f32.mrb[0].mxu0
        %v1145 = vadd.f32 %v1094, %v1144
        %v1146 = vpop.f32.mrb[0].mxu0
        %v1147 = vadd.f32 %v1096, %v1146
        %v1148 = vpop.f32.mrb[0].mxu0
        %v1149 = vadd.f32 %v1098, %v1148
        %1150 = vmatprep.mubr.bf16.mxu0 %v680
        %1151 = vmatmul.mubr.bf16.gmra.mrb[0].mxu0 %v679
        %v1152 = vpop.f32.mrb[0].mxu0
        %v1153 = vadd.f32 %v1102, %v1152
        %v1154 = vpop.f32.mrb[0].mxu0
        %v1155 = vadd.f32 %v1104, %v1154
        %v1156 = vpop.f32.mrb[0].mxu0
        %v1157 = vpop.f32.mrb[0].mxu0
        %1158 = vdwg.mxu0
        %1159 = vmatprep.subr.bf16.mxu0 %v971
        %1160 = vmatpush1.bf16.msra.mxu0 %v970
        %1161 = vmatprep.subr.bf16.mxu0 %v973
        %1162 = vmatpush1.bf16.msra.mxu0 %v972
        %1163 = vmatprep.subr.bf16.mxu0 %v975
        %1164 = vmatpush1.bf16.msra.mxu0 %v974
        %1165 = vmatprep.subr.bf16.mxu0 %v977
        %1166 = vmatpush1.bf16.msra.mxu0 %v976
        %1167 = vmatprep.subr.bf16.mxu0 0
        %1168 = vmatpush1.bf16.msra.mxu0 0
        %1169 = vmatprep.subr.bf16.mxu0 0
        %1170 = vmatpush1.bf16.msra.mxu0 0
        %1171 = vmatprep.subr.bf16.mxu0 0
        %1172 = vmatpush1.bf16.msra.mxu0 0
        %1173 = vmatprep.subr.bf16.mxu0 0
        %1174 = vmatpush1.bf16.msra.mxu0 0
        %1175 = vmatprep.subr.bf16.mxu0 0
        %1176 = vmatpush1.bf16.msra.mxu0 0
        %1177 = vmatprep.subr.bf16.mxu0 0
        %1178 = vmatpush1.bf16.msra.mxu0 0
        %1179 = vmatprep.subr.bf16.mxu0 0
        %1180 = vmatpush1.bf16.msra.mxu0 0
        %1181 = vmatprep.subr.bf16.mxu0 0
        %1182 = vmatpush1.bf16.msra.mxu0 0
        %1183 = vmatprep.subr.bf16.mxu0 0
        %1184 = vmatpush1.bf16.msra.mxu0 0
        %1185 = vmatprep.subr.bf16.mxu0 0
        %1186 = vmatpush1.bf16.msra.mxu0 0
        %1187 = vmatprep.subr.bf16.mxu0 0
        %1188 = vmatpush1.bf16.msra.mxu0 0
        %1189 = vmatprep.subr.bf16.mxu0 0
        %1190 = vmatpush1.bf16.msra.mxu0 0
        %1191 = vmatprep.mubr.bf16.mxu0 0
        %1192 = vmatmul.mubr.bf16.gmra.mrb[0].mxu0 %v1052
        %v1193 = vpop.f32.mrb[0].mxu0
        %v1194 = vadd.f32 %v1143, %v1193
        %v1195 = vpop.f32.mrb[0].mxu0
        %v1196 = vadd.f32 %v1145, %v1195
        %v1197 = vpop.f32.mrb[0].mxu0
        %v1198 = vadd.f32 %v1147, %v1197
        %v1199 = vpop.f32.mrb[0].mxu0
        %v1200 = vadd.f32 %v1149, %v1199
        %1201 = vmatprep.mubr.bf16.mxu0 0
        %1202 = vmatmul.mubr.bf16.gmra.mrb[0].mxu0 %v1055
        %v1203 = vpop.f32.mrb[0].mxu0
        %v1204 = vadd.f32 %v1153, %v1203
        %v1205 = vpop.f32.mrb[0].mxu0
        %v1206 = vadd.f32 %v1155, %v1205
        %v1207 = vpop.f32.mrb[0].mxu0
        %v1208 = vpop.f32.mrb[0].mxu0
        %1209 = vdwg.mxu0
        %1210 = vst [vmem:[%s531] sm:$0xff] %v1194
        %1211 = vst [vmem:[%s531 + $0x8] sm:$0xff] %v1196
        %1212 = vst [vmem:[%s531 + $0x10] sm:$0xff] %v1198
        %1213 = vst [vmem:[%s531 + $0x18] sm:$0xff] %v1200
        %1214 = vst [vmem:[%s531 + $0x20] sm:$0xff] %v1204
        %1215 = vst [vmem:[%s531 + $0x28] sm:$0xff] %v1206
        %s1216 = sand.u32 %s114, 1
        %s1217 = sand.u32 %s114, 1
        %s1218 = smul.addr %s1217, 48
        %s1219 = scalar_lea.vmem [#allocation3], %s1218
        // Predicated region
        $region71: #{plane_decoder_forward.9} parent=65 // pred_check
          %p1220 = pneg %p124
        $region72: #{plane_decoder_forward.9} parent=65 // pred_check_branch
          %1222 = sbr.rel (%p1220) target = $region74
        $region73: #{plane_decoder_forward.9} parent=65 // pred_region
          %s1223 = smul.u32 3, %s18
          %s1224 = smul.u32 2, %s19
          %s1225 = smul.addr %s1223, 4
          %s1226 = sadd.s32 %s1224, %s1225
          %s1227 = smul.addr %s1226, 8
          %s1228 = scalar_lea.vmem %s3, %s1227
          // Predicated region
          $region75: #{plane_decoder_forward.9} parent=73 // pred_check
            _
          $region76: #{plane_decoder_forward.9} parent=73 // pred_check_branch
            %1230 = sbr.rel (0) target = $region78
          $region77: #{plane_decoder_forward.9} parent=73 // pred_region
            // Predicated region
            $region79: #{plane_decoder_forward.9} parent=77 // pred_check
              _
            $region80: #{plane_decoder_forward.9} parent=77 // pred_check_branch
              %1232 = sbr.rel (0) target = $region82
            $region81: #{plane_decoder_forward.9} parent=77 // pred_region
              loop: start=0, step=1, limit=1
              $region83: #{plane_decoder_forward.9} parent=81 // loop_pre_header
                _
              $region84: #{plane_decoder_forward.9} parent=81 // loop_header
                %s1234 = sphi 0, %s1238
                %p1235 = scmp.ge.s32.totalorder %s1234, 1
                %s1239 = sphi %s1219, %s1219
                %s1240 = sphi %s1228, %s1228
              $region85: #{plane_decoder_forward.9} parent=81 // loop_header_branch
                %1237 = sbr.rel (%p1235) target = $region89
              $region86: #{plane_decoder_forward.9} parent=81 // loop_body
                %v1241 = vld [vmem:[%s1239] sm:$0xff]
                %1242 = vst [vmem:[%s1240] sm:$0xff] %v1241
                %v1243 = vld [vmem:[%s1239 + $0x8] sm:$0xff]
                %1244 = vst [vmem:[%s1240 + $0x8] sm:$0xff] %v1243
                %v1245 = vld [vmem:[%s1239 + $0x10] sm:$0xff]
                %1246 = vst [vmem:[%s1240 + $0x20] sm:$0xff] %v1245
                %v1247 = vld [vmem:[%s1239 + $0x18] sm:$0xff]
                %1248 = vst [vmem:[%s1240 + $0x28] sm:$0xff] %v1247
                %v1249 = vld [vmem:[%s1239 + $0x20] sm:$0xff]
                %1250 = vst [vmem:[%s1240 + $0x40] sm:$0xff] %v1249
                %v1251 = vld [vmem:[%s1239 + $0x28] sm:$0xff]
                %1252 = vst [vmem:[%s1240 + $0x48] sm:$0xff] %v1251
              $region87: #{plane_decoder_forward.9} parent=81 // loop_footer
                %s1238 = sadd.s32 1, %s1234
              $region88: #{plane_decoder_forward.9} parent=81 // loop_footer_branch
                %1233 = sbr.rel target = $region84
              $region89: #{plane_decoder_forward.9} parent=81 // loop_exit
                _
            $region82: #{plane_decoder_forward.9} parent=77 // pred_fallthru
              _
            // Predicated region
            $region90: #{plane_decoder_forward.9} parent=77 // pred_check
              _
            $region91: #{plane_decoder_forward.9} parent=77 // pred_check_branch
              %1254 = sbr.rel target = $region93
            $region92: #{plane_decoder_forward.9} parent=77 // pred_region
              _
            $region93: #{plane_decoder_forward.9} parent=77 // pred_fallthru
              _
          $region78: #{plane_decoder_forward.9} parent=73 // pred_fallthru
            _
          %1255 = vnop
        $region74: #{plane_decoder_forward.9} parent=65 // pred_fallthru
          _
      $region66: #{plane_decoder_forward.9} parent=5 // pred_fallthru
        _
      %p1256 = scmp.le.s32.totalorder 2, %s9
      // Predicated region
      $region94: #{plane_decoder_forward.9} parent=5 // pred_check
        %p1257 = pneg %p1256
      $region95: #{plane_decoder_forward.9} parent=5 // pred_check_branch
        %1259 = sbr.rel (%p1257) target = $region97
      $region96: #{plane_decoder_forward.9} parent=5 // pred_region
        %s1260 = ssub.s32 %s9, 2
        // Predicated region
        $region98: #{plane_decoder_forward.9} parent=96 // pred_check
          %p1261 = pneg %p130
        $region99: #{plane_decoder_forward.9} parent=96 // pred_check_branch
          %1263 = sbr.rel (%p1261) target = $region101
        $region100: #{plane_decoder_forward.9} parent=96 // pred_region
          %s1264 = sand.u32 %s115, 1
          %s1265 = sand.u32 %s115, 1
          %s1266 = smul.addr %s1265, 48
          %s1267 = scalar_lea.vmem [#allocation3], %s1266
        $region101: #{plane_decoder_forward.9} parent=96 // pred_fallthru
          _
      $region97: #{plane_decoder_forward.9} parent=5 // pred_fallthru
        _
    $region6: #{plane_decoder_forward.9} parent=1 // loop_footer
      %s13 = sadd.s32 1, %s9
    $region7: #{plane_decoder_forward.9} parent=1 // loop_footer_branch
      %8 = sbr.rel target = $region3
    $region8: #{plane_decoder_forward.9} parent=1 // loop_exit
      _

</llo_original>
